<compile_context>
chip_gen: v6e
topology: v6e:2x2x1
jax: 0.10.0
libtpu: 0.0.40
codegen_flags: <defaults>
</compile_context>

<pallas_src>
import math

import jax
import jax.numpy as jnp
from jax.experimental import pallas as pl
from jax.experimental.pallas import tpu as pltpu

# --- small demo dimensions (scaled down from embed_dim=768 of the module) ---
B = 2            # batch
SV = 8           # vision tokens (ViT last_hidden_state length)
ST = 8           # text tokens   (BERT last_hidden_state length)
S = SV + ST      # fused sequence length (per batch row)
D = 128          # embed_dim (lane-aligned stand-in for 768)
H = 8            # num_heads
DH = D // H      # head dim
HS = H * S       # heads * seq  (per-batch block-diagonal width)
L = 2            # fusion transformer layers
FF = 4 * D       # FFN hidden size
OUT = 101        # Food101 classes
OUT_PAD = 128    # lane-padded classifier width

PARAM_ORDER = [
    "wqkv", "bqkv", "wo", "bo",
    "ln1_g", "ln1_b", "ln2_g", "ln2_b",
    "w1", "b1", "w2", "b2",
    "lnf_g", "lnf_b",
    "proj1_w", "proj1_b", "out_w", "out_b",
]


def _layer_norm(x, g, b, eps=1e-5):
    mu = jnp.mean(x, axis=-1, keepdims=True)
    var = jnp.mean((x - mu) ** 2, axis=-1, keepdims=True)
    return (x - mu) * jax.lax.rsqrt(var + eps) * g + b


def _erf(x):
    # Abramowitz & Stegun 7.1.26 (|err| < 1.5e-7): exp/mul/add/where only.
    p = 0.3275911
    a1, a2, a3, a4, a5 = 0.254829592, -0.284496736, 1.421413741, -1.453152027, 1.061405429
    ax = jnp.abs(x)
    t = 1.0 / (1.0 + p * ax)
    poly = ((((a5 * t + a4) * t + a3) * t + a2) * t + a1) * t
    y = 1.0 - poly * jnp.exp(-ax * ax)
    return jnp.where(x >= 0.0, y, -y)


def _gelu_exact(x):
    # matches torch.nn.functional.gelu default (erf form)
    return 0.5 * x * (1.0 + _erf(x * 0.7071067811865476))


def make_masks():
    """Precomputed attention masks, passed to the kernel as VMEM inputs."""
    # Head-block mask for block-diagonal K/V: (HS, D), 1 iff row's head == col's head.
    rh = jnp.arange(HS, dtype=jnp.int32)[:, None] // S
    ch = jnp.arange(D, dtype=jnp.int32)[None, :] // DH
    m_kv = (rh == ch).astype(jnp.bfloat16)                             # (HS, D)
    # Per-(batch, head) softmax-sum mask: (B*HS, B*HS), blocks of size S.
    j = jnp.arange(B * HS, dtype=jnp.int32)
    m_pp = ((j[:, None] // S) == (j[None, :] // S)).astype(jnp.bfloat16)
    # Additive cross-batch score bias: 0 for same batch, -1e30 otherwise.
    bi = jnp.arange(B * S, dtype=jnp.int32)[:, None] // S
    bj = jnp.arange(B * HS, dtype=jnp.int32)[None, :] // HS
    sbias = jnp.where(bi == bj, 0.0, -1e30).astype(jnp.float32)        # (B*S, B*HS)
    return m_kv, m_pp, sbias


def food_fused_kernel(v_ref, t_ref, m_kv_ref, m_pp_ref, sbias_ref,
                      wqkv_ref, bqkv_ref, wo_ref, bo_ref,
                      ln1_g_ref, ln1_b_ref, ln2_g_ref, ln2_b_ref,
                      w1_ref, b1_ref, w2_ref, b2_ref,
                      lnf_g_ref, lnf_b_ref,
                      wp_ref, bp_ref, wout_ref, bout_ref,
                      logits_ref):
    f32 = jnp.float32
    bf16 = jnp.bfloat16

    # Fuse modalities in-kernel: (B, SV, D) ++ (B, ST, D) -> (B*S, D) residual stream.
    x = jnp.concatenate([v_ref[...], t_ref[...]], axis=1).reshape(B * S, D).astype(f32)

    for l in range(L):                                 # static, unrolled layer loop
        # ---- multi-head self-attention block (pre-LN, residual) ----
        h = _layer_norm(x, ln1_g_ref[l], ln1_b_ref[l])
        # 1/sqrt(DH) is pre-folded into the Q columns of wqkv / bqkv (init_params).
        qkv = jnp.dot(h.astype(bf16), wqkv_ref[l],
                      preferred_element_type=f32) + bqkv_ref[l]       # (B*S, 3D)
        q16 = qkv[:, :D].astype(bf16)
        k16 = qkv[:, D:2 * D].astype(bf16)
        v16 = qkv[:, 2 * D:].astype(bf16)

        # Block-diagonal (batch x head) K / V, built in bf16.
        # Row (b, h, s) holds k[b*S + s, :] restricted to head h's D-block.
        m_kv = m_kv_ref[...]                                          # (HS, D) bf16
        k_bd = (jnp.concatenate([k16.reshape(B, S, D)] * H, axis=1)
                * m_kv).reshape(B * HS, D)                            # (B*HS, D) bf16
        v_bd = (jnp.concatenate([v16.reshape(B, S, D)] * H, axis=1)
                * m_kv).reshape(B * HS, D)                            # (B*HS, D) bf16

        # ONE scores matmul + ONE context matmul for the whole batch / all heads.
        s_blk = jax.lax.dot_general(q16, k_bd, (((1,), (1,)), ((), ())),
                                    preferred_element_type=f32)       # (B*S, B*HS)
        s_blk = s_blk + sbias_ref[...]                                # kill cross-batch
        # Per-row (in-batch) max shift; per-head renorm via block-sum matmul.
        # NOTE: a head sitting ~88+ below the row max underflows to denom~0 (floored
        # below); fine at demo scale, add a per-head max at production logit scales.
        e = jnp.exp(s_blk - jnp.max(s_blk, axis=-1, keepdims=True))   # f32, 0 off-batch
        denom = jnp.dot(e.astype(bf16), m_pp_ref[...],
                        preferred_element_type=f32)                   # per-(b,h) sums
        p = e * pl.reciprocal(jnp.maximum(denom, 1e-20), approx=True)
        ctx = jnp.dot(p.astype(bf16), v_bd,
                      preferred_element_type=f32)                     # (B*S, D) merged heads

        attn = jnp.dot(ctx.astype(bf16), wo_ref[l],
                       preferred_element_type=f32) + bo_ref[l]
        x = x + attn

        # ---- feed-forward block (pre-LN, residual) ----
        h = _layer_norm(x, ln2_g_ref[l], ln2_b_ref[l])
        f = jnp.dot(h.astype(bf16), w1_ref[l], preferred_element_type=f32) + b1_ref[l]
        f = jnp.maximum(f, 0.0)                        # ReLU FFN
        f = jnp.dot(f.astype(bf16), w2_ref[l], preferred_element_type=f32) + b2_ref[l]
        x = x + f

    # ---- classification head, applied only to the cls row of each batch item ----
    cls = x.reshape(B, S, D)[:, 0, :]                                 # (B, D)
    cls = _layer_norm(cls, lnf_g_ref[...], lnf_b_ref[...])
    hp = jnp.dot(cls.astype(bf16), wp_ref[...], preferred_element_type=f32) + bp_ref[...]
    hp = _gelu_exact(hp)
    # TODO(synk): F.dropout(p=0.1) is identity in eval mode; training-mode RNG dropout not implemented.
    logits = jnp.dot(hp.astype(bf16), wout_ref[...],
                     preferred_element_type=f32) + bout_ref[...]      # (B, OUT_PAD)
    logits_ref[...] = logits.astype(logits_ref.dtype)


@jax.jit
def food_model_forward(v_hidden, t_hidden, masks, params):
    """v_hidden: (B, SV, D) ViT last_hidden_state; t_hidden: (B, ST, D) BERT
    last_hidden_state.  Returns (B, OUT) logits."""
    m_kv, m_pp, sbias = masks
    args = [v_hidden, t_hidden, m_kv, m_pp, sbias] + [params[n] for n in PARAM_ORDER]
    vmem = lambda: pl.BlockSpec(memory_space=pltpu.MemorySpace.VMEM)

    logits_pad = pl.pallas_call(
        food_fused_kernel,
        out_shape=jax.ShapeDtypeStruct((B, OUT_PAD), jnp.float32),
        in_specs=[vmem() for _ in args],
        out_specs=vmem(),
    )(*args)
    return logits_pad[:, :OUT]


def init_params(key):
    ks = jax.random.split(key, 8)
    s = 0.02
    f32, bf16 = jnp.float32, jnp.bfloat16
    scale = 1.0 / math.sqrt(DH)

    # Fold 1/sqrt(head_dim) into the Q columns of the fused QKV projection.
    wqkv = s * jax.random.normal(ks[0], (L, D, 3 * D), f32)
    wqkv = wqkv.at[:, :, :D].multiply(scale)
    bqkv = jnp.zeros((L, 1, 3 * D), f32)
    bqkv = bqkv.at[:, :, :D].multiply(scale)           # keep semantics if bias != 0

    out_w = s * jax.random.normal(ks[6], (D, OUT), f32)
    out_w_pad = jnp.zeros((D, OUT_PAD), f32).at[:, :OUT].set(out_w)

    return {
        # fusion transformer (stacked over L layers); matmul weights in bf16
        "wqkv": wqkv.astype(bf16),
        "bqkv": bqkv,
        "wo": (s * jax.random.normal(ks[1], (L, D, D), f32)).astype(bf16),
        "bo": jnp.zeros((L, 1, D), f32),
        "ln1_g": jnp.ones((L, 1, D), f32),
        "ln1_b": jnp.zeros((L, 1, D), f32),
        "ln2_g": jnp.ones((L, 1, D), f32),
        "ln2_b": jnp.zeros((L, 1, D), f32),
        "w1": (s * jax.random.normal(ks[2], (L, D, FF), f32)).astype(bf16),
        "b1": jnp.zeros((L, 1, FF), f32),
        "w2": (s * jax.random.normal(ks[3], (L, FF, D), f32)).astype(bf16),
        "b2": jnp.zeros((L, 1, D), f32),
        "lnf_g": jnp.ones((1, D), f32),
        "lnf_b": jnp.zeros((1, D), f32),
        # head: proj1 (D -> D) and out_layer (D -> 101, lane-padded to 128)
        "proj1_w": (s * jax.random.normal(ks[4], (D, D), f32)).astype(bf16),
        "proj1_b": jnp.zeros((1, D), f32),
        "out_w": out_w_pad.astype(bf16),
        "out_b": jnp.zeros((1, OUT_PAD), f32),
    }


if __name__ == "__main__":
    key = jax.random.PRNGKey(0)
    kv, kt = jax.random.split(key)
    # stand-ins for the frozen encoders' last_hidden_state outputs
    v_hidden = jax.random.normal(kv, (B, SV, D), jnp.float32)
    t_hidden = jax.random.normal(kt, (B, ST, D), jnp.float32)

    params = init_params(jax.random.PRNGKey(1))
    masks = make_masks()

    logits = food_model_forward(v_hidden, t_hidden, masks, params)
    jax.block_until_ready(logits)
    assert logits.shape == (B, OUT), logits.shape
    assert bool(jnp.all(jnp.isfinite(logits)))
    print("KERNEL_OK")
</pallas_src>

<mosaic_0001>
module attributes {stable_mosaic.version = 11 : i64} {
  func.func @food_fused_kernel(%arg0: memref<2x8x128xf32, #tpu.memory_space<vmem>>, %arg1: memref<2x8x128xf32, #tpu.memory_space<vmem>>, %arg2: memref<128x128xbf16, #tpu.memory_space<vmem>>, %arg3: memref<256x256xbf16, #tpu.memory_space<vmem>>, %arg4: memref<32x256xf32, #tpu.memory_space<vmem>>, %arg5: memref<2x128x384xbf16, #tpu.memory_space<vmem>>, %arg6: memref<2x1x384xf32, #tpu.memory_space<vmem>>, %arg7: memref<2x128x128xbf16, #tpu.memory_space<vmem>>, %arg8: memref<2x1x128xf32, #tpu.memory_space<vmem>>, %arg9: memref<2x1x128xf32, #tpu.memory_space<vmem>>, %arg10: memref<2x1x128xf32, #tpu.memory_space<vmem>>, %arg11: memref<2x1x128xf32, #tpu.memory_space<vmem>>, %arg12: memref<2x1x128xf32, #tpu.memory_space<vmem>>, %arg13: memref<2x128x512xbf16, #tpu.memory_space<vmem>>, %arg14: memref<2x1x512xf32, #tpu.memory_space<vmem>>, %arg15: memref<2x512x128xbf16, #tpu.memory_space<vmem>>, %arg16: memref<2x1x128xf32, #tpu.memory_space<vmem>>, %arg17: memref<1x128xf32, #tpu.memory_space<vmem>>, %arg18: memref<1x128xf32, #tpu.memory_space<vmem>>, %arg19: memref<128x128xbf16, #tpu.memory_space<vmem>>, %arg20: memref<1x128xf32, #tpu.memory_space<vmem>>, %arg21: memref<128x128xbf16, #tpu.memory_space<vmem>>, %arg22: memref<1x128xf32, #tpu.memory_space<vmem>>, %arg23: memref<2x128xf32, #tpu.memory_space<vmem>>) attributes {dimension_semantics = [], scalar_prefetch = 0 : i64, scratch_operands = 0 : i64, tpu.core_type = #tpu.core_type<tc>} {
    %c0 = arith.constant 0 : index
    %c0_0 = arith.constant 0 : index
    %c0_1 = arith.constant 0 : index
    %0 = vector.load %arg0[%c0, %c0_0, %c0_1] : memref<2x8x128xf32, #tpu.memory_space<vmem>>, vector<2x8x128xf32>
    %c0_2 = arith.constant 0 : index
    %c0_3 = arith.constant 0 : index
    %c0_4 = arith.constant 0 : index
    %1 = vector.load %arg1[%c0_2, %c0_3, %c0_4] : memref<2x8x128xf32, #tpu.memory_space<vmem>>, vector<2x8x128xf32>
    %2 = tpu.concatenate %0, %1 in 1 : vector<2x8x128xf32>, vector<2x8x128xf32> -> vector<2x16x128xf32>
    %3 = vector.shape_cast %2 : vector<2x16x128xf32> to vector<32x128xf32>
    %c0_5 = arith.constant 0 : index
    %c0_6 = arith.constant 0 : index
    %c0_7 = arith.constant 0 : index
    %4 = vector.load %arg9[%c0_5, %c0_6, %c0_7] : memref<2x1x128xf32, #tpu.memory_space<vmem>>, vector<1x1x128xf32>
    %5 = vector.shape_cast %4 : vector<1x1x128xf32> to vector<1x128xf32>
    %c0_8 = arith.constant 0 : index
    %c0_9 = arith.constant 0 : index
    %c0_10 = arith.constant 0 : index
    %6 = vector.load %arg10[%c0_8, %c0_9, %c0_10] : memref<2x1x128xf32, #tpu.memory_space<vmem>>, vector<1x1x128xf32>
    %7 = vector.shape_cast %6 : vector<1x1x128xf32> to vector<1x128xf32>
    %cst = arith.constant dense<0.000000e+00> : vector<32xf32>
    %8 = vector.multi_reduction <add>, %3, %cst [1] : vector<32x128xf32> to vector<32xf32>
    %9 = vector.shape_cast %8 : vector<32xf32> to vector<32x1xf32>
    %cst_11 = arith.constant 1.280000e+02 : f32
    %10 = vector.broadcast %cst_11 : f32 to vector<32x1xf32>
    %11 = arith.divf %9, %10 : vector<32x1xf32>
    %12 = vector.broadcast %11 : vector<32x1xf32> to vector<32x128xf32>
    %13 = arith.subf %3, %12 : vector<32x128xf32>
    %14 = arith.mulf %13, %13 : vector<32x128xf32>
    %cst_12 = arith.constant dense<0.000000e+00> : vector<32xf32>
    %15 = vector.multi_reduction <add>, %14, %cst_12 [1] : vector<32x128xf32> to vector<32xf32>
    %16 = vector.shape_cast %15 : vector<32xf32> to vector<32x1xf32>
    %cst_13 = arith.constant 1.280000e+02 : f32
    %17 = vector.broadcast %cst_13 : f32 to vector<32x1xf32>
    %18 = arith.divf %16, %17 : vector<32x1xf32>
    %19 = vector.broadcast %11 : vector<32x1xf32> to vector<32x128xf32>
    %20 = arith.subf %3, %19 : vector<32x128xf32>
    %cst_14 = arith.constant 9.99999974E-6 : f32
    %21 = vector.broadcast %cst_14 : f32 to vector<32x1xf32>
    %22 = arith.addf %18, %21 : vector<32x1xf32>
    %23 = math.rsqrt %22 : vector<32x1xf32>
    %24 = vector.broadcast %23 : vector<32x1xf32> to vector<32x128xf32>
    %25 = arith.mulf %20, %24 : vector<32x128xf32>
    %26 = vector.broadcast %5 : vector<1x128xf32> to vector<32x128xf32>
    %27 = arith.mulf %25, %26 : vector<32x128xf32>
    %28 = vector.broadcast %7 : vector<1x128xf32> to vector<32x128xf32>
    %29 = arith.addf %27, %28 : vector<32x128xf32>
    %30 = arith.truncf %29 : vector<32x128xf32> to vector<32x128xbf16>
    %c0_15 = arith.constant 0 : index
    %c0_16 = arith.constant 0 : index
    %c0_17 = arith.constant 0 : index
    %31 = vector.load %arg5[%c0_15, %c0_16, %c0_17] : memref<2x128x384xbf16, #tpu.memory_space<vmem>>, vector<1x128x384xbf16>
    %32 = vector.shape_cast %31 : vector<1x128x384xbf16> to vector<128x384xbf16>
    %cst_18 = arith.constant dense<0.000000e+00> : vector<32x384xf32>
    %33 = tpu.matmul %30, %32, %cst_18 {dimension_numbers = #tpu.dot_dimension_numbers<[1], [0], [0], [1], [0, 0, 1, 1], [], []>} : vector<32x128xbf16>, vector<128x384xbf16>, vector<32x384xf32> -> vector<32x384xf32>
    %c0_19 = arith.constant 0 : index
    %c0_20 = arith.constant 0 : index
    %c0_21 = arith.constant 0 : index
    %34 = vector.load %arg6[%c0_19, %c0_20, %c0_21] : memref<2x1x384xf32, #tpu.memory_space<vmem>>, vector<1x1x384xf32>
    %35 = vector.shape_cast %34 : vector<1x1x384xf32> to vector<1x384xf32>
    %36 = vector.broadcast %35 : vector<1x384xf32> to vector<32x384xf32>
    %37 = arith.addf %33, %36 : vector<32x384xf32>
    %38 = vector.extract_strided_slice %37 {offsets = [0, 0], sizes = [32, 128], strides = [1, 1]} : vector<32x384xf32> to vector<32x128xf32>
    %39 = arith.truncf %38 : vector<32x128xf32> to vector<32x128xbf16>
    %40 = vector.extract_strided_slice %37 {offsets = [0, 128], sizes = [32, 128], strides = [1, 1]} : vector<32x384xf32> to vector<32x128xf32>
    %41 = arith.truncf %40 : vector<32x128xf32> to vector<32x128xbf16>
    %42 = vector.extract_strided_slice %37 {offsets = [0, 256], sizes = [32, 128], strides = [1, 1]} : vector<32x384xf32> to vector<32x128xf32>
    %43 = arith.truncf %42 : vector<32x128xf32> to vector<32x128xbf16>
    %c0_22 = arith.constant 0 : index
    %c0_23 = arith.constant 0 : index
    %44 = vector.load %arg2[%c0_22, %c0_23] : memref<128x128xbf16, #tpu.memory_space<vmem>>, vector<128x128xbf16>
    %45 = vector.shape_cast %41 : vector<32x128xbf16> to vector<2x16x128xbf16>
    %46 = tpu.concatenate %45, %45, %45, %45, %45, %45, %45, %45 in 1 : vector<2x16x128xbf16>, vector<2x16x128xbf16>, vector<2x16x128xbf16>, vector<2x16x128xbf16>, vector<2x16x128xbf16>, vector<2x16x128xbf16>, vector<2x16x128xbf16>, vector<2x16x128xbf16> -> vector<2x128x128xbf16>
    %47 = vector.shape_cast %44 : vector<128x128xbf16> to vector<1x128x128xbf16>
    %48 = vector.broadcast %47 : vector<1x128x128xbf16> to vector<2x128x128xbf16>
    %49 = arith.mulf %46, %48 : vector<2x128x128xbf16>
    %50 = vector.shape_cast %49 : vector<2x128x128xbf16> to vector<256x128xbf16>
    %51 = vector.shape_cast %43 : vector<32x128xbf16> to vector<2x16x128xbf16>
    %52 = tpu.concatenate %51, %51, %51, %51, %51, %51, %51, %51 in 1 : vector<2x16x128xbf16>, vector<2x16x128xbf16>, vector<2x16x128xbf16>, vector<2x16x128xbf16>, vector<2x16x128xbf16>, vector<2x16x128xbf16>, vector<2x16x128xbf16>, vector<2x16x128xbf16> -> vector<2x128x128xbf16>
    %53 = vector.shape_cast %44 : vector<128x128xbf16> to vector<1x128x128xbf16>
    %54 = vector.broadcast %53 : vector<1x128x128xbf16> to vector<2x128x128xbf16>
    %55 = arith.mulf %52, %54 : vector<2x128x128xbf16>
    %56 = vector.shape_cast %55 : vector<2x128x128xbf16> to vector<256x128xbf16>
    %cst_24 = arith.constant dense<0.000000e+00> : vector<32x256xf32>
    %57 = tpu.matmul %39, %50, %cst_24 {dimension_numbers = #tpu.dot_dimension_numbers<[1], [1], [0], [0], [0, 0, 1, 0], [], []>} : vector<32x128xbf16>, vector<256x128xbf16>, vector<32x256xf32> -> vector<32x256xf32>
    %c0_25 = arith.constant 0 : index
    %c0_26 = arith.constant 0 : index
    %58 = vector.load %arg4[%c0_25, %c0_26] : memref<32x256xf32, #tpu.memory_space<vmem>>, vector<32x256xf32>
    %59 = arith.addf %57, %58 : vector<32x256xf32>
    %cst_27 = arith.constant dense<0xFF800000> : vector<32xf32>
    %60 = vector.multi_reduction <maximumf>, %59, %cst_27 [1] : vector<32x256xf32> to vector<32xf32>
    %61 = vector.shape_cast %60 : vector<32xf32> to vector<32x1xf32>
    %62 = vector.broadcast %61 : vector<32x1xf32> to vector<32x256xf32>
    %63 = arith.subf %59, %62 : vector<32x256xf32>
    %64 = math.exp %63 : vector<32x256xf32>
    %65 = arith.truncf %64 : vector<32x256xf32> to vector<32x256xbf16>
    %c0_28 = arith.constant 0 : index
    %c0_29 = arith.constant 0 : index
    %66 = vector.load %arg3[%c0_28, %c0_29] : memref<256x256xbf16, #tpu.memory_space<vmem>>, vector<256x256xbf16>
    %cst_30 = arith.constant dense<0.000000e+00> : vector<32x256xf32>
    %67 = tpu.matmul %65, %66, %cst_30 {dimension_numbers = #tpu.dot_dimension_numbers<[1], [0], [0], [1], [0, 0, 1, 1], [], []>} : vector<32x256xbf16>, vector<256x256xbf16>, vector<32x256xf32> -> vector<32x256xf32>
    %cst_31 = arith.constant 9.99999968E-21 : f32
    %68 = vector.broadcast %cst_31 : f32 to vector<32x256xf32>
    %69 = arith.maximumf %67, %68 : vector<32x256xf32>
    %70 = tpu.reciprocal %69 {approx = true} : vector<32x256xf32> -> vector<32x256xf32>
    %71 = arith.mulf %64, %70 : vector<32x256xf32>
    %72 = arith.truncf %71 : vector<32x256xf32> to vector<32x256xbf16>
    %cst_32 = arith.constant dense<0.000000e+00> : vector<32x128xf32>
    %73 = tpu.matmul %72, %56, %cst_32 {dimension_numbers = #tpu.dot_dimension_numbers<[1], [0], [0], [1], [0, 0, 1, 1], [], []>} : vector<32x256xbf16>, vector<256x128xbf16>, vector<32x128xf32> -> vector<32x128xf32>
    %74 = arith.truncf %73 : vector<32x128xf32> to vector<32x128xbf16>
    %c0_33 = arith.constant 0 : index
    %c0_34 = arith.constant 0 : index
    %c0_35 = arith.constant 0 : index
    %75 = vector.load %arg7[%c0_33, %c0_34, %c0_35] : memref<2x128x128xbf16, #tpu.memory_space<vmem>>, vector<1x128x128xbf16>
    %76 = vector.shape_cast %75 : vector<1x128x128xbf16> to vector<128x128xbf16>
    %cst_36 = arith.constant dense<0.000000e+00> : vector<32x128xf32>
    %77 = tpu.matmul %74, %76, %cst_36 {dimension_numbers = #tpu.dot_dimension_numbers<[1], [0], [0], [1], [0, 0, 1, 1], [], []>} : vector<32x128xbf16>, vector<128x128xbf16>, vector<32x128xf32> -> vector<32x128xf32>
    %c0_37 = arith.constant 0 : index
    %c0_38 = arith.constant 0 : index
    %c0_39 = arith.constant 0 : index
    %78 = vector.load %arg8[%c0_37, %c0_38, %c0_39] : memref<2x1x128xf32, #tpu.memory_space<vmem>>, vector<1x1x128xf32>
    %79 = vector.shape_cast %78 : vector<1x1x128xf32> to vector<1x128xf32>
    %80 = vector.broadcast %79 : vector<1x128xf32> to vector<32x128xf32>
    %81 = arith.addf %77, %80 : vector<32x128xf32>
    %82 = arith.addf %3, %81 : vector<32x128xf32>
    %c0_40 = arith.constant 0 : index
    %c0_41 = arith.constant 0 : index
    %c0_42 = arith.constant 0 : index
    %83 = vector.load %arg11[%c0_40, %c0_41, %c0_42] : memref<2x1x128xf32, #tpu.memory_space<vmem>>, vector<1x1x128xf32>
    %84 = vector.shape_cast %83 : vector<1x1x128xf32> to vector<1x128xf32>
    %c0_43 = arith.constant 0 : index
    %c0_44 = arith.constant 0 : index
    %c0_45 = arith.constant 0 : index
    %85 = vector.load %arg12[%c0_43, %c0_44, %c0_45] : memref<2x1x128xf32, #tpu.memory_space<vmem>>, vector<1x1x128xf32>
    %86 = vector.shape_cast %85 : vector<1x1x128xf32> to vector<1x128xf32>
    %cst_46 = arith.constant dense<0.000000e+00> : vector<32xf32>
    %87 = vector.multi_reduction <add>, %82, %cst_46 [1] : vector<32x128xf32> to vector<32xf32>
    %88 = vector.shape_cast %87 : vector<32xf32> to vector<32x1xf32>
    %cst_47 = arith.constant 1.280000e+02 : f32
    %89 = vector.broadcast %cst_47 : f32 to vector<32x1xf32>
    %90 = arith.divf %88, %89 : vector<32x1xf32>
    %91 = vector.broadcast %90 : vector<32x1xf32> to vector<32x128xf32>
    %92 = arith.subf %82, %91 : vector<32x128xf32>
    %93 = arith.mulf %92, %92 : vector<32x128xf32>
    %cst_48 = arith.constant dense<0.000000e+00> : vector<32xf32>
    %94 = vector.multi_reduction <add>, %93, %cst_48 [1] : vector<32x128xf32> to vector<32xf32>
    %95 = vector.shape_cast %94 : vector<32xf32> to vector<32x1xf32>
    %cst_49 = arith.constant 1.280000e+02 : f32
    %96 = vector.broadcast %cst_49 : f32 to vector<32x1xf32>
    %97 = arith.divf %95, %96 : vector<32x1xf32>
    %98 = vector.broadcast %90 : vector<32x1xf32> to vector<32x128xf32>
    %99 = arith.subf %82, %98 : vector<32x128xf32>
    %cst_50 = arith.constant 9.99999974E-6 : f32
    %100 = vector.broadcast %cst_50 : f32 to vector<32x1xf32>
    %101 = arith.addf %97, %100 : vector<32x1xf32>
    %102 = math.rsqrt %101 : vector<32x1xf32>
    %103 = vector.broadcast %102 : vector<32x1xf32> to vector<32x128xf32>
    %104 = arith.mulf %99, %103 : vector<32x128xf32>
    %105 = vector.broadcast %84 : vector<1x128xf32> to vector<32x128xf32>
    %106 = arith.mulf %104, %105 : vector<32x128xf32>
    %107 = vector.broadcast %86 : vector<1x128xf32> to vector<32x128xf32>
    %108 = arith.addf %106, %107 : vector<32x128xf32>
    %109 = arith.truncf %108 : vector<32x128xf32> to vector<32x128xbf16>
    %c0_51 = arith.constant 0 : index
    %c0_52 = arith.constant 0 : index
    %c0_53 = arith.constant 0 : index
    %110 = vector.load %arg13[%c0_51, %c0_52, %c0_53] : memref<2x128x512xbf16, #tpu.memory_space<vmem>>, vector<1x128x512xbf16>
    %111 = vector.shape_cast %110 : vector<1x128x512xbf16> to vector<128x512xbf16>
    %cst_54 = arith.constant dense<0.000000e+00> : vector<32x512xf32>
    %112 = tpu.matmul %109, %111, %cst_54 {dimension_numbers = #tpu.dot_dimension_numbers<[1], [0], [0], [1], [0, 0, 1, 1], [], []>} : vector<32x128xbf16>, vector<128x512xbf16>, vector<32x512xf32> -> vector<32x512xf32>
    %c0_55 = arith.constant 0 : index
    %c0_56 = arith.constant 0 : index
    %c0_57 = arith.constant 0 : index
    %113 = vector.load %arg14[%c0_55, %c0_56, %c0_57] : memref<2x1x512xf32, #tpu.memory_space<vmem>>, vector<1x1x512xf32>
    %114 = vector.shape_cast %113 : vector<1x1x512xf32> to vector<1x512xf32>
    %115 = vector.broadcast %114 : vector<1x512xf32> to vector<32x512xf32>
    %116 = arith.addf %112, %115 : vector<32x512xf32>
    %cst_58 = arith.constant 0.000000e+00 : f32
    %117 = vector.broadcast %cst_58 : f32 to vector<32x512xf32>
    %118 = arith.maximumf %116, %117 : vector<32x512xf32>
    %119 = arith.truncf %118 : vector<32x512xf32> to vector<32x512xbf16>
    %c0_59 = arith.constant 0 : index
    %c0_60 = arith.constant 0 : index
    %c0_61 = arith.constant 0 : index
    %120 = vector.load %arg15[%c0_59, %c0_60, %c0_61] : memref<2x512x128xbf16, #tpu.memory_space<vmem>>, vector<1x512x128xbf16>
    %121 = vector.shape_cast %120 : vector<1x512x128xbf16> to vector<512x128xbf16>
    %cst_62 = arith.constant dense<0.000000e+00> : vector<32x128xf32>
    %122 = tpu.matmul %119, %121, %cst_62 {dimension_numbers = #tpu.dot_dimension_numbers<[1], [0], [0], [1], [0, 0, 1, 1], [], []>} : vector<32x512xbf16>, vector<512x128xbf16>, vector<32x128xf32> -> vector<32x128xf32>
    %c0_63 = arith.constant 0 : index
    %c0_64 = arith.constant 0 : index
    %c0_65 = arith.constant 0 : index
    %123 = vector.load %arg16[%c0_63, %c0_64, %c0_65] : memref<2x1x128xf32, #tpu.memory_space<vmem>>, vector<1x1x128xf32>
    %124 = vector.shape_cast %123 : vector<1x1x128xf32> to vector<1x128xf32>
    %125 = vector.broadcast %124 : vector<1x128xf32> to vector<32x128xf32>
    %126 = arith.addf %122, %125 : vector<32x128xf32>
    %127 = arith.addf %82, %126 : vector<32x128xf32>
    %c1 = arith.constant 1 : index
    %c0_66 = arith.constant 0 : index
    %c0_67 = arith.constant 0 : index
    %128 = vector.load %arg9[%c1, %c0_66, %c0_67] : memref<2x1x128xf32, #tpu.memory_space<vmem>>, vector<1x1x128xf32>
    %129 = vector.shape_cast %128 : vector<1x1x128xf32> to vector<1x128xf32>
    %c1_68 = arith.constant 1 : index
    %c0_69 = arith.constant 0 : index
    %c0_70 = arith.constant 0 : index
    %130 = vector.load %arg10[%c1_68, %c0_69, %c0_70] : memref<2x1x128xf32, #tpu.memory_space<vmem>>, vector<1x1x128xf32>
    %131 = vector.shape_cast %130 : vector<1x1x128xf32> to vector<1x128xf32>
    %cst_71 = arith.constant dense<0.000000e+00> : vector<32xf32>
    %132 = vector.multi_reduction <add>, %127, %cst_71 [1] : vector<32x128xf32> to vector<32xf32>
    %133 = vector.shape_cast %132 : vector<32xf32> to vector<32x1xf32>
    %cst_72 = arith.constant 1.280000e+02 : f32
    %134 = vector.broadcast %cst_72 : f32 to vector<32x1xf32>
    %135 = arith.divf %133, %134 : vector<32x1xf32>
    %136 = vector.broadcast %135 : vector<32x1xf32> to vector<32x128xf32>
    %137 = arith.subf %127, %136 : vector<32x128xf32>
    %138 = arith.mulf %137, %137 : vector<32x128xf32>
    %cst_73 = arith.constant dense<0.000000e+00> : vector<32xf32>
    %139 = vector.multi_reduction <add>, %138, %cst_73 [1] : vector<32x128xf32> to vector<32xf32>
    %140 = vector.shape_cast %139 : vector<32xf32> to vector<32x1xf32>
    %cst_74 = arith.constant 1.280000e+02 : f32
    %141 = vector.broadcast %cst_74 : f32 to vector<32x1xf32>
    %142 = arith.divf %140, %141 : vector<32x1xf32>
    %143 = vector.broadcast %135 : vector<32x1xf32> to vector<32x128xf32>
    %144 = arith.subf %127, %143 : vector<32x128xf32>
    %cst_75 = arith.constant 9.99999974E-6 : f32
    %145 = vector.broadcast %cst_75 : f32 to vector<32x1xf32>
    %146 = arith.addf %142, %145 : vector<32x1xf32>
    %147 = math.rsqrt %146 : vector<32x1xf32>
    %148 = vector.broadcast %147 : vector<32x1xf32> to vector<32x128xf32>
    %149 = arith.mulf %144, %148 : vector<32x128xf32>
    %150 = vector.broadcast %129 : vector<1x128xf32> to vector<32x128xf32>
    %151 = arith.mulf %149, %150 : vector<32x128xf32>
    %152 = vector.broadcast %131 : vector<1x128xf32> to vector<32x128xf32>
    %153 = arith.addf %151, %152 : vector<32x128xf32>
    %154 = arith.truncf %153 : vector<32x128xf32> to vector<32x128xbf16>
    %c1_76 = arith.constant 1 : index
    %c0_77 = arith.constant 0 : index
    %c0_78 = arith.constant 0 : index
    %155 = vector.load %arg5[%c1_76, %c0_77, %c0_78] : memref<2x128x384xbf16, #tpu.memory_space<vmem>>, vector<1x128x384xbf16>
    %156 = vector.shape_cast %155 : vector<1x128x384xbf16> to vector<128x384xbf16>
    %cst_79 = arith.constant dense<0.000000e+00> : vector<32x384xf32>
    %157 = tpu.matmul %154, %156, %cst_79 {dimension_numbers = #tpu.dot_dimension_numbers<[1], [0], [0], [1], [0, 0, 1, 1], [], []>} : vector<32x128xbf16>, vector<128x384xbf16>, vector<32x384xf32> -> vector<32x384xf32>
    %c1_80 = arith.constant 1 : index
    %c0_81 = arith.constant 0 : index
    %c0_82 = arith.constant 0 : index
    %158 = vector.load %arg6[%c1_80, %c0_81, %c0_82] : memref<2x1x384xf32, #tpu.memory_space<vmem>>, vector<1x1x384xf32>
    %159 = vector.shape_cast %158 : vector<1x1x384xf32> to vector<1x384xf32>
    %160 = vector.broadcast %159 : vector<1x384xf32> to vector<32x384xf32>
    %161 = arith.addf %157, %160 : vector<32x384xf32>
    %162 = vector.extract_strided_slice %161 {offsets = [0, 0], sizes = [32, 128], strides = [1, 1]} : vector<32x384xf32> to vector<32x128xf32>
    %163 = arith.truncf %162 : vector<32x128xf32> to vector<32x128xbf16>
    %164 = vector.extract_strided_slice %161 {offsets = [0, 128], sizes = [32, 128], strides = [1, 1]} : vector<32x384xf32> to vector<32x128xf32>
    %165 = arith.truncf %164 : vector<32x128xf32> to vector<32x128xbf16>
    %166 = vector.extract_strided_slice %161 {offsets = [0, 256], sizes = [32, 128], strides = [1, 1]} : vector<32x384xf32> to vector<32x128xf32>
    %167 = arith.truncf %166 : vector<32x128xf32> to vector<32x128xbf16>
    %c0_83 = arith.constant 0 : index
    %c0_84 = arith.constant 0 : index
    %168 = vector.load %arg2[%c0_83, %c0_84] : memref<128x128xbf16, #tpu.memory_space<vmem>>, vector<128x128xbf16>
    %169 = vector.shape_cast %165 : vector<32x128xbf16> to vector<2x16x128xbf16>
    %170 = tpu.concatenate %169, %169, %169, %169, %169, %169, %169, %169 in 1 : vector<2x16x128xbf16>, vector<2x16x128xbf16>, vector<2x16x128xbf16>, vector<2x16x128xbf16>, vector<2x16x128xbf16>, vector<2x16x128xbf16>, vector<2x16x128xbf16>, vector<2x16x128xbf16> -> vector<2x128x128xbf16>
    %171 = vector.shape_cast %168 : vector<128x128xbf16> to vector<1x128x128xbf16>
    %172 = vector.broadcast %171 : vector<1x128x128xbf16> to vector<2x128x128xbf16>
    %173 = arith.mulf %170, %172 : vector<2x128x128xbf16>
    %174 = vector.shape_cast %173 : vector<2x128x128xbf16> to vector<256x128xbf16>
    %175 = vector.shape_cast %167 : vector<32x128xbf16> to vector<2x16x128xbf16>
    %176 = tpu.concatenate %175, %175, %175, %175, %175, %175, %175, %175 in 1 : vector<2x16x128xbf16>, vector<2x16x128xbf16>, vector<2x16x128xbf16>, vector<2x16x128xbf16>, vector<2x16x128xbf16>, vector<2x16x128xbf16>, vector<2x16x128xbf16>, vector<2x16x128xbf16> -> vector<2x128x128xbf16>
    %177 = vector.shape_cast %168 : vector<128x128xbf16> to vector<1x128x128xbf16>
    %178 = vector.broadcast %177 : vector<1x128x128xbf16> to vector<2x128x128xbf16>
    %179 = arith.mulf %176, %178 : vector<2x128x128xbf16>
    %180 = vector.shape_cast %179 : vector<2x128x128xbf16> to vector<256x128xbf16>
    %cst_85 = arith.constant dense<0.000000e+00> : vector<32x256xf32>
    %181 = tpu.matmul %163, %174, %cst_85 {dimension_numbers = #tpu.dot_dimension_numbers<[1], [1], [0], [0], [0, 0, 1, 0], [], []>} : vector<32x128xbf16>, vector<256x128xbf16>, vector<32x256xf32> -> vector<32x256xf32>
    %c0_86 = arith.constant 0 : index
    %c0_87 = arith.constant 0 : index
    %182 = vector.load %arg4[%c0_86, %c0_87] : memref<32x256xf32, #tpu.memory_space<vmem>>, vector<32x256xf32>
    %183 = arith.addf %181, %182 : vector<32x256xf32>
    %cst_88 = arith.constant dense<0xFF800000> : vector<32xf32>
    %184 = vector.multi_reduction <maximumf>, %183, %cst_88 [1] : vector<32x256xf32> to vector<32xf32>
    %185 = vector.shape_cast %184 : vector<32xf32> to vector<32x1xf32>
    %186 = vector.broadcast %185 : vector<32x1xf32> to vector<32x256xf32>
    %187 = arith.subf %183, %186 : vector<32x256xf32>
    %188 = math.exp %187 : vector<32x256xf32>
    %189 = arith.truncf %188 : vector<32x256xf32> to vector<32x256xbf16>
    %c0_89 = arith.constant 0 : index
    %c0_90 = arith.constant 0 : index
    %190 = vector.load %arg3[%c0_89, %c0_90] : memref<256x256xbf16, #tpu.memory_space<vmem>>, vector<256x256xbf16>
    %cst_91 = arith.constant dense<0.000000e+00> : vector<32x256xf32>
    %191 = tpu.matmul %189, %190, %cst_91 {dimension_numbers = #tpu.dot_dimension_numbers<[1], [0], [0], [1], [0, 0, 1, 1], [], []>} : vector<32x256xbf16>, vector<256x256xbf16>, vector<32x256xf32> -> vector<32x256xf32>
    %cst_92 = arith.constant 9.99999968E-21 : f32
    %192 = vector.broadcast %cst_92 : f32 to vector<32x256xf32>
    %193 = arith.maximumf %191, %192 : vector<32x256xf32>
    %194 = tpu.reciprocal %193 {approx = true} : vector<32x256xf32> -> vector<32x256xf32>
    %195 = arith.mulf %188, %194 : vector<32x256xf32>
    %196 = arith.truncf %195 : vector<32x256xf32> to vector<32x256xbf16>
    %cst_93 = arith.constant dense<0.000000e+00> : vector<32x128xf32>
    %197 = tpu.matmul %196, %180, %cst_93 {dimension_numbers = #tpu.dot_dimension_numbers<[1], [0], [0], [1], [0, 0, 1, 1], [], []>} : vector<32x256xbf16>, vector<256x128xbf16>, vector<32x128xf32> -> vector<32x128xf32>
    %198 = arith.truncf %197 : vector<32x128xf32> to vector<32x128xbf16>
    %c1_94 = arith.constant 1 : index
    %c0_95 = arith.constant 0 : index
    %c0_96 = arith.constant 0 : index
    %199 = vector.load %arg7[%c1_94, %c0_95, %c0_96] : memref<2x128x128xbf16, #tpu.memory_space<vmem>>, vector<1x128x128xbf16>
    %200 = vector.shape_cast %199 : vector<1x128x128xbf16> to vector<128x128xbf16>
    %cst_97 = arith.constant dense<0.000000e+00> : vector<32x128xf32>
    %201 = tpu.matmul %198, %200, %cst_97 {dimension_numbers = #tpu.dot_dimension_numbers<[1], [0], [0], [1], [0, 0, 1, 1], [], []>} : vector<32x128xbf16>, vector<128x128xbf16>, vector<32x128xf32> -> vector<32x128xf32>
    %c1_98 = arith.constant 1 : index
    %c0_99 = arith.constant 0 : index
    %c0_100 = arith.constant 0 : index
    %202 = vector.load %arg8[%c1_98, %c0_99, %c0_100] : memref<2x1x128xf32, #tpu.memory_space<vmem>>, vector<1x1x128xf32>
    %203 = vector.shape_cast %202 : vector<1x1x128xf32> to vector<1x128xf32>
    %204 = vector.broadcast %203 : vector<1x128xf32> to vector<32x128xf32>
    %205 = arith.addf %201, %204 : vector<32x128xf32>
    %206 = arith.addf %127, %205 : vector<32x128xf32>
    %c1_101 = arith.constant 1 : index
    %c0_102 = arith.constant 0 : index
    %c0_103 = arith.constant 0 : index
    %207 = vector.load %arg11[%c1_101, %c0_102, %c0_103] : memref<2x1x128xf32, #tpu.memory_space<vmem>>, vector<1x1x128xf32>
    %208 = vector.shape_cast %207 : vector<1x1x128xf32> to vector<1x128xf32>
    %c1_104 = arith.constant 1 : index
    %c0_105 = arith.constant 0 : index
    %c0_106 = arith.constant 0 : index
    %209 = vector.load %arg12[%c1_104, %c0_105, %c0_106] : memref<2x1x128xf32, #tpu.memory_space<vmem>>, vector<1x1x128xf32>
    %210 = vector.shape_cast %209 : vector<1x1x128xf32> to vector<1x128xf32>
    %cst_107 = arith.constant dense<0.000000e+00> : vector<32xf32>
    %211 = vector.multi_reduction <add>, %206, %cst_107 [1] : vector<32x128xf32> to vector<32xf32>
    %212 = vector.shape_cast %211 : vector<32xf32> to vector<32x1xf32>
    %cst_108 = arith.constant 1.280000e+02 : f32
    %213 = vector.broadcast %cst_108 : f32 to vector<32x1xf32>
    %214 = arith.divf %212, %213 : vector<32x1xf32>
    %215 = vector.broadcast %214 : vector<32x1xf32> to vector<32x128xf32>
    %216 = arith.subf %206, %215 : vector<32x128xf32>
    %217 = arith.mulf %216, %216 : vector<32x128xf32>
    %cst_109 = arith.constant dense<0.000000e+00> : vector<32xf32>
    %218 = vector.multi_reduction <add>, %217, %cst_109 [1] : vector<32x128xf32> to vector<32xf32>
    %219 = vector.shape_cast %218 : vector<32xf32> to vector<32x1xf32>
    %cst_110 = arith.constant 1.280000e+02 : f32
    %220 = vector.broadcast %cst_110 : f32 to vector<32x1xf32>
    %221 = arith.divf %219, %220 : vector<32x1xf32>
    %222 = vector.broadcast %214 : vector<32x1xf32> to vector<32x128xf32>
    %223 = arith.subf %206, %222 : vector<32x128xf32>
    %cst_111 = arith.constant 9.99999974E-6 : f32
    %224 = vector.broadcast %cst_111 : f32 to vector<32x1xf32>
    %225 = arith.addf %221, %224 : vector<32x1xf32>
    %226 = math.rsqrt %225 : vector<32x1xf32>
    %227 = vector.broadcast %226 : vector<32x1xf32> to vector<32x128xf32>
    %228 = arith.mulf %223, %227 : vector<32x128xf32>
    %229 = vector.broadcast %208 : vector<1x128xf32> to vector<32x128xf32>
    %230 = arith.mulf %228, %229 : vector<32x128xf32>
    %231 = vector.broadcast %210 : vector<1x128xf32> to vector<32x128xf32>
    %232 = arith.addf %230, %231 : vector<32x128xf32>
    %233 = arith.truncf %232 : vector<32x128xf32> to vector<32x128xbf16>
    %c1_112 = arith.constant 1 : index
    %c0_113 = arith.constant 0 : index
    %c0_114 = arith.constant 0 : index
    %234 = vector.load %arg13[%c1_112, %c0_113, %c0_114] : memref<2x128x512xbf16, #tpu.memory_space<vmem>>, vector<1x128x512xbf16>
    %235 = vector.shape_cast %234 : vector<1x128x512xbf16> to vector<128x512xbf16>
    %cst_115 = arith.constant dense<0.000000e+00> : vector<32x512xf32>
    %236 = tpu.matmul %233, %235, %cst_115 {dimension_numbers = #tpu.dot_dimension_numbers<[1], [0], [0], [1], [0, 0, 1, 1], [], []>} : vector<32x128xbf16>, vector<128x512xbf16>, vector<32x512xf32> -> vector<32x512xf32>
    %c1_116 = arith.constant 1 : index
    %c0_117 = arith.constant 0 : index
    %c0_118 = arith.constant 0 : index
    %237 = vector.load %arg14[%c1_116, %c0_117, %c0_118] : memref<2x1x512xf32, #tpu.memory_space<vmem>>, vector<1x1x512xf32>
    %238 = vector.shape_cast %237 : vector<1x1x512xf32> to vector<1x512xf32>
    %239 = vector.broadcast %238 : vector<1x512xf32> to vector<32x512xf32>
    %240 = arith.addf %236, %239 : vector<32x512xf32>
    %cst_119 = arith.constant 0.000000e+00 : f32
    %241 = vector.broadcast %cst_119 : f32 to vector<32x512xf32>
    %242 = arith.maximumf %240, %241 : vector<32x512xf32>
    %243 = arith.truncf %242 : vector<32x512xf32> to vector<32x512xbf16>
    %c1_120 = arith.constant 1 : index
    %c0_121 = arith.constant 0 : index
    %c0_122 = arith.constant 0 : index
    %244 = vector.load %arg15[%c1_120, %c0_121, %c0_122] : memref<2x512x128xbf16, #tpu.memory_space<vmem>>, vector<1x512x128xbf16>
    %245 = vector.shape_cast %244 : vector<1x512x128xbf16> to vector<512x128xbf16>
    %cst_123 = arith.constant dense<0.000000e+00> : vector<32x128xf32>
    %246 = tpu.matmul %243, %245, %cst_123 {dimension_numbers = #tpu.dot_dimension_numbers<[1], [0], [0], [1], [0, 0, 1, 1], [], []>} : vector<32x512xbf16>, vector<512x128xbf16>, vector<32x128xf32> -> vector<32x128xf32>
    %c1_124 = arith.constant 1 : index
    %c0_125 = arith.constant 0 : index
    %c0_126 = arith.constant 0 : index
    %247 = vector.load %arg16[%c1_124, %c0_125, %c0_126] : memref<2x1x128xf32, #tpu.memory_space<vmem>>, vector<1x1x128xf32>
    %248 = vector.shape_cast %247 : vector<1x1x128xf32> to vector<1x128xf32>
    %249 = vector.broadcast %248 : vector<1x128xf32> to vector<32x128xf32>
    %250 = arith.addf %246, %249 : vector<32x128xf32>
    %251 = arith.addf %206, %250 : vector<32x128xf32>
    %252 = vector.shape_cast %251 : vector<32x128xf32> to vector<2x16x128xf32>
    %253 = vector.extract_strided_slice %252 {offsets = [0, 0, 0], sizes = [2, 1, 128], strides = [1, 1, 1]} : vector<2x16x128xf32> to vector<2x1x128xf32>
    %254 = vector.shape_cast %253 : vector<2x1x128xf32> to vector<2x128xf32>
    %c0_127 = arith.constant 0 : index
    %c0_128 = arith.constant 0 : index
    %255 = vector.load %arg17[%c0_127, %c0_128] : memref<1x128xf32, #tpu.memory_space<vmem>>, vector<1x128xf32>
    %c0_129 = arith.constant 0 : index
    %c0_130 = arith.constant 0 : index
    %256 = vector.load %arg18[%c0_129, %c0_130] : memref<1x128xf32, #tpu.memory_space<vmem>>, vector<1x128xf32>
    %cst_131 = arith.constant dense<0.000000e+00> : vector<2xf32>
    %257 = vector.multi_reduction <add>, %254, %cst_131 [1] : vector<2x128xf32> to vector<2xf32>
    %258 = vector.shape_cast %257 : vector<2xf32> to vector<2x1xf32>
    %cst_132 = arith.constant 1.280000e+02 : f32
    %259 = vector.broadcast %cst_132 : f32 to vector<2x1xf32>
    %260 = arith.divf %258, %259 : vector<2x1xf32>
    %261 = vector.broadcast %260 : vector<2x1xf32> to vector<2x128xf32>
    %262 = arith.subf %254, %261 : vector<2x128xf32>
    %263 = arith.mulf %262, %262 : vector<2x128xf32>
    %cst_133 = arith.constant dense<0.000000e+00> : vector<2xf32>
    %264 = vector.multi_reduction <add>, %263, %cst_133 [1] : vector<2x128xf32> to vector<2xf32>
    %265 = vector.shape_cast %264 : vector<2xf32> to vector<2x1xf32>
    %cst_134 = arith.constant 1.280000e+02 : f32
    %266 = vector.broadcast %cst_134 : f32 to vector<2x1xf32>
    %267 = arith.divf %265, %266 : vector<2x1xf32>
    %268 = vector.broadcast %260 : vector<2x1xf32> to vector<2x128xf32>
    %269 = arith.subf %254, %268 : vector<2x128xf32>
    %cst_135 = arith.constant 9.99999974E-6 : f32
    %270 = vector.broadcast %cst_135 : f32 to vector<2x1xf32>
    %271 = arith.addf %267, %270 : vector<2x1xf32>
    %272 = math.rsqrt %271 : vector<2x1xf32>
    %273 = vector.broadcast %272 : vector<2x1xf32> to vector<2x128xf32>
    %274 = arith.mulf %269, %273 : vector<2x128xf32>
    %275 = vector.broadcast %255 : vector<1x128xf32> to vector<2x128xf32>
    %276 = arith.mulf %274, %275 : vector<2x128xf32>
    %277 = vector.broadcast %256 : vector<1x128xf32> to vector<2x128xf32>
    %278 = arith.addf %276, %277 : vector<2x128xf32>
    %279 = arith.truncf %278 : vector<2x128xf32> to vector<2x128xbf16>
    %c0_136 = arith.constant 0 : index
    %c0_137 = arith.constant 0 : index
    %280 = vector.load %arg19[%c0_136, %c0_137] : memref<128x128xbf16, #tpu.memory_space<vmem>>, vector<128x128xbf16>
    %cst_138 = arith.constant dense<0.000000e+00> : vector<2x128xf32>
    %281 = tpu.matmul %279, %280, %cst_138 {dimension_numbers = #tpu.dot_dimension_numbers<[1], [0], [0], [1], [0, 0, 1, 1], [], []>} : vector<2x128xbf16>, vector<128x128xbf16>, vector<2x128xf32> -> vector<2x128xf32>
    %c0_139 = arith.constant 0 : index
    %c0_140 = arith.constant 0 : index
    %282 = vector.load %arg20[%c0_139, %c0_140] : memref<1x128xf32, #tpu.memory_space<vmem>>, vector<1x128xf32>
    %283 = vector.broadcast %282 : vector<1x128xf32> to vector<2x128xf32>
    %284 = arith.addf %281, %283 : vector<2x128xf32>
    %cst_141 = arith.constant 5.000000e-01 : f32
    %285 = vector.broadcast %cst_141 : f32 to vector<2x128xf32>
    %286 = arith.mulf %285, %284 : vector<2x128xf32>
    %cst_142 = arith.constant 0.707106769 : f32
    %287 = vector.broadcast %cst_142 : f32 to vector<2x128xf32>
    %288 = arith.mulf %284, %287 : vector<2x128xf32>
    %289 = math.absf %288 : vector<2x128xf32>
    %cst_143 = arith.constant 0.327591091 : f32
    %290 = vector.broadcast %cst_143 : f32 to vector<2x128xf32>
    %291 = arith.mulf %290, %289 : vector<2x128xf32>
    %cst_144 = arith.constant 1.000000e+00 : f32
    %292 = vector.broadcast %cst_144 : f32 to vector<2x128xf32>
    %293 = arith.addf %292, %291 : vector<2x128xf32>
    %cst_145 = arith.constant 1.000000e+00 : f32
    %294 = vector.broadcast %cst_145 : f32 to vector<2x128xf32>
    %295 = arith.divf %294, %293 : vector<2x128xf32>
    %cst_146 = arith.constant 1.06140542 : f32
    %296 = vector.broadcast %cst_146 : f32 to vector<2x128xf32>
    %297 = arith.mulf %296, %295 : vector<2x128xf32>
    %cst_147 = arith.constant -1.45315206 : f32
    %298 = vector.broadcast %cst_147 : f32 to vector<2x128xf32>
    %299 = arith.addf %297, %298 : vector<2x128xf32>
    %300 = arith.mulf %299, %295 : vector<2x128xf32>
    %cst_148 = arith.constant 1.42141378 : f32
    %301 = vector.broadcast %cst_148 : f32 to vector<2x128xf32>
    %302 = arith.addf %300, %301 : vector<2x128xf32>
    %303 = arith.mulf %302, %295 : vector<2x128xf32>
    %cst_149 = arith.constant -0.284496725 : f32
    %304 = vector.broadcast %cst_149 : f32 to vector<2x128xf32>
    %305 = arith.addf %303, %304 : vector<2x128xf32>
    %306 = arith.mulf %305, %295 : vector<2x128xf32>
    %cst_150 = arith.constant 0.254829586 : f32
    %307 = vector.broadcast %cst_150 : f32 to vector<2x128xf32>
    %308 = arith.addf %306, %307 : vector<2x128xf32>
    %309 = arith.mulf %308, %295 : vector<2x128xf32>
    %cst_151 = arith.constant 0.000000e+00 : f32
    %310 = vector.broadcast %cst_151 : f32 to vector<2x128xf32>
    %311 = arith.subf %310, %289 : vector<2x128xf32>
    %312 = arith.mulf %311, %289 : vector<2x128xf32>
    %313 = math.exp %312 : vector<2x128xf32>
    %314 = arith.mulf %309, %313 : vector<2x128xf32>
    %cst_152 = arith.constant 1.000000e+00 : f32
    %315 = vector.broadcast %cst_152 : f32 to vector<2x128xf32>
    %316 = arith.subf %315, %314 : vector<2x128xf32>
    %cst_153 = arith.constant 0.000000e+00 : f32
    %317 = vector.broadcast %cst_153 : f32 to vector<2x128xf32>
    %318 = arith.cmpf oge, %288, %317 : vector<2x128xf32>
    %cst_154 = arith.constant 0.000000e+00 : f32
    %319 = vector.broadcast %cst_154 : f32 to vector<2x128xf32>
    %320 = arith.subf %319, %316 : vector<2x128xf32>
    %321 = arith.select %318, %316, %320 : vector<2x128xi1>, vector<2x128xf32>
    %cst_155 = arith.constant 1.000000e+00 : f32
    %322 = vector.broadcast %cst_155 : f32 to vector<2x128xf32>
    %323 = arith.addf %322, %321 : vector<2x128xf32>
    %324 = arith.mulf %286, %323 : vector<2x128xf32>
    %325 = arith.truncf %324 : vector<2x128xf32> to vector<2x128xbf16>
    %c0_156 = arith.constant 0 : index
    %c0_157 = arith.constant 0 : index
    %326 = vector.load %arg21[%c0_156, %c0_157] : memref<128x128xbf16, #tpu.memory_space<vmem>>, vector<128x128xbf16>
    %cst_158 = arith.constant dense<0.000000e+00> : vector<2x128xf32>
    %327 = tpu.matmul %325, %326, %cst_158 {dimension_numbers = #tpu.dot_dimension_numbers<[1], [0], [0], [1], [0, 0, 1, 1], [], []>} : vector<2x128xbf16>, vector<128x128xbf16>, vector<2x128xf32> -> vector<2x128xf32>
    %c0_159 = arith.constant 0 : index
    %c0_160 = arith.constant 0 : index
    %328 = vector.load %arg22[%c0_159, %c0_160] : memref<1x128xf32, #tpu.memory_space<vmem>>, vector<1x128xf32>
    %329 = vector.broadcast %328 : vector<1x128xf32> to vector<2x128xf32>
    %330 = arith.addf %327, %329 : vector<2x128xf32>
    %c0_161 = arith.constant 0 : index
    %c0_162 = arith.constant 0 : index
    %331 = vector.load %arg23[%c0_161, %c0_162] : memref<2x128xf32, #tpu.memory_space<vmem>>, vector<2x128xf32>
    tpu.vector_store %arg23[%c0_161, %c0_162], %330 {strides = array<i32>} : memref<2x128xf32, #tpu.memory_space<vmem>>, vector<2x128xf32>,
    return
  }
}

</mosaic_0001>

<llo_original>
// kernel: food_model_forward.1
$region0: #{food_model_forward.1}
  #allocation0 [shape = 'u32[]', space=smem, size = 0x4, offset = 0x4, fixed_abs, tag = 'smem constant byte address 0x4 - core index']
  #allocation1 [shape = 'u32[144,128]{1,0:T(1,128)}', space=vmem, size = 0x12000, scoped, tag = 'internal scratch']
  %s0 = inlined_call_operand.hbm [shape: f32[2,8,128], index: 0, kind: input, shape index: {}]
  %s1 = inlined_call_operand.hbm [shape: f32[2,8,128], index: 1, kind: input, shape index: {}]
  %s2 = inlined_call_operand.hbm [shape: bf16[128,128], index: 2, kind: input, shape index: {}]
  %s3 = inlined_call_operand.hbm [shape: bf16[256,256], index: 3, kind: input, shape index: {}]
  %s4 = inlined_call_operand.hbm [shape: f32[32,256], index: 4, kind: input, shape index: {}]
  %s5 = inlined_call_operand.hbm [shape: bf16[2,128,384], index: 5, kind: input, shape index: {}]
  %s6 = inlined_call_operand.vmem [shape: f32[2,1,384], index: 6, kind: input, shape index: {}]
  %s7 = inlined_call_operand.hbm [shape: bf16[2,128,128], index: 7, kind: input, shape index: {}]
  %s8 = inlined_call_operand.hbm [shape: f32[2,1,128], index: 8, kind: input, shape index: {}]
  %s9 = inlined_call_operand.vmem [shape: f32[2,1,128], index: 9, kind: input, shape index: {}]
  %s10 = inlined_call_operand.hbm [shape: f32[2,1,128], index: 10, kind: input, shape index: {}]
  %s11 = inlined_call_operand.vmem [shape: f32[2,1,128], index: 11, kind: input, shape index: {}]
  %s12 = inlined_call_operand.vmem [shape: f32[2,1,128], index: 12, kind: input, shape index: {}]
  %s13 = inlined_call_operand.hbm [shape: bf16[2,128,512], index: 13, kind: input, shape index: {}]
  %s14 = inlined_call_operand.vmem [shape: f32[2,1,512], index: 14, kind: input, shape index: {}]
  %s15 = inlined_call_operand.hbm [shape: bf16[2,512,128], index: 15, kind: input, shape index: {}]
  %s16 = inlined_call_operand.hbm [shape: f32[2,1,128], index: 16, kind: input, shape index: {}]
  %s17 = inlined_call_operand.vmem [shape: f32[1,128], index: 17, kind: input, shape index: {}]
  %s18 = inlined_call_operand.vmem [shape: f32[1,128], index: 18, kind: input, shape index: {}]
  %s19 = inlined_call_operand.hbm [shape: bf16[128,128], index: 19, kind: input, shape index: {}]
  %s20 = inlined_call_operand.vmem [shape: f32[1,128], index: 20, kind: input, shape index: {}]
  %s21 = inlined_call_operand.hbm [shape: bf16[128,128], index: 21, kind: input, shape index: {}]
  %s22 = inlined_call_operand.vmem [shape: f32[1,128], index: 22, kind: input, shape index: {}]
  %s23 = inlined_call_operand.hbm [shape: f32[2,128], index: 23, kind: output, shape index: {}]
  %s24 = sld [smem:[#allocation0]]
  $region158: #{food_model_forward.1} parent=0
    _
  %s26 = ssub.s32 1, %s24
  %s27 = scalar_select 0, %s26, %s24
  $region1: #{food_model_forward.1} parent=0
    #allocation2 [shape = 'u8[8192]{0}', space=vmem, size = 0x2000, scoped, tag = 'input window, operand 0, single buffered']
    #allocation3 [shape = 's32[1]{0}', space=sflag, size = 0x4, scoped, tag = 'scoped memory for food_model_forward.1']
    #allocation4 [shape = 's32[1]{0}', space=sflag, size = 0x4, scoped, tag = 'scoped memory for food_model_forward.1']
    #allocation5 [shape = 'u8[8192]{0}', space=vmem, size = 0x2000, scoped, tag = 'input window, operand 1, single buffered']
    #allocation6 [shape = 's32[1]{0}', space=sflag, size = 0x4, scoped, tag = 'scoped memory for food_model_forward.1']
    #allocation7 [shape = 'u8[32768]{0}', space=vmem, size = 0x8000, scoped, tag = 'input window, operand 2, single buffered']
    #allocation8 [shape = 'u8[131072]{0}', space=vmem, size = 0x20000, scoped, tag = 'input window, operand 3, single buffered']
    #allocation9 [shape = 's32[1]{0}', space=sflag, size = 0x4, scoped, tag = 'scoped memory for food_model_forward.1']
    #allocation10 [shape = 'u8[32768]{0}', space=vmem, size = 0x8000, scoped, tag = 'input window, operand 4, single buffered']
    #allocation11 [shape = 'u8[196608]{0}', space=vmem, size = 0x30000, scoped, tag = 'input window, operand 5, single buffered']
    #allocation12 [shape = 's32[1]{0}', space=sflag, size = 0x4, scoped, tag = 'scoped memory for food_model_forward.1']
    #allocation13 [shape = 'u8[65536]{0}', space=vmem, size = 0x10000, scoped, tag = 'input window, operand 7, single buffered']
    #allocation14 [shape = 'u8[1024]{0}', space=vmem, size = 0x400, scoped, tag = 'input window, operand 8, single buffered']
    #allocation15 [shape = 's32[1]{0}', space=sflag, size = 0x4, scoped, tag = 'scoped memory for food_model_forward.1']
    #allocation16 [shape = 'u8[1024]{0}', space=vmem, size = 0x400, scoped, tag = 'input window, operand 10, single buffered']
    #allocation17 [shape = 'u8[262144]{0}', space=vmem, size = 0x40000, scoped, tag = 'input window, operand 13, single buffered']
    #allocation18 [shape = 's32[1]{0}', space=sflag, size = 0x4, scoped, tag = 'scoped memory for food_model_forward.1']
    #allocation19 [shape = 'u8[262144]{0}', space=vmem, size = 0x40000, scoped, tag = 'input window, operand 15, single buffered']
    #allocation20 [shape = 'u8[1024]{0}', space=vmem, size = 0x400, scoped, tag = 'input window, operand 16, single buffered']
    #allocation21 [shape = 's32[1]{0}', space=sflag, size = 0x4, scoped, tag = 'scoped memory for food_model_forward.1']
    #allocation22 [shape = 'u8[32768]{0}', space=vmem, size = 0x8000, scoped, tag = 'input window, operand 19, single buffered']
    #allocation23 [shape = 'u8[32768]{0}', space=vmem, size = 0x8000, scoped, tag = 'input window, operand 21, single buffered']
    #allocation24 [shape = 's32[1]{0}', space=sflag, size = 0x4, scoped, tag = 'scoped memory for food_model_forward.1']
    #allocation25 [shape = 'u8[1024]{0}', space=vmem, size = 0x400, scoped, tag = 'output window, operand 0, single buffered']
    %28 = vsyncpa [#allocation3], 0
    %29 = vsyncpa [#allocation6], 0
    %30 = vsyncpa [#allocation9], 0
    %31 = vsyncpa [#allocation12], 0
    %32 = vsyncpa [#allocation15], 0
    %33 = vsyncpa [#allocation18], 0
    %34 = vsyncpa [#allocation21], 0
    %35 = vsyncpa [#allocation24], 0
    %36 = vsyncpa [#allocation4], 0
    // Predicated region
    $region2: #{food_model_forward.1} parent=1 // pred_check
      _
    $region3: #{food_model_forward.1} parent=1 // pred_check_branch
      %38 = sbr.rel (0) target = $region5
    $region4: #{food_model_forward.1} parent=1 // pred_region
      %s40 = ssub.s32 256, 256
      %41 = vsyncadd [#allocation3], %s40
      %s42 = sshll.u32 [#allocation2], 4
      %s43 = int_to_ptr.vmem [resolvable:$true] %s42
      %48 = dma.hbm_to_vmem [thread:$0]  %s0, 256, %s43, [#allocation3], 128, 128, 8
    $region5: #{food_model_forward.1} parent=1 // pred_fallthru
      _
    // Predicated region
    $region6: #{food_model_forward.1} parent=1 // pred_check
      _
    $region7: #{food_model_forward.1} parent=1 // pred_check_branch
      %50 = sbr.rel (0) target = $region9
    $region8: #{food_model_forward.1} parent=1 // pred_region
      %s52 = ssub.s32 256, 256
      %53 = vsyncadd [#allocation6], %s52
      %s54 = sshll.u32 [#allocation5], 4
      %s55 = int_to_ptr.vmem [resolvable:$true] %s54
      %60 = dma.hbm_to_vmem [thread:$0]  %s1, 256, %s55, [#allocation6], 128, 128, 8
    $region9: #{food_model_forward.1} parent=1 // pred_fallthru
      _
    // Predicated region
    $region10: #{food_model_forward.1} parent=1 // pred_check
      _
    $region11: #{food_model_forward.1} parent=1 // pred_check_branch
      %62 = sbr.rel (0) target = $region13
    $region12: #{food_model_forward.1} parent=1 // pred_region
      %s64 = ssub.s32 1024, 1024
      %65 = vsyncadd [#allocation6], %s64
      %s66 = sshll.u32 [#allocation7], 4
      %s67 = int_to_ptr.vmem [resolvable:$true] %s66
      %72 = dma.hbm_to_vmem [thread:$0]  %s2, 1024, %s67, [#allocation6], 64, 64, 4
    $region13: #{food_model_forward.1} parent=1 // pred_fallthru
      _
    // Predicated region
    $region14: #{food_model_forward.1} parent=1 // pred_check
      _
    $region15: #{food_model_forward.1} parent=1 // pred_check_branch
      %74 = sbr.rel (0) target = $region17
    $region16: #{food_model_forward.1} parent=1 // pred_region
      %s76 = ssub.s32 4096, 4096
      %77 = vsyncadd [#allocation9], %s76
      %s78 = sshll.u32 [#allocation8], 4
      %s79 = int_to_ptr.vmem [resolvable:$true] %s78
      %84 = dma.hbm_to_vmem [thread:$0]  %s3, 4096, %s79, [#allocation9], 128, 128, 8
    $region17: #{food_model_forward.1} parent=1 // pred_fallthru
      _
    // Predicated region
    $region18: #{food_model_forward.1} parent=1 // pred_check
      _
    $region19: #{food_model_forward.1} parent=1 // pred_check_branch
      %86 = sbr.rel (0) target = $region21
    $region20: #{food_model_forward.1} parent=1 // pred_region
      %s88 = ssub.s32 1024, 1024
      %89 = vsyncadd [#allocation9], %s88
      %s90 = sshll.u32 [#allocation10], 4
      %s91 = int_to_ptr.vmem [resolvable:$true] %s90
      %96 = dma.hbm_to_vmem [thread:$0]  %s4, 1024, %s91, [#allocation9], 256, 256, 16
    $region21: #{food_model_forward.1} parent=1 // pred_fallthru
      _
    // Predicated region
    $region22: #{food_model_forward.1} parent=1 // pred_check
      _
    $region23: #{food_model_forward.1} parent=1 // pred_check_branch
      %98 = sbr.rel (0) target = $region25
    $region24: #{food_model_forward.1} parent=1 // pred_region
      %s100 = ssub.s32 6144, 6144
      %101 = vsyncadd [#allocation12], %s100
      %s102 = sshll.u32 [#allocation11], 4
      %s103 = int_to_ptr.vmem [resolvable:$true] %s102
      %108 = dma.hbm_to_vmem [thread:$0]  %s5, 6144, %s103, [#allocation12], 192, 192, 12
    $region25: #{food_model_forward.1} parent=1 // pred_fallthru
      _
    // Predicated region
    $region26: #{food_model_forward.1} parent=1 // pred_check
      _
    $region27: #{food_model_forward.1} parent=1 // pred_check_branch
      %110 = sbr.rel (0) target = $region29
    $region28: #{food_model_forward.1} parent=1 // pred_region
      _
    $region29: #{food_model_forward.1} parent=1 // pred_fallthru
      _
    // Predicated region
    $region30: #{food_model_forward.1} parent=1 // pred_check
      _
    $region31: #{food_model_forward.1} parent=1 // pred_check_branch
      %112 = sbr.rel (0) target = $region33
    $region32: #{food_model_forward.1} parent=1 // pred_region
      %s114 = ssub.s32 2048, 2048
      %115 = vsyncadd [#allocation12], %s114
      %s116 = sshll.u32 [#allocation13], 4
      %s117 = int_to_ptr.vmem [resolvable:$true] %s116
      %122 = dma.hbm_to_vmem [thread:$0]  %s7, 2048, %s117, [#allocation12], 64, 64, 4
    $region33: #{food_model_forward.1} parent=1 // pred_fallthru
      _
    // Predicated region
    $region34: #{food_model_forward.1} parent=1 // pred_check
      _
    $region35: #{food_model_forward.1} parent=1 // pred_check_branch
      %124 = sbr.rel (0) target = $region37
    $region36: #{food_model_forward.1} parent=1 // pred_region
      %s126 = ssub.s32 32, 32
      %127 = vsyncadd [#allocation15], %s126
      %s128 = sshll.u32 [#allocation14], 4
      %s129 = int_to_ptr.vmem [resolvable:$true] %s128
      %134 = dma.hbm_to_vmem [thread:$0]  %s8, 32, %s129, [#allocation15], 16, 16, 1
    $region37: #{food_model_forward.1} parent=1 // pred_fallthru
      _
    // Predicated region
    $region38: #{food_model_forward.1} parent=1 // pred_check
      _
    $region39: #{food_model_forward.1} parent=1 // pred_check_branch
      %136 = sbr.rel (0) target = $region41
    $region40: #{food_model_forward.1} parent=1 // pred_region
      _
    $region41: #{food_model_forward.1} parent=1 // pred_fallthru
      _
    // Predicated region
    $region42: #{food_model_forward.1} parent=1 // pred_check
      _
    $region43: #{food_model_forward.1} parent=1 // pred_check_branch
      %138 = sbr.rel (0) target = $region45
    $region44: #{food_model_forward.1} parent=1 // pred_region
      %s140 = ssub.s32 32, 32
      %141 = vsyncadd [#allocation15], %s140
      %s142 = sshll.u32 [#allocation16], 4
      %s143 = int_to_ptr.vmem [resolvable:$true] %s142
      %148 = dma.hbm_to_vmem [thread:$0]  %s10, 32, %s143, [#allocation15], 16, 16, 1
    $region45: #{food_model_forward.1} parent=1 // pred_fallthru
      _
    // Predicated region
    $region46: #{food_model_forward.1} parent=1 // pred_check
      _
    $region47: #{food_model_forward.1} parent=1 // pred_check_branch
      %150 = sbr.rel (0) target = $region49
    $region48: #{food_model_forward.1} parent=1 // pred_region
      _
    $region49: #{food_model_forward.1} parent=1 // pred_fallthru
      _
    // Predicated region
    $region50: #{food_model_forward.1} parent=1 // pred_check
      _
    $region51: #{food_model_forward.1} parent=1 // pred_check_branch
      %152 = sbr.rel (0) target = $region53
    $region52: #{food_model_forward.1} parent=1 // pred_region
      _
    $region53: #{food_model_forward.1} parent=1 // pred_fallthru
      _
    // Predicated region
    $region54: #{food_model_forward.1} parent=1 // pred_check
      _
    $region55: #{food_model_forward.1} parent=1 // pred_check_branch
      %154 = sbr.rel (0) target = $region57
    $region56: #{food_model_forward.1} parent=1 // pred_region
      %s156 = ssub.s32 8192, 8192
      %157 = vsyncadd [#allocation18], %s156
      %s158 = sshll.u32 [#allocation17], 4
      %s159 = int_to_ptr.vmem [resolvable:$true] %s158
      %164 = dma.hbm_to_vmem [thread:$0]  %s13, 8192, %s159, [#allocation18], 256, 256, 16
    $region57: #{food_model_forward.1} parent=1 // pred_fallthru
      _
    // Predicated region
    $region58: #{food_model_forward.1} parent=1 // pred_check
      _
    $region59: #{food_model_forward.1} parent=1 // pred_check_branch
      %166 = sbr.rel (0) target = $region61
    $region60: #{food_model_forward.1} parent=1 // pred_region
      _
    $region61: #{food_model_forward.1} parent=1 // pred_fallthru
      _
    // Predicated region
    $region62: #{food_model_forward.1} parent=1 // pred_check
      _
    $region63: #{food_model_forward.1} parent=1 // pred_check_branch
      %168 = sbr.rel (0) target = $region65
    $region64: #{food_model_forward.1} parent=1 // pred_region
      %s170 = ssub.s32 8192, 8192
      %171 = vsyncadd [#allocation18], %s170
      %s172 = sshll.u32 [#allocation19], 4
      %s173 = int_to_ptr.vmem [resolvable:$true] %s172
      %178 = dma.hbm_to_vmem [thread:$0]  %s15, 8192, %s173, [#allocation18], 64, 64, 4
    $region65: #{food_model_forward.1} parent=1 // pred_fallthru
      _
    // Predicated region
    $region66: #{food_model_forward.1} parent=1 // pred_check
      _
    $region67: #{food_model_forward.1} parent=1 // pred_check_branch
      %180 = sbr.rel (0) target = $region69
    $region68: #{food_model_forward.1} parent=1 // pred_region
      %s182 = ssub.s32 32, 32
      %183 = vsyncadd [#allocation21], %s182
      %s184 = sshll.u32 [#allocation20], 4
      %s185 = int_to_ptr.vmem [resolvable:$true] %s184
      %190 = dma.hbm_to_vmem [thread:$0]  %s16, 32, %s185, [#allocation21], 16, 16, 1
    $region69: #{food_model_forward.1} parent=1 // pred_fallthru
      _
    // Predicated region
    $region70: #{food_model_forward.1} parent=1 // pred_check
      _
    $region71: #{food_model_forward.1} parent=1 // pred_check_branch
      %192 = sbr.rel (0) target = $region73
    $region72: #{food_model_forward.1} parent=1 // pred_region
      _
    $region73: #{food_model_forward.1} parent=1 // pred_fallthru
      _
    // Predicated region
    $region74: #{food_model_forward.1} parent=1 // pred_check
      _
    $region75: #{food_model_forward.1} parent=1 // pred_check_branch
      %194 = sbr.rel (0) target = $region77
    $region76: #{food_model_forward.1} parent=1 // pred_region
      _
    $region77: #{food_model_forward.1} parent=1 // pred_fallthru
      _
    // Predicated region
    $region78: #{food_model_forward.1} parent=1 // pred_check
      _
    $region79: #{food_model_forward.1} parent=1 // pred_check_branch
      %196 = sbr.rel (0) target = $region81
    $region80: #{food_model_forward.1} parent=1 // pred_region
      %s198 = ssub.s32 1024, 1024
      %199 = vsyncadd [#allocation21], %s198
      %s200 = sshll.u32 [#allocation22], 4
      %s201 = int_to_ptr.vmem [resolvable:$true] %s200
      %206 = dma.hbm_to_vmem [thread:$0]  %s19, 1024, %s201, [#allocation21], 64, 64, 4
    $region81: #{food_model_forward.1} parent=1 // pred_fallthru
      _
    // Predicated region
    $region82: #{food_model_forward.1} parent=1 // pred_check
      _
    $region83: #{food_model_forward.1} parent=1 // pred_check_branch
      %208 = sbr.rel (0) target = $region85
    $region84: #{food_model_forward.1} parent=1 // pred_region
      _
    $region85: #{food_model_forward.1} parent=1 // pred_fallthru
      _
    // Predicated region
    $region86: #{food_model_forward.1} parent=1 // pred_check
      _
    $region87: #{food_model_forward.1} parent=1 // pred_check_branch
      %210 = sbr.rel (0) target = $region89
    $region88: #{food_model_forward.1} parent=1 // pred_region
      %s212 = ssub.s32 1024, 1024
      %213 = vsyncadd [#allocation24], %s212
      %s214 = sshll.u32 [#allocation23], 4
      %s215 = int_to_ptr.vmem [resolvable:$true] %s214
      %220 = dma.hbm_to_vmem [thread:$0]  %s21, 1024, %s215, [#allocation24], 64, 64, 4
    $region89: #{food_model_forward.1} parent=1 // pred_fallthru
      _
    // Predicated region
    $region90: #{food_model_forward.1} parent=1 // pred_check
      _
    $region91: #{food_model_forward.1} parent=1 // pred_check_branch
      %222 = sbr.rel (0) target = $region93
    $region92: #{food_model_forward.1} parent=1 // pred_region
      _
    $region93: #{food_model_forward.1} parent=1 // pred_fallthru
      _
    // Predicated region
    $region94: #{food_model_forward.1} parent=1 // pred_check
      _
    $region95: #{food_model_forward.1} parent=1 // pred_check_branch
      %224 = sbr.rel (0) target = $region97
    $region96: #{food_model_forward.1} parent=1 // pred_region
      %225 = dma.done [#allocation3], 256
    $region97: #{food_model_forward.1} parent=1 // pred_fallthru
      _
    // Predicated region
    $region98: #{food_model_forward.1} parent=1 // pred_check
      _
    $region99: #{food_model_forward.1} parent=1 // pred_check_branch
      %227 = sbr.rel (0) target = $region101
    $region100: #{food_model_forward.1} parent=1 // pred_region
      %228 = dma.done [#allocation6], 256
    $region101: #{food_model_forward.1} parent=1 // pred_fallthru
      _
    // Predicated region
    $region102: #{food_model_forward.1} parent=1 // pred_check
      _
    $region103: #{food_model_forward.1} parent=1 // pred_check_branch
      %230 = sbr.rel (0) target = $region105
    $region104: #{food_model_forward.1} parent=1 // pred_region
      %231 = dma.done [#allocation6], 1024
    $region105: #{food_model_forward.1} parent=1 // pred_fallthru
      _
    // Predicated region
    $region106: #{food_model_forward.1} parent=1 // pred_check
      _
    $region107: #{food_model_forward.1} parent=1 // pred_check_branch
      %233 = sbr.rel (0) target = $region109
    $region108: #{food_model_forward.1} parent=1 // pred_region
      %234 = dma.done [#allocation9], 4096
    $region109: #{food_model_forward.1} parent=1 // pred_fallthru
      _
    // Predicated region
    $region110: #{food_model_forward.1} parent=1 // pred_check
      _
    $region111: #{food_model_forward.1} parent=1 // pred_check_branch
      %236 = sbr.rel (0) target = $region113
    $region112: #{food_model_forward.1} parent=1 // pred_region
      %237 = dma.done [#allocation9], 1024
    $region113: #{food_model_forward.1} parent=1 // pred_fallthru
      _
    // Predicated region
    $region114: #{food_model_forward.1} parent=1 // pred_check
      _
    $region115: #{food_model_forward.1} parent=1 // pred_check_branch
      %239 = sbr.rel (0) target = $region117
    $region116: #{food_model_forward.1} parent=1 // pred_region
      %240 = dma.done [#allocation12], 6144
    $region117: #{food_model_forward.1} parent=1 // pred_fallthru
      _
    // Predicated region
    $region118: #{food_model_forward.1} parent=1 // pred_check
      _
    $region119: #{food_model_forward.1} parent=1 // pred_check_branch
      %242 = sbr.rel (0) target = $region121
    $region120: #{food_model_forward.1} parent=1 // pred_region
      %243 = dma.done [#allocation12], 2048
    $region121: #{food_model_forward.1} parent=1 // pred_fallthru
      _
    // Predicated region
    $region122: #{food_model_forward.1} parent=1 // pred_check
      _
    $region123: #{food_model_forward.1} parent=1 // pred_check_branch
      %245 = sbr.rel (0) target = $region125
    $region124: #{food_model_forward.1} parent=1 // pred_region
      %246 = dma.done [#allocation15], 32
    $region125: #{food_model_forward.1} parent=1 // pred_fallthru
      _
    // Predicated region
    $region126: #{food_model_forward.1} parent=1 // pred_check
      _
    $region127: #{food_model_forward.1} parent=1 // pred_check_branch
      %248 = sbr.rel (0) target = $region129
    $region128: #{food_model_forward.1} parent=1 // pred_region
      %249 = dma.done [#allocation15], 32
    $region129: #{food_model_forward.1} parent=1 // pred_fallthru
      _
    // Predicated region
    $region130: #{food_model_forward.1} parent=1 // pred_check
      _
    $region131: #{food_model_forward.1} parent=1 // pred_check_branch
      %251 = sbr.rel (0) target = $region133
    $region132: #{food_model_forward.1} parent=1 // pred_region
      %252 = dma.done [#allocation18], 8192
    $region133: #{food_model_forward.1} parent=1 // pred_fallthru
      _
    // Predicated region
    $region134: #{food_model_forward.1} parent=1 // pred_check
      _
    $region135: #{food_model_forward.1} parent=1 // pred_check_branch
      %254 = sbr.rel (0) target = $region137
    $region136: #{food_model_forward.1} parent=1 // pred_region
      %255 = dma.done [#allocation18], 8192
    $region137: #{food_model_forward.1} parent=1 // pred_fallthru
      _
    // Predicated region
    $region138: #{food_model_forward.1} parent=1 // pred_check
      _
    $region139: #{food_model_forward.1} parent=1 // pred_check_branch
      %257 = sbr.rel (0) target = $region141
    $region140: #{food_model_forward.1} parent=1 // pred_region
      %258 = dma.done [#allocation21], 32
    $region141: #{food_model_forward.1} parent=1 // pred_fallthru
      _
    // Predicated region
    $region142: #{food_model_forward.1} parent=1 // pred_check
      _
    $region143: #{food_model_forward.1} parent=1 // pred_check_branch
      %260 = sbr.rel (0) target = $region145
    $region144: #{food_model_forward.1} parent=1 // pred_region
      %261 = dma.done [#allocation21], 1024
    $region145: #{food_model_forward.1} parent=1 // pred_fallthru
      _
    // Predicated region
    $region146: #{food_model_forward.1} parent=1 // pred_check
      _
    $region147: #{food_model_forward.1} parent=1 // pred_check_branch
      %263 = sbr.rel (0) target = $region149
    $region148: #{food_model_forward.1} parent=1 // pred_region
      %264 = dma.done [#allocation24], 1024
    $region149: #{food_model_forward.1} parent=1 // pred_fallthru
      _
    %v266 = vld [vmem:[#allocation2] sm:$0xff]
    %v267 = vld [vmem:[#allocation2 + $0x8] sm:$0xff]
    %v268 = vld [vmem:[#allocation5] sm:$0xff]
    %v269 = vld [vmem:[#allocation5 + $0x8] sm:$0xff]
    %v270 = vld [vmem:[%s9] sm:$0x1]
    %v271 = vld [vmem:[#allocation16] sm:$0x1]
    %272 = vadd.xlane.f32.xlu0 %v266
    %v273 = vpop.xlane.xlu0 %272
    %274 = vadd.xlane.f32.xlu0 %v268
    %v275 = vpop.xlane.xlu0 %274
    %276 = vadd.xlane.f32.xlu0 %v267
    %v277 = vpop.xlane.xlu0 %276
    %278 = vadd.xlane.f32.xlu0 %v269
    %v279 = vpop.xlane.xlu0 %278
    %v280 = vrcp.pop 128.0
    %v281 = vmul.f32 %v273, %v280
    %v282 = vmul.f32 %v275, %v280
    %v283 = vmul.f32 %v277, %v280
    %v284 = vmul.f32 %v279, %v280
    %v285 = vsub.f32 %v266, %v281
    %v286 = vsub.f32 %v268, %v282
    %v287 = vsub.f32 %v267, %v283
    %v288 = vsub.f32 %v269, %v284
    %v289 = vmul.f32 %v285, %v285
    %v290 = vmul.f32 %v286, %v286
    %v291 = vmul.f32 %v287, %v287
    %v292 = vmul.f32 %v288, %v288
    %293 = vadd.xlane.f32.xlu0 %v289
    %v294 = vpop.xlane.xlu0 %293
    %295 = vadd.xlane.f32.xlu0 %v290
    %v296 = vpop.xlane.xlu0 %295
    %297 = vadd.xlane.f32.xlu0 %v291
    %v298 = vpop.xlane.xlu0 %297
    %299 = vadd.xlane.f32.xlu0 %v292
    %v300 = vpop.xlane.xlu0 %299
    %v301 = vmul.f32 %v294, %v280
    %v302 = vmul.f32 %v296, %v280
    %v303 = vmul.f32 %v298, %v280
    %v304 = vmul.f32 %v300, %v280
    %v305 = vadd.f32 %v301, 1e-05
    %v306 = vadd.f32 %v302, 1e-05
    %v307 = vadd.f32 %v303, 1e-05
    %v308 = vadd.f32 %v304, 1e-05
    %v309 = vrsqrt.pop %v305
    %v310 = vrsqrt.pop %v306
    %v311 = vrsqrt.pop %v307
    %v312 = vrsqrt.pop %v308
    %v313 = vmul.f32 %v285, %v309
    %v314 = vmul.f32 %v286, %v310
    %v315 = vmul.f32 %v287, %v311
    %v316 = vmul.f32 %v288, %v312
    %v318 = vlaneseq
    %v319 = vshrl.u32 %v318, 7
    %v320 = vsub.s32 0, %v319
    %v321 = vrot.slane %v270, %v320
    %v323 = vmul.f32 %v313, %v321
    %v324 = vmul.f32 %v314, %v321
    %v325 = vmul.f32 %v315, %v321
    %v326 = vmul.f32 %v316, %v321
    %v328 = vlaneseq
    %v329 = vshrl.u32 %v328, 7
    %v330 = vsub.s32 0, %v329
    %v331 = vrot.slane %v271, %v330
    %v333 = vadd.f32 %v323, %v331
    %v334 = vadd.f32 %v324, %v331
    %v335 = vadd.f32 %v325, %v331
    %v336 = vadd.f32 %v326, %v331
    %v337 = vpack.c.bf16 %v334, %v333
    %v338 = vpack.c.bf16 %v336, %v335
    %v339 = vld [vmem:[#allocation11] sm:$0xff]
    %v340 = vld [vmem:[#allocation11 + $0x8] sm:$0xf]
    %v341 = vld [vmem:[#allocation11 + $0xc] sm:$0xff]
    %v342 = vld [vmem:[#allocation11 + $0x14] sm:$0xf]
    %v343 = vld [vmem:[#allocation11 + $0x18] sm:$0xff]
    %v344 = vld [vmem:[#allocation11 + $0x20] sm:$0xf]
    %v345 = vld [vmem:[#allocation11 + $0x24] sm:$0xff]
    %v346 = vld [vmem:[#allocation11 + $0x2c] sm:$0xf]
    %v347 = vld [vmem:[#allocation11 + $0x30] sm:$0xff]
    %v348 = vld [vmem:[#allocation11 + $0x38] sm:$0xf]
    %v349 = vld [vmem:[#allocation11 + $0x3c] sm:$0xff]
    %v350 = vld [vmem:[#allocation11 + $0x44] sm:$0xf]
    %v351 = vld [vmem:[#allocation11 + $0x48] sm:$0xff]
    %v352 = vld [vmem:[#allocation11 + $0x50] sm:$0xf]
    %v353 = vld [vmem:[#allocation11 + $0x54] sm:$0xff]
    %v354 = vld [vmem:[#allocation11 + $0x5c] sm:$0xf]
    %v355 = vld [vmem:[#allocation11 + $0x60] sm:$0xff]
    %v356 = vld [vmem:[#allocation11 + $0x68] sm:$0xf]
    %v357 = vld [vmem:[#allocation11 + $0x6c] sm:$0xff]
    %v358 = vld [vmem:[#allocation11 + $0x74] sm:$0xf]
    %v359 = vld [vmem:[#allocation11 + $0x78] sm:$0xff]
    %v360 = vld [vmem:[#allocation11 + $0x80] sm:$0xf]
    %v361 = vld [vmem:[#allocation11 + $0x84] sm:$0xff]
    %v362 = vld [vmem:[#allocation11 + $0x8c] sm:$0xf]
    %v363 = vld [vmem:[#allocation11 + $0x90] sm:$0xff]
    %v364 = vld [vmem:[#allocation11 + $0x98] sm:$0xf]
    %v365 = vld [vmem:[#allocation11 + $0x9c] sm:$0xff]
    %v366 = vld [vmem:[#allocation11 + $0xa4] sm:$0xf]
    %v367 = vld [vmem:[#allocation11 + $0xa8] sm:$0xff]
    %v368 = vld [vmem:[#allocation11 + $0xb0] sm:$0xf]
    %v369 = vld [vmem:[#allocation11 + $0xb4] sm:$0xff]
    %v370 = vld [vmem:[#allocation11 + $0xbc] sm:$0xf]
    %v371 = vld [vmem:[%s6] sm:$0x7]
    %v373 = vlaneseq
    %v374 = vshrl.u32 %v373, 7
    %v375 = vsub.s32 0, %v374
    %v376 = vrot.slane %v371, %v375
    %v377 = vlaneseq
    %v378 = vshrl.u32 %v377, 7
    %v379 = vsub.s32 1, %v378
    %v380 = vrot.slane %v371, %v379
    %v381 = vlaneseq
    %v382 = vshrl.u32 %v381, 7
    %v383 = vsub.s32 2, %v382
    %v384 = vrot.slane %v371, %v383
    %v420 = vunpack.c.l.b16 %v339
    %v421 = vunpack.c.h.b16 %v339
    %v422 = vunpack.c.l.b16 %v340
    %v423 = vunpack.c.l.b16 %v341
    %v424 = vunpack.c.h.b16 %v341
    %v425 = vunpack.c.l.b16 %v342
    %v426 = vunpack.c.l.b16 %v343
    %v427 = vunpack.c.h.b16 %v343
    %v428 = vunpack.c.l.b16 %v344
    %v429 = vunpack.c.l.b16 %v345
    %v430 = vunpack.c.h.b16 %v345
    %v431 = vunpack.c.l.b16 %v346
    %v432 = vunpack.c.l.b16 %v347
    %v433 = vunpack.c.h.b16 %v347
    %v434 = vunpack.c.l.b16 %v348
    %v435 = vunpack.c.l.b16 %v349
    %v436 = vunpack.c.h.b16 %v349
    %v437 = vunpack.c.l.b16 %v350
    %v438 = vunpack.c.l.b16 %v351
    %v439 = vunpack.c.h.b16 %v351
    %v440 = vunpack.c.l.b16 %v352
    %v441 = vunpack.c.l.b16 %v353
    %v442 = vunpack.c.h.b16 %v353
    %v443 = vunpack.c.l.b16 %v354
    %v444 = vunpack.c.l.b16 %v355
    %v445 = vunpack.c.h.b16 %v355
    %v446 = vunpack.c.l.b16 %v356
    %v447 = vunpack.c.l.b16 %v357
    %v448 = vunpack.c.h.b16 %v357
    %v449 = vunpack.c.l.b16 %v358
    %v450 = vunpack.c.l.b16 %v359
    %v451 = vunpack.c.h.b16 %v359
    %v452 = vunpack.c.l.b16 %v360
    %v453 = vunpack.c.l.b16 %v361
    %v454 = vunpack.c.h.b16 %v361
    %v455 = vunpack.c.l.b16 %v362
    %v456 = vunpack.c.l.b16 %v363
    %v457 = vunpack.c.h.b16 %v363
    %v458 = vunpack.c.l.b16 %v364
    %v459 = vunpack.c.l.b16 %v365
    %v460 = vunpack.c.h.b16 %v365
    %v461 = vunpack.c.l.b16 %v366
    %v462 = vunpack.c.l.b16 %v367
    %v463 = vunpack.c.h.b16 %v367
    %v464 = vunpack.c.l.b16 %v368
    %v465 = vunpack.c.l.b16 %v369
    %v466 = vunpack.c.h.b16 %v369
    %v467 = vunpack.c.l.b16 %v370
    %v468 = vpack.c.b16 %v423, %v420
    %v469 = vpack.c.b16 %v424, %v421
    %v470 = vpack.c.b16 %v425, %v422
    %v471 = vpack.c.b16 %v429, %v426
    %v472 = vpack.c.b16 %v430, %v427
    %v473 = vpack.c.b16 %v431, %v428
    %v474 = vpack.c.b16 %v435, %v432
    %v475 = vpack.c.b16 %v436, %v433
    %v476 = vpack.c.b16 %v437, %v434
    %v477 = vpack.c.b16 %v441, %v438
    %v478 = vpack.c.b16 %v442, %v439
    %v479 = vpack.c.b16 %v443, %v440
    %v480 = vpack.c.b16 %v447, %v444
    %v481 = vpack.c.b16 %v448, %v445
    %v482 = vpack.c.b16 %v449, %v446
    %v483 = vpack.c.b16 %v453, %v450
    %v484 = vpack.c.b16 %v454, %v451
    %v485 = vpack.c.b16 %v455, %v452
    %v486 = vpack.c.b16 %v459, %v456
    %v487 = vpack.c.b16 %v460, %v457
    %v488 = vpack.c.b16 %v461, %v458
    %v489 = vpack.c.b16 %v465, %v462
    %v490 = vpack.c.b16 %v466, %v463
    %v491 = vpack.c.b16 %v467, %v464
    %516 = vmatprep.subr.bf16.mxu0 %v490
    %517 = vmatpush1.bf16.msra.mxu0 %v489
    %518 = vmatprep.subr.bf16.mxu0 %v487
    %519 = vmatpush1.bf16.msra.mxu0 %v486
    %520 = vmatprep.subr.bf16.mxu0 %v484
    %521 = vmatpush1.bf16.msra.mxu0 %v483
    %522 = vmatprep.subr.bf16.mxu0 %v481
    %523 = vmatpush1.bf16.msra.mxu0 %v480
    %524 = vmatprep.subr.bf16.mxu0 %v478
    %525 = vmatpush1.bf16.msra.mxu0 %v477
    %526 = vmatprep.subr.bf16.mxu0 %v475
    %527 = vmatpush1.bf16.msra.mxu0 %v474
    %528 = vmatprep.subr.bf16.mxu0 %v472
    %529 = vmatpush1.bf16.msra.mxu0 %v471
    %530 = vmatprep.subr.bf16.mxu0 %v469
    %531 = vmatpush1.bf16.msra.mxu0 %v468
    %532 = vmatprep.subr.bf16.mxu0 0
    %533 = vmatpush2.bf16.msra.mxu0 0
    %534 = vmatprep.subr.bf16.mxu0 0
    %535 = vmatpush2.bf16.msra.mxu0 0
    %536 = vmatprep.subr.bf16.mxu0 0
    %537 = vmatpush2.bf16.msra.mxu0 0
    %538 = vmatprep.subr.bf16.mxu0 0
    %539 = vmatpush2.bf16.msra.mxu0 0
    %540 = vmatprep.subr.bf16.mxu0 0
    %541 = vmatpush2.bf16.msra.mxu0 0
    %542 = vmatprep.subr.bf16.mxu0 0
    %543 = vmatpush2.bf16.msra.mxu0 0
    %544 = vmatprep.subr.bf16.mxu0 0
    %545 = vmatpush2.bf16.msra.mxu0 0
    %546 = vmatprep.subr.bf16.mxu0 0
    %547 = vmatpush2.bf16.msra.mxu0 0
    %548 = vmatprep.mubr.bf16.mxu0 0
    %549 = vmatmul.mubr.bf16.gmra.mxu0 %v337
    %v550 = vpop.f32.mrf.mxu0
    %v551 = vadd.f32 %v376, %v550
    %v552 = vpop.f32.mrf.mxu0
    %v553 = vadd.f32 %v380, %v552
    %v554 = vpop.f32.mrf.mxu0
    %v555 = vadd.f32 %v376, %v554
    %v556 = vpop.f32.mrf.mxu0
    %v557 = vadd.f32 %v380, %v556
    %558 = vmatprep.mubr.bf16.mxu0 0
    %559 = vmatmul.mubr.bf16.gmra.mxu0 %v338
    %v560 = vpop.f32.mrf.mxu0
    %v561 = vadd.f32 %v376, %v560
    %v562 = vpop.f32.mrf.mxu0
    %v563 = vadd.f32 %v380, %v562
    %v564 = vpop.f32.mrf.mxu0
    %v565 = vadd.f32 %v376, %v564
    %v566 = vpop.f32.mrf.mxu0
    %v567 = vadd.f32 %v380, %v566
    %568 = vdwg.mxu0
    %569 = vmatprep.subr.bf16.mxu0 0
    %570 = vmatpush1.bf16.msra.mxu0 %v491
    %571 = vmatprep.subr.bf16.mxu0 0
    %572 = vmatpush1.bf16.msra.mxu0 %v488
    %573 = vmatprep.subr.bf16.mxu0 0
    %574 = vmatpush1.bf16.msra.mxu0 %v485
    %575 = vmatprep.subr.bf16.mxu0 0
    %576 = vmatpush1.bf16.msra.mxu0 %v482
    %577 = vmatprep.subr.bf16.mxu0 0
    %578 = vmatpush1.bf16.msra.mxu0 %v479
    %579 = vmatprep.subr.bf16.mxu0 0
    %580 = vmatpush1.bf16.msra.mxu0 %v476
    %581 = vmatprep.subr.bf16.mxu0 0
    %582 = vmatpush1.bf16.msra.mxu0 %v473
    %583 = vmatprep.subr.bf16.mxu0 0
    %584 = vmatpush1.bf16.msra.mxu0 %v470
    %585 = vmatprep.subr.bf16.mxu0 0
    %586 = vmatpush2.bf16.msra.mxu0 0
    %587 = vmatprep.subr.bf16.mxu0 0
    %588 = vmatpush2.bf16.msra.mxu0 0
    %589 = vmatprep.subr.bf16.mxu0 0
    %590 = vmatpush2.bf16.msra.mxu0 0
    %591 = vmatprep.subr.bf16.mxu0 0
    %592 = vmatpush2.bf16.msra.mxu0 0
    %593 = vmatprep.subr.bf16.mxu0 0
    %594 = vmatpush2.bf16.msra.mxu0 0
    %595 = vmatprep.subr.bf16.mxu0 0
    %596 = vmatpush2.bf16.msra.mxu0 0
    %597 = vmatprep.subr.bf16.mxu0 0
    %598 = vmatpush2.bf16.msra.mxu0 0
    %599 = vmatprep.subr.bf16.mxu0 0
    %600 = vmatpush2.bf16.msra.mxu0 0
    %601 = vmatprep.mubr.bf16.mxu0 0
    %602 = vmatmul.mubr.bf16.gmra.mxu0 %v337
    %v603 = vpop.f32.mrf.mxu0
    %v604 = vadd.f32 %v384, %v603
    %v605 = vpop.f32.mrf.mxu0
    %v606 = vpop.f32.mrf.mxu0
    %v607 = vadd.f32 %v384, %v606
    %v608 = vpop.f32.mrf.mxu0
    %609 = vmatprep.mubr.bf16.mxu0 0
    %610 = vmatmul.mubr.bf16.gmra.mxu0 %v338
    %v611 = vpop.f32.mrf.mxu0
    %v612 = vadd.f32 %v384, %v611
    %v613 = vpop.f32.mrf.mxu0
    %v614 = vpop.f32.mrf.mxu0
    %v615 = vadd.f32 %v384, %v614
    %v616 = vpop.f32.mrf.mxu0
    %617 = vdwg.mxu0
    %v618 = vpack.c.bf16 %v555, %v551
    %v619 = vpack.c.bf16 %v565, %v561
    %v620 = vpack.c.bf16 %v557, %v553
    %v621 = vpack.c.bf16 %v567, %v563
    %v622 = vpack.c.bf16 %v607, %v604
    %v623 = vpack.c.bf16 %v615, %v612
    %v624 = vld [vmem:[#allocation7] sm:$0xf]
    %v625 = vld [vmem:[#allocation7 + $0x4] sm:$0xf]
    %v626 = vld [vmem:[#allocation7 + $0x8] sm:$0xf]
    %v627 = vld [vmem:[#allocation7 + $0xc] sm:$0xf]
    %v628 = vld [vmem:[#allocation7 + $0x10] sm:$0xf]
    %v629 = vld [vmem:[#allocation7 + $0x14] sm:$0xf]
    %v630 = vld [vmem:[#allocation7 + $0x18] sm:$0xf]
    %v631 = vld [vmem:[#allocation7 + $0x1c] sm:$0xf]
    %v632 = vld [vmem:[#allocation7 + $0x20] sm:$0xf]
    %v633 = vld [vmem:[#allocation7 + $0x24] sm:$0xf]
    %v634 = vld [vmem:[#allocation7 + $0x28] sm:$0xf]
    %v635 = vld [vmem:[#allocation7 + $0x2c] sm:$0xf]
    %v636 = vld [vmem:[#allocation7 + $0x30] sm:$0xf]
    %v637 = vld [vmem:[#allocation7 + $0x34] sm:$0xf]
    %v638 = vld [vmem:[#allocation7 + $0x38] sm:$0xf]
    %v639 = vld [vmem:[#allocation7 + $0x3c] sm:$0xf]
    %v656 = vunpack.c.l.b16 %v624
    %v657 = vunpack.c.l.b16 %v625
    %v658 = vunpack.c.l.b16 %v626
    %v659 = vunpack.c.l.b16 %v627
    %v660 = vunpack.c.l.b16 %v628
    %v661 = vunpack.c.l.b16 %v629
    %v662 = vunpack.c.l.b16 %v630
    %v663 = vunpack.c.l.b16 %v631
    %v664 = vunpack.c.l.b16 %v632
    %v665 = vunpack.c.l.b16 %v633
    %v666 = vunpack.c.l.b16 %v634
    %v667 = vunpack.c.l.b16 %v635
    %v668 = vunpack.c.l.b16 %v636
    %v669 = vunpack.c.l.b16 %v637
    %v670 = vunpack.c.l.b16 %v638
    %v671 = vunpack.c.l.b16 %v639
    %v672 = vpack.c.b16 %v657, %v656
    %v673 = vpack.c.b16 %v659, %v658
    %v674 = vpack.c.b16 %v661, %v660
    %v675 = vpack.c.b16 %v663, %v662
    %v676 = vpack.c.b16 %v665, %v664
    %v677 = vpack.c.b16 %v667, %v666
    %v678 = vpack.c.b16 %v669, %v668
    %v679 = vpack.c.b16 %v671, %v670
    %v688 = vmul.bf16 %v620, %v672
    %v689 = vmul.bf16 %v620, %v673
    %v690 = vmul.bf16 %v620, %v674
    %v691 = vmul.bf16 %v620, %v675
    %v692 = vmul.bf16 %v620, %v676
    %v693 = vmul.bf16 %v620, %v677
    %v694 = vmul.bf16 %v620, %v678
    %v695 = vmul.bf16 %v620, %v679
    %v696 = vmul.bf16 %v621, %v672
    %v697 = vmul.bf16 %v621, %v673
    %v698 = vmul.bf16 %v621, %v674
    %v699 = vmul.bf16 %v621, %v675
    %v700 = vmul.bf16 %v621, %v676
    %v701 = vmul.bf16 %v621, %v677
    %v702 = vmul.bf16 %v621, %v678
    %v703 = vmul.bf16 %v621, %v679
    %v704 = vmul.bf16 %v622, %v672
    %v705 = vmul.bf16 %v622, %v673
    %v706 = vmul.bf16 %v622, %v674
    %v707 = vmul.bf16 %v622, %v675
    %v708 = vmul.bf16 %v622, %v676
    %v709 = vmul.bf16 %v622, %v677
    %v710 = vmul.bf16 %v622, %v678
    %v711 = vmul.bf16 %v622, %v679
    %v712 = vmul.bf16 %v623, %v672
    %v713 = vmul.bf16 %v623, %v673
    %v714 = vmul.bf16 %v623, %v674
    %v715 = vmul.bf16 %v623, %v675
    %v716 = vmul.bf16 %v623, %v676
    %v717 = vmul.bf16 %v623, %v677
    %v718 = vmul.bf16 %v623, %v678
    %v719 = vmul.bf16 %v623, %v679
    %v720 = vld [vmem:[#allocation10] sm:$0xff]
    %v721 = vld [vmem:[#allocation10 + $0x8] sm:$0xff]
    %v722 = vld [vmem:[#allocation10 + $0x10] sm:$0xff]
    %v723 = vld [vmem:[#allocation10 + $0x18] sm:$0xff]
    %v724 = vld [vmem:[#allocation10 + $0x20] sm:$0xff]
    %v725 = vld [vmem:[#allocation10 + $0x28] sm:$0xff]
    %v726 = vld [vmem:[#allocation10 + $0x30] sm:$0xff]
    %v727 = vld [vmem:[#allocation10 + $0x38] sm:$0xff]
    %728 = vmatprep.subr.bf16.mxu0 0
    %729 = vmatpush1.bf16.xpose.msra.mxu0 %v695
    %730 = vmatprep.subr.bf16.mxu0 0
    %731 = vmatpush1.bf16.xpose.msra.mxu0 %v694
    %732 = vmatprep.subr.bf16.mxu0 0
    %733 = vmatpush1.bf16.xpose.msra.mxu0 %v693
    %734 = vmatprep.subr.bf16.mxu0 0
    %735 = vmatpush1.bf16.xpose.msra.mxu0 %v692
    %736 = vmatprep.subr.bf16.mxu0 0
    %737 = vmatpush1.bf16.xpose.msra.mxu0 %v691
    %738 = vmatprep.subr.bf16.mxu0 0
    %739 = vmatpush1.bf16.xpose.msra.mxu0 %v690
    %740 = vmatprep.subr.bf16.mxu0 0
    %741 = vmatpush1.bf16.xpose.msra.mxu0 %v689
    %742 = vmatprep.subr.bf16.mxu0 0
    %743 = vmatpush1.bf16.xpose.msra.mxu0 %v688
    %744 = vmatprep.subr.bf16.mxu0 0
    %745 = vmatpush2.bf16.xpose.msra.mxu0 %v703
    %746 = vmatprep.subr.bf16.mxu0 0
    %747 = vmatpush2.bf16.xpose.msra.mxu0 %v702
    %748 = vmatprep.subr.bf16.mxu0 0
    %749 = vmatpush2.bf16.xpose.msra.mxu0 %v701
    %750 = vmatprep.subr.bf16.mxu0 0
    %751 = vmatpush2.bf16.xpose.msra.mxu0 %v700
    %752 = vmatprep.subr.bf16.mxu0 0
    %753 = vmatpush2.bf16.xpose.msra.mxu0 %v699
    %754 = vmatprep.subr.bf16.mxu0 0
    %755 = vmatpush2.bf16.xpose.msra.mxu0 %v698
    %756 = vmatprep.subr.bf16.mxu0 0
    %757 = vmatpush2.bf16.xpose.msra.mxu0 %v697
    %758 = vmatprep.subr.bf16.mxu0 0
    %759 = vmatpush2.bf16.xpose.msra.mxu0 %v696
    %760 = vmatprep.mubr.bf16.mxu0 0
    %761 = vmatmul.mubr.bf16.gmra.mxu0 %v618
    %v762 = vpop.f32.mrf.mxu0
    %v763 = vadd.f32 %v720, %v762
    %v764 = vpop.f32.mrf.mxu0
    %v765 = vadd.f32 %v721, %v764
    %v766 = vpop.f32.mrf.mxu0
    %v767 = vadd.f32 %v722, %v766
    %v768 = vpop.f32.mrf.mxu0
    %v769 = vadd.f32 %v723, %v768
    %770 = vmatprep.mubr.bf16.mxu0 0
    %771 = vmatmul.mubr.bf16.gmra.mxu0 %v619
    %v772 = vpop.f32.mrf.mxu0
    %v773 = vadd.f32 %v724, %v772
    %v774 = vpop.f32.mrf.mxu0
    %v775 = vadd.f32 %v725, %v774
    %v776 = vpop.f32.mrf.mxu0
    %v777 = vadd.f32 %v726, %v776
    %v778 = vpop.f32.mrf.mxu0
    %v779 = vadd.f32 %v727, %v778
    %780 = vdwg.mxu0
    %v781 = vmax.f32 %v763, %v765
    %782 = vmax.xlane.f32.xlu0 %v781
    %v783 = vpop.xlane.xlu0 %782
    %v784 = vmax.f32 %v767, %v769
    %785 = vmax.xlane.f32.xlu0 %v784
    %v786 = vpop.xlane.xlu0 %785
    %v787 = vmax.f32 %v773, %v775
    %788 = vmax.xlane.f32.xlu0 %v787
    %v789 = vpop.xlane.xlu0 %788
    %v790 = vmax.f32 %v777, %v779
    %791 = vmax.xlane.f32.xlu0 %v790
    %v792 = vpop.xlane.xlu0 %791
    %v793 = vsub.f32 %v763, %v783
    %v794 = vsub.f32 %v765, %v783
    %v795 = vsub.f32 %v767, %v786
    %v796 = vsub.f32 %v769, %v786
    %v797 = vsub.f32 %v773, %v789
    %v798 = vsub.f32 %v775, %v789
    %v799 = vsub.f32 %v777, %v792
    %v800 = vsub.f32 %v779, %v792
    %v801 = vmul.f32 %v793, 1.442695
    %v802 = vpow.pop %v801
    %v803 = vmul.f32 %v794, 1.442695
    %v804 = vpow.pop %v803
    %v805 = vmul.f32 %v795, 1.442695
    %v806 = vpow.pop %v805
    %v807 = vmul.f32 %v796, 1.442695
    %v808 = vpow.pop %v807
    %v809 = vmul.f32 %v797, 1.442695
    %v810 = vpow.pop %v809
    %v811 = vmul.f32 %v798, 1.442695
    %v812 = vpow.pop %v811
    %v813 = vmul.f32 %v799, 1.442695
    %v814 = vpow.pop %v813
    %v815 = vmul.f32 %v800, 1.442695
    %v816 = vpow.pop %v815
    %v817 = vpack.c.bf16 %v806, %v802
    %v818 = vpack.c.bf16 %v808, %v804
    %v819 = vpack.c.bf16 %v814, %v810
    %v820 = vpack.c.bf16 %v816, %v812
    %v821 = vld [vmem:[#allocation8] sm:$0xff]
    %v822 = vld [vmem:[#allocation8 + $0x8] sm:$0xff]
    %v823 = vld [vmem:[#allocation8 + $0x10] sm:$0xff]
    %v824 = vld [vmem:[#allocation8 + $0x18] sm:$0xff]
    %v825 = vld [vmem:[#allocation8 + $0x20] sm:$0xff]
    %v826 = vld [vmem:[#allocation8 + $0x28] sm:$0xff]
    %v827 = vld [vmem:[#allocation8 + $0x30] sm:$0xff]
    %v828 = vld [vmem:[#allocation8 + $0x38] sm:$0xff]
    %v829 = vld [vmem:[#allocation8 + $0x40] sm:$0xff]
    %v830 = vld [vmem:[#allocation8 + $0x48] sm:$0xff]
    %v831 = vld [vmem:[#allocation8 + $0x50] sm:$0xff]
    %v832 = vld [vmem:[#allocation8 + $0x58] sm:$0xff]
    %v833 = vld [vmem:[#allocation8 + $0x60] sm:$0xff]
    %v834 = vld [vmem:[#allocation8 + $0x68] sm:$0xff]
    %v835 = vld [vmem:[#allocation8 + $0x70] sm:$0xff]
    %v836 = vld [vmem:[#allocation8 + $0x78] sm:$0xff]
    %v837 = vld [vmem:[#allocation8 + $0x80] sm:$0xff]
    %v838 = vld [vmem:[#allocation8 + $0x88] sm:$0xff]
    %v839 = vld [vmem:[#allocation8 + $0x90] sm:$0xff]
    %v840 = vld [vmem:[#allocation8 + $0x98] sm:$0xff]
    %v841 = vld [vmem:[#allocation8 + $0xa0] sm:$0xff]
    %v842 = vld [vmem:[#allocation8 + $0xa8] sm:$0xff]
    %v843 = vld [vmem:[#allocation8 + $0xb0] sm:$0xff]
    %v844 = vld [vmem:[#allocation8 + $0xb8] sm:$0xff]
    %v845 = vld [vmem:[#allocation8 + $0xc0] sm:$0xff]
    %v846 = vld [vmem:[#allocation8 + $0xc8] sm:$0xff]
    %v847 = vld [vmem:[#allocation8 + $0xd0] sm:$0xff]
    %v848 = vld [vmem:[#allocation8 + $0xd8] sm:$0xff]
    %v849 = vld [vmem:[#allocation8 + $0xe0] sm:$0xff]
    %v850 = vld [vmem:[#allocation8 + $0xe8] sm:$0xff]
    %v851 = vld [vmem:[#allocation8 + $0xf0] sm:$0xff]
    %v852 = vld [vmem:[#allocation8 + $0xf8] sm:$0xff]
    %v885 = vunpack.c.l.b16 %v821
    %v886 = vunpack.c.h.b16 %v821
    %v887 = vunpack.c.l.b16 %v822
    %v888 = vunpack.c.h.b16 %v822
    %v889 = vunpack.c.l.b16 %v823
    %v890 = vunpack.c.h.b16 %v823
    %v891 = vunpack.c.l.b16 %v824
    %v892 = vunpack.c.h.b16 %v824
    %v893 = vunpack.c.l.b16 %v825
    %v894 = vunpack.c.h.b16 %v825
    %v895 = vunpack.c.l.b16 %v826
    %v896 = vunpack.c.h.b16 %v826
    %v897 = vunpack.c.l.b16 %v827
    %v898 = vunpack.c.h.b16 %v827
    %v899 = vunpack.c.l.b16 %v828
    %v900 = vunpack.c.h.b16 %v828
    %v901 = vunpack.c.l.b16 %v829
    %v902 = vunpack.c.h.b16 %v829
    %v903 = vunpack.c.l.b16 %v830
    %v904 = vunpack.c.h.b16 %v830
    %v905 = vunpack.c.l.b16 %v831
    %v906 = vunpack.c.h.b16 %v831
    %v907 = vunpack.c.l.b16 %v832
    %v908 = vunpack.c.h.b16 %v832
    %v909 = vunpack.c.l.b16 %v833
    %v910 = vunpack.c.h.b16 %v833
    %v911 = vunpack.c.l.b16 %v834
    %v912 = vunpack.c.h.b16 %v834
    %v913 = vunpack.c.l.b16 %v835
    %v914 = vunpack.c.h.b16 %v835
    %v915 = vunpack.c.l.b16 %v836
    %v916 = vunpack.c.h.b16 %v836
    %v917 = vunpack.c.l.b16 %v837
    %v918 = vunpack.c.h.b16 %v837
    %v919 = vunpack.c.l.b16 %v838
    %v920 = vunpack.c.h.b16 %v838
    %v921 = vunpack.c.l.b16 %v839
    %v922 = vunpack.c.h.b16 %v839
    %v923 = vunpack.c.l.b16 %v840
    %v924 = vunpack.c.h.b16 %v840
    %v925 = vunpack.c.l.b16 %v841
    %v926 = vunpack.c.h.b16 %v841
    %v927 = vunpack.c.l.b16 %v842
    %v928 = vunpack.c.h.b16 %v842
    %v929 = vunpack.c.l.b16 %v843
    %v930 = vunpack.c.h.b16 %v843
    %v931 = vunpack.c.l.b16 %v844
    %v932 = vunpack.c.h.b16 %v844
    %v933 = vunpack.c.l.b16 %v845
    %v934 = vunpack.c.h.b16 %v845
    %v935 = vunpack.c.l.b16 %v846
    %v936 = vunpack.c.h.b16 %v846
    %v937 = vunpack.c.l.b16 %v847
    %v938 = vunpack.c.h.b16 %v847
    %v939 = vunpack.c.l.b16 %v848
    %v940 = vunpack.c.h.b16 %v848
    %v941 = vunpack.c.l.b16 %v849
    %v942 = vunpack.c.h.b16 %v849
    %v943 = vunpack.c.l.b16 %v850
    %v944 = vunpack.c.h.b16 %v850
    %v945 = vunpack.c.l.b16 %v851
    %v946 = vunpack.c.h.b16 %v851
    %v947 = vunpack.c.l.b16 %v852
    %v948 = vunpack.c.h.b16 %v852
    %v949 = vpack.c.b16 %v887, %v885
    %v950 = vpack.c.b16 %v888, %v886
    %v951 = vpack.c.b16 %v891, %v889
    %v952 = vpack.c.b16 %v892, %v890
    %v953 = vpack.c.b16 %v895, %v893
    %v954 = vpack.c.b16 %v896, %v894
    %v955 = vpack.c.b16 %v899, %v897
    %v956 = vpack.c.b16 %v900, %v898
    %v957 = vpack.c.b16 %v903, %v901
    %v958 = vpack.c.b16 %v904, %v902
    %v959 = vpack.c.b16 %v907, %v905
    %v960 = vpack.c.b16 %v908, %v906
    %v961 = vpack.c.b16 %v911, %v909
    %v962 = vpack.c.b16 %v912, %v910
    %v963 = vpack.c.b16 %v915, %v913
    %v964 = vpack.c.b16 %v916, %v914
    %v965 = vpack.c.b16 %v919, %v917
    %v966 = vpack.c.b16 %v920, %v918
    %v967 = vpack.c.b16 %v923, %v921
    %v968 = vpack.c.b16 %v924, %v922
    %v969 = vpack.c.b16 %v927, %v925
    %v970 = vpack.c.b16 %v928, %v926
    %v971 = vpack.c.b16 %v931, %v929
    %v972 = vpack.c.b16 %v932, %v930
    %v973 = vpack.c.b16 %v935, %v933
    %v974 = vpack.c.b16 %v936, %v934
    %v975 = vpack.c.b16 %v939, %v937
    %v976 = vpack.c.b16 %v940, %v938
    %v977 = vpack.c.b16 %v943, %v941
    %v978 = vpack.c.b16 %v944, %v942
    %v979 = vpack.c.b16 %v947, %v945
    %v980 = vpack.c.b16 %v948, %v946
    %1013 = vmatprep.subr.bf16.mxu0 %v964
    %1014 = vmatpush1.bf16.msra.mxu0 %v963
    %1015 = vmatprep.subr.bf16.mxu0 %v962
    %1016 = vmatpush1.bf16.msra.mxu0 %v961
    %1017 = vmatprep.subr.bf16.mxu0 %v960
    %1018 = vmatpush1.bf16.msra.mxu0 %v959
    %1019 = vmatprep.subr.bf16.mxu0 %v958
    %1020 = vmatpush1.bf16.msra.mxu0 %v957
    %1021 = vmatprep.subr.bf16.mxu0 %v956
    %1022 = vmatpush1.bf16.msra.mxu0 %v955
    %1023 = vmatprep.subr.bf16.mxu0 %v954
    %1024 = vmatpush1.bf16.msra.mxu0 %v953
    %1025 = vmatprep.subr.bf16.mxu0 %v952
    %1026 = vmatpush1.bf16.msra.mxu0 %v951
    %1027 = vmatprep.subr.bf16.mxu0 %v950
    %1028 = vmatpush1.bf16.msra.mxu0 %v949
    %1029 = vmatprep.subr.bf16.mxu0 %v980
    %1030 = vmatpush2.bf16.msra.mxu0 %v979
    %1031 = vmatprep.subr.bf16.mxu0 %v978
    %1032 = vmatpush2.bf16.msra.mxu0 %v977
    %1033 = vmatprep.subr.bf16.mxu0 %v976
    %1034 = vmatpush2.bf16.msra.mxu0 %v975
    %1035 = vmatprep.subr.bf16.mxu0 %v974
    %1036 = vmatpush2.bf16.msra.mxu0 %v973
    %1037 = vmatprep.subr.bf16.mxu0 %v972
    %1038 = vmatpush2.bf16.msra.mxu0 %v971
    %1039 = vmatprep.subr.bf16.mxu0 %v970
    %1040 = vmatpush2.bf16.msra.mxu0 %v969
    %1041 = vmatprep.subr.bf16.mxu0 %v968
    %1042 = vmatpush2.bf16.msra.mxu0 %v967
    %1043 = vmatprep.subr.bf16.mxu0 %v966
    %1044 = vmatpush2.bf16.msra.mxu0 %v965
    %1045 = vmatprep.mubr.bf16.mxu0 %v818
    %1046 = vmatmul.mubr.bf16.gmra.mxu0 %v817
    %v1047 = vpop.f32.mrf.mxu0
    %v1048 = vadd.f32 0.0, %v1047
    %v1049 = vpop.f32.mrf.mxu0
    %v1050 = vadd.f32 0.0, %v1049
    %v1051 = vpop.f32.mrf.mxu0
    %v1052 = vadd.f32 0.0, %v1051
    %v1053 = vpop.f32.mrf.mxu0
    %v1054 = vadd.f32 0.0, %v1053
    %1055 = vmatprep.mubr.bf16.mxu0 %v820
    %1056 = vmatmul.mubr.bf16.gmra.mxu0 %v819
    %v1057 = vpop.f32.mrf.mxu0
    %v1058 = vadd.f32 0.0, %v1057
    %v1059 = vpop.f32.mrf.mxu0
    %v1060 = vadd.f32 0.0, %v1059
    %v1061 = vpop.f32.mrf.mxu0
    %v1062 = vadd.f32 0.0, %v1061
    %v1063 = vpop.f32.mrf.mxu0
    %v1064 = vadd.f32 0.0, %v1063
    %1065 = vdwg.mxu0
    %v1066 = vmax.f32 %v1048, 1e-20
    %v1067 = vmax.f32 %v1050, 1e-20
    %v1068 = vmax.f32 %v1052, 1e-20
    %v1069 = vmax.f32 %v1054, 1e-20
    %v1070 = vmax.f32 %v1058, 1e-20
    %v1071 = vmax.f32 %v1060, 1e-20
    %v1072 = vmax.f32 %v1062, 1e-20
    %v1073 = vmax.f32 %v1064, 1e-20
    %v1074 = vrcp.pop %v1066
    %v1075 = vrcp.pop %v1067
    %v1076 = vrcp.pop %v1068
    %v1077 = vrcp.pop %v1069
    %v1078 = vrcp.pop %v1070
    %v1079 = vrcp.pop %v1071
    %v1080 = vrcp.pop %v1072
    %v1081 = vrcp.pop %v1073
    %v1082 = vmul.f32 %v802, %v1074
    %v1083 = vmul.f32 %v804, %v1075
    %v1084 = vmul.f32 %v806, %v1076
    %v1085 = vmul.f32 %v808, %v1077
    %v1086 = vmul.f32 %v810, %v1078
    %v1087 = vmul.f32 %v812, %v1079
    %v1088 = vmul.f32 %v814, %v1080
    %v1089 = vmul.f32 %v816, %v1081
    %v1090 = vpack.c.bf16 %v1084, %v1082
    %v1091 = vpack.c.bf16 %v1085, %v1083
    %v1092 = vpack.c.bf16 %v1088, %v1086
    %v1093 = vpack.c.bf16 %v1089, %v1087
    %1094 = vmatprep.subr.bf16.mxu0 0
    %1095 = vmatpush1.bf16.msra.mxu0 %v711
    %1096 = vmatprep.subr.bf16.mxu0 0
    %1097 = vmatpush1.bf16.msra.mxu0 %v710
    %1098 = vmatprep.subr.bf16.mxu0 0
    %1099 = vmatpush1.bf16.msra.mxu0 %v709
    %1100 = vmatprep.subr.bf16.mxu0 0
    %1101 = vmatpush1.bf16.msra.mxu0 %v708
    %1102 = vmatprep.subr.bf16.mxu0 0
    %1103 = vmatpush1.bf16.msra.mxu0 %v707
    %1104 = vmatprep.subr.bf16.mxu0 0
    %1105 = vmatpush1.bf16.msra.mxu0 %v706
    %1106 = vmatprep.subr.bf16.mxu0 0
    %1107 = vmatpush1.bf16.msra.mxu0 %v705
    %1108 = vmatprep.subr.bf16.mxu0 0
    %1109 = vmatpush1.bf16.msra.mxu0 %v704
    %1110 = vmatprep.subr.bf16.mxu0 0
    %1111 = vmatpush2.bf16.msra.mxu0 %v719
    %1112 = vmatprep.subr.bf16.mxu0 0
    %1113 = vmatpush2.bf16.msra.mxu0 %v718
    %1114 = vmatprep.subr.bf16.mxu0 0
    %1115 = vmatpush2.bf16.msra.mxu0 %v717
    %1116 = vmatprep.subr.bf16.mxu0 0
    %1117 = vmatpush2.bf16.msra.mxu0 %v716
    %1118 = vmatprep.subr.bf16.mxu0 0
    %1119 = vmatpush2.bf16.msra.mxu0 %v715
    %1120 = vmatprep.subr.bf16.mxu0 0
    %1121 = vmatpush2.bf16.msra.mxu0 %v714
    %1122 = vmatprep.subr.bf16.mxu0 0
    %1123 = vmatpush2.bf16.msra.mxu0 %v713
    %1124 = vmatprep.subr.bf16.mxu0 0
    %1125 = vmatpush2.bf16.msra.mxu0 %v712
    %1126 = vmatprep.mubr.bf16.mxu0 %v1091
    %1127 = vmatmul.mubr.bf16.gmra.mxu0 %v1090
    %v1128 = vpop.f32.mrf.mxu0
    %v1129 = vadd.f32 0.0, %v1128
    %v1130 = vpop.f32.mrf.mxu0
    %v1131 = vpop.f32.mrf.mxu0
    %v1132 = vadd.f32 0.0, %v1131
    %v1133 = vpop.f32.mrf.mxu0
    %1134 = vmatprep.mubr.bf16.mxu0 %v1093
    %1135 = vmatmul.mubr.bf16.gmra.mxu0 %v1092
    %v1136 = vpop.f32.mrf.mxu0
    %v1137 = vadd.f32 0.0, %v1136
    %v1138 = vpop.f32.mrf.mxu0
    %v1139 = vpop.f32.mrf.mxu0
    %v1140 = vadd.f32 0.0, %v1139
    %v1141 = vpop.f32.mrf.mxu0
    %1142 = vdwg.mxu0
    %v1143 = vpack.c.bf16 %v1132, %v1129
    %v1144 = vpack.c.bf16 %v1140, %v1137
    %v1145 = vld [vmem:[#allocation13] sm:$0xf]
    %v1146 = vld [vmem:[#allocation13 + $0x4] sm:$0xf]
    %v1147 = vld [vmem:[#allocation13 + $0x8] sm:$0xf]
    %v1148 = vld [vmem:[#allocation13 + $0xc] sm:$0xf]
    %v1149 = vld [vmem:[#allocation13 + $0x10] sm:$0xf]
    %v1150 = vld [vmem:[#allocation13 + $0x14] sm:$0xf]
    %v1151 = vld [vmem:[#allocation13 + $0x18] sm:$0xf]
    %v1152 = vld [vmem:[#allocation13 + $0x1c] sm:$0xf]
    %v1153 = vld [vmem:[#allocation13 + $0x20] sm:$0xf]
    %v1154 = vld [vmem:[#allocation13 + $0x24] sm:$0xf]
    %v1155 = vld [vmem:[#allocation13 + $0x28] sm:$0xf]
    %v1156 = vld [vmem:[#allocation13 + $0x2c] sm:$0xf]
    %v1157 = vld [vmem:[#allocation13 + $0x30] sm:$0xf]
    %v1158 = vld [vmem:[#allocation13 + $0x34] sm:$0xf]
    %v1159 = vld [vmem:[#allocation13 + $0x38] sm:$0xf]
    %v1160 = vld [vmem:[#allocation13 + $0x3c] sm:$0xf]
    %v1161 = vld [vmem:[#allocation14] sm:$0x1]
    %v1163 = vlaneseq
    %v1164 = vshrl.u32 %v1163, 7
    %v1165 = vsub.s32 0, %v1164
    %v1166 = vrot.slane %v1161, %v1165
    %v1184 = vunpack.c.l.b16 %v1145
    %v1185 = vunpack.c.l.b16 %v1146
    %v1186 = vunpack.c.l.b16 %v1147
    %v1187 = vunpack.c.l.b16 %v1148
    %v1188 = vunpack.c.l.b16 %v1149
    %v1189 = vunpack.c.l.b16 %v1150
    %v1190 = vunpack.c.l.b16 %v1151
    %v1191 = vunpack.c.l.b16 %v1152
    %v1192 = vunpack.c.l.b16 %v1153
    %v1193 = vunpack.c.l.b16 %v1154
    %v1194 = vunpack.c.l.b16 %v1155
    %v1195 = vunpack.c.l.b16 %v1156
    %v1196 = vunpack.c.l.b16 %v1157
    %v1197 = vunpack.c.l.b16 %v1158
    %v1198 = vunpack.c.l.b16 %v1159
    %v1199 = vunpack.c.l.b16 %v1160
    %v1200 = vpack.c.b16 %v1185, %v1184
    %v1201 = vpack.c.b16 %v1187, %v1186
    %v1202 = vpack.c.b16 %v1189, %v1188
    %v1203 = vpack.c.b16 %v1191, %v1190
    %v1204 = vpack.c.b16 %v1193, %v1192
    %v1205 = vpack.c.b16 %v1195, %v1194
    %v1206 = vpack.c.b16 %v1197, %v1196
    %v1207 = vpack.c.b16 %v1199, %v1198
    %1216 = vmatprep.subr.bf16.mxu0 0
    %1217 = vmatpush1.bf16.msra.mxu0 %v1207
    %1218 = vmatprep.subr.bf16.mxu0 0
    %1219 = vmatpush1.bf16.msra.mxu0 %v1206
    %1220 = vmatprep.subr.bf16.mxu0 0
    %1221 = vmatpush1.bf16.msra.mxu0 %v1205
    %1222 = vmatprep.subr.bf16.mxu0 0
    %1223 = vmatpush1.bf16.msra.mxu0 %v1204
    %1224 = vmatprep.subr.bf16.mxu0 0
    %1225 = vmatpush1.bf16.msra.mxu0 %v1203
    %1226 = vmatprep.subr.bf16.mxu0 0
    %1227 = vmatpush1.bf16.msra.mxu0 %v1202
    %1228 = vmatprep.subr.bf16.mxu0 0
    %1229 = vmatpush1.bf16.msra.mxu0 %v1201
    %1230 = vmatprep.subr.bf16.mxu0 0
    %1231 = vmatpush1.bf16.msra.mxu0 %v1200
    %1232 = vmatprep.subr.bf16.mxu0 0
    %1233 = vmatpush2.bf16.msra.mxu0 0
    %1234 = vmatprep.subr.bf16.mxu0 0
    %1235 = vmatpush2.bf16.msra.mxu0 0
    %1236 = vmatprep.subr.bf16.mxu0 0
    %1237 = vmatpush2.bf16.msra.mxu0 0
    %1238 = vmatprep.subr.bf16.mxu0 0
    %1239 = vmatpush2.bf16.msra.mxu0 0
    %1240 = vmatprep.subr.bf16.mxu0 0
    %1241 = vmatpush2.bf16.msra.mxu0 0
    %1242 = vmatprep.subr.bf16.mxu0 0
    %1243 = vmatpush2.bf16.msra.mxu0 0
    %1244 = vmatprep.subr.bf16.mxu0 0
    %1245 = vmatpush2.bf16.msra.mxu0 0
    %1246 = vmatprep.subr.bf16.mxu0 0
    %1247 = vmatpush2.bf16.msra.mxu0 0
    %1248 = vmatprep.mubr.bf16.mxu0 0
    %1249 = vmatmul.mubr.bf16.gmra.mxu0 %v1143
    %v1250 = vpop.f32.mrf.mxu0
    %v1251 = vadd.f32 %v1166, %v1250
    %v1252 = vpop.f32.mrf.mxu0
    %v1253 = vpop.f32.mrf.mxu0
    %v1254 = vadd.f32 %v1166, %v1253
    %v1255 = vpop.f32.mrf.mxu0
    %1256 = vmatprep.mubr.bf16.mxu0 0
    %1257 = vmatmul.mubr.bf16.gmra.mxu0 %v1144
    %v1258 = vpop.f32.mrf.mxu0
    %v1259 = vadd.f32 %v1166, %v1258
    %v1260 = vpop.f32.mrf.mxu0
    %v1261 = vpop.f32.mrf.mxu0
    %v1262 = vadd.f32 %v1166, %v1261
    %v1263 = vpop.f32.mrf.mxu0
    %1264 = vdwg.mxu0
    %v1265 = vadd.f32 %v266, %v1251
    %v1266 = vadd.f32 %v268, %v1254
    %v1267 = vadd.f32 %v267, %v1259
    %v1268 = vadd.f32 %v269, %v1262
    %v1269 = vld [vmem:[%s11] sm:$0x1]
    %v1270 = vld [vmem:[%s12] sm:$0x1]
    %1271 = vadd.xlane.f32.xlu0 %v1265
    %v1272 = vpop.xlane.xlu0 %1271
    %1273 = vadd.xlane.f32.xlu0 %v1266
    %v1274 = vpop.xlane.xlu0 %1273
    %1275 = vadd.xlane.f32.xlu0 %v1267
    %v1276 = vpop.xlane.xlu0 %1275
    %1277 = vadd.xlane.f32.xlu0 %v1268
    %v1278 = vpop.xlane.xlu0 %1277
    %v1279 = vmul.f32 %v1272, %v280
    %v1280 = vmul.f32 %v1274, %v280
    %v1281 = vmul.f32 %v1276, %v280
    %v1282 = vmul.f32 %v1278, %v280
    %v1283 = vsub.f32 %v1265, %v1279
    %v1284 = vsub.f32 %v1266, %v1280
    %v1285 = vsub.f32 %v1267, %v1281
    %v1286 = vsub.f32 %v1268, %v1282
    %v1287 = vmul.f32 %v1283, %v1283
    %v1288 = vmul.f32 %v1284, %v1284
    %v1289 = vmul.f32 %v1285, %v1285
    %v1290 = vmul.f32 %v1286, %v1286
    %1291 = vadd.xlane.f32.xlu0 %v1287
    %v1292 = vpop.xlane.xlu0 %1291
    %1293 = vadd.xlane.f32.xlu0 %v1288
    %v1294 = vpop.xlane.xlu0 %1293
    %1295 = vadd.xlane.f32.xlu0 %v1289
    %v1296 = vpop.xlane.xlu0 %1295
    %1297 = vadd.xlane.f32.xlu0 %v1290
    %v1298 = vpop.xlane.xlu0 %1297
    %v1299 = vmul.f32 %v1292, %v280
    %v1300 = vmul.f32 %v1294, %v280
    %v1301 = vmul.f32 %v1296, %v280
    %v1302 = vmul.f32 %v1298, %v280
    %v1303 = vadd.f32 %v1299, 1e-05
    %v1304 = vadd.f32 %v1300, 1e-05
    %v1305 = vadd.f32 %v1301, 1e-05
    %v1306 = vadd.f32 %v1302, 1e-05
    %v1307 = vrsqrt.pop %v1303
    %v1308 = vrsqrt.pop %v1304
    %v1309 = vrsqrt.pop %v1305
    %v1310 = vrsqrt.pop %v1306
    %v1311 = vmul.f32 %v1283, %v1307
    %v1312 = vmul.f32 %v1284, %v1308
    %v1313 = vmul.f32 %v1285, %v1309
    %v1314 = vmul.f32 %v1286, %v1310
    %v1316 = vlaneseq
    %v1317 = vshrl.u32 %v1316, 7
    %v1318 = vsub.s32 0, %v1317
    %v1319 = vrot.slane %v1269, %v1318
    %v1321 = vmul.f32 %v1311, %v1319
    %v1322 = vmul.f32 %v1312, %v1319
    %v1323 = vmul.f32 %v1313, %v1319
    %v1324 = vmul.f32 %v1314, %v1319
    %v1326 = vlaneseq
    %v1327 = vshrl.u32 %v1326, 7
    %v1328 = vsub.s32 0, %v1327
    %v1329 = vrot.slane %v1270, %v1328
    %v1331 = vadd.f32 %v1321, %v1329
    %v1332 = vadd.f32 %v1322, %v1329
    %v1333 = vadd.f32 %v1323, %v1329
    %v1334 = vadd.f32 %v1324, %v1329
    %v1335 = vpack.c.bf16 %v1332, %v1331
    %v1336 = vpack.c.bf16 %v1334, %v1333
    %v1337 = vld [vmem:[#allocation17] sm:$0xff]
    %v1338 = vld [vmem:[#allocation17 + $0x8] sm:$0xff]
    %v1339 = vld [vmem:[#allocation17 + $0x10] sm:$0xff]
    %v1340 = vld [vmem:[#allocation17 + $0x18] sm:$0xff]
    %v1341 = vld [vmem:[#allocation17 + $0x20] sm:$0xff]
    %v1342 = vld [vmem:[#allocation17 + $0x28] sm:$0xff]
    %v1343 = vld [vmem:[#allocation17 + $0x30] sm:$0xff]
    %v1344 = vld [vmem:[#allocation17 + $0x38] sm:$0xff]
    %v1345 = vld [vmem:[#allocation17 + $0x40] sm:$0xff]
    %v1346 = vld [vmem:[#allocation17 + $0x48] sm:$0xff]
    %v1347 = vld [vmem:[#allocation17 + $0x50] sm:$0xff]
    %v1348 = vld [vmem:[#allocation17 + $0x58] sm:$0xff]
    %v1349 = vld [vmem:[#allocation17 + $0x60] sm:$0xff]
    %v1350 = vld [vmem:[#allocation17 + $0x68] sm:$0xff]
    %v1351 = vld [vmem:[#allocation17 + $0x70] sm:$0xff]
    %v1352 = vld [vmem:[#allocation17 + $0x78] sm:$0xff]
    %v1353 = vld [vmem:[#allocation17 + $0x80] sm:$0xff]
    %v1354 = vld [vmem:[#allocation17 + $0x88] sm:$0xff]
    %v1355 = vld [vmem:[#allocation17 + $0x90] sm:$0xff]
    %v1356 = vld [vmem:[#allocation17 + $0x98] sm:$0xff]
    %v1357 = vld [vmem:[#allocation17 + $0xa0] sm:$0xff]
    %v1358 = vld [vmem:[#allocation17 + $0xa8] sm:$0xff]
    %v1359 = vld [vmem:[#allocation17 + $0xb0] sm:$0xff]
    %v1360 = vld [vmem:[#allocation17 + $0xb8] sm:$0xff]
    %v1361 = vld [vmem:[#allocation17 + $0xc0] sm:$0xff]
    %v1362 = vld [vmem:[#allocation17 + $0xc8] sm:$0xff]
    %v1363 = vld [vmem:[#allocation17 + $0xd0] sm:$0xff]
    %v1364 = vld [vmem:[#allocation17 + $0xd8] sm:$0xff]
    %v1365 = vld [vmem:[#allocation17 + $0xe0] sm:$0xff]
    %v1366 = vld [vmem:[#allocation17 + $0xe8] sm:$0xff]
    %v1367 = vld [vmem:[#allocation17 + $0xf0] sm:$0xff]
    %v1368 = vld [vmem:[#allocation17 + $0xf8] sm:$0xff]
    %v1369 = vld [vmem:[%s14] sm:$0xf]
    %v1371 = vlaneseq
    %v1372 = vshrl.u32 %v1371, 7
    %v1373 = vsub.s32 0, %v1372
    %v1374 = vrot.slane %v1369, %v1373
    %v1375 = vlaneseq
    %v1376 = vshrl.u32 %v1375, 7
    %v1377 = vsub.s32 1, %v1376
    %v1378 = vrot.slane %v1369, %v1377
    %v1379 = vlaneseq
    %v1380 = vshrl.u32 %v1379, 7
    %v1381 = vsub.s32 2, %v1380
    %v1382 = vrot.slane %v1369, %v1381
    %v1383 = vlaneseq
    %v1384 = vshrl.u32 %v1383, 7
    %v1385 = vsub.s32 3, %v1384
    %v1386 = vrot.slane %v1369, %v1385
    %v1423 = vunpack.c.l.b16 %v1337
    %v1424 = vunpack.c.h.b16 %v1337
    %v1425 = vunpack.c.l.b16 %v1338
    %v1426 = vunpack.c.h.b16 %v1338
    %v1427 = vunpack.c.l.b16 %v1339
    %v1428 = vunpack.c.h.b16 %v1339
    %v1429 = vunpack.c.l.b16 %v1340
    %v1430 = vunpack.c.h.b16 %v1340
    %v1431 = vunpack.c.l.b16 %v1341
    %v1432 = vunpack.c.h.b16 %v1341
    %v1433 = vunpack.c.l.b16 %v1342
    %v1434 = vunpack.c.h.b16 %v1342
    %v1435 = vunpack.c.l.b16 %v1343
    %v1436 = vunpack.c.h.b16 %v1343
    %v1437 = vunpack.c.l.b16 %v1344
    %v1438 = vunpack.c.h.b16 %v1344
    %v1439 = vunpack.c.l.b16 %v1345
    %v1440 = vunpack.c.h.b16 %v1345
    %v1441 = vunpack.c.l.b16 %v1346
    %v1442 = vunpack.c.h.b16 %v1346
    %v1443 = vunpack.c.l.b16 %v1347
    %v1444 = vunpack.c.h.b16 %v1347
    %v1445 = vunpack.c.l.b16 %v1348
    %v1446 = vunpack.c.h.b16 %v1348
    %v1447 = vunpack.c.l.b16 %v1349
    %v1448 = vunpack.c.h.b16 %v1349
    %v1449 = vunpack.c.l.b16 %v1350
    %v1450 = vunpack.c.h.b16 %v1350
    %v1451 = vunpack.c.l.b16 %v1351
    %v1452 = vunpack.c.h.b16 %v1351
    %v1453 = vunpack.c.l.b16 %v1352
    %v1454 = vunpack.c.h.b16 %v1352
    %v1455 = vunpack.c.l.b16 %v1353
    %v1456 = vunpack.c.h.b16 %v1353
    %v1457 = vunpack.c.l.b16 %v1354
    %v1458 = vunpack.c.h.b16 %v1354
    %v1459 = vunpack.c.l.b16 %v1355
    %v1460 = vunpack.c.h.b16 %v1355
    %v1461 = vunpack.c.l.b16 %v1356
    %v1462 = vunpack.c.h.b16 %v1356
    %v1463 = vunpack.c.l.b16 %v1357
    %v1464 = vunpack.c.h.b16 %v1357
    %v1465 = vunpack.c.l.b16 %v1358
    %v1466 = vunpack.c.h.b16 %v1358
    %v1467 = vunpack.c.l.b16 %v1359
    %v1468 = vunpack.c.h.b16 %v1359
    %v1469 = vunpack.c.l.b16 %v1360
    %v1470 = vunpack.c.h.b16 %v1360
    %v1471 = vunpack.c.l.b16 %v1361
    %v1472 = vunpack.c.h.b16 %v1361
    %v1473 = vunpack.c.l.b16 %v1362
    %v1474 = vunpack.c.h.b16 %v1362
    %v1475 = vunpack.c.l.b16 %v1363
    %v1476 = vunpack.c.h.b16 %v1363
    %v1477 = vunpack.c.l.b16 %v1364
    %v1478 = vunpack.c.h.b16 %v1364
    %v1479 = vunpack.c.l.b16 %v1365
    %v1480 = vunpack.c.h.b16 %v1365
    %v1481 = vunpack.c.l.b16 %v1366
    %v1482 = vunpack.c.h.b16 %v1366
    %v1483 = vunpack.c.l.b16 %v1367
    %v1484 = vunpack.c.h.b16 %v1367
    %v1485 = vunpack.c.l.b16 %v1368
    %v1486 = vunpack.c.h.b16 %v1368
    %v1487 = vpack.c.b16 %v1427, %v1423
    %v1488 = vpack.c.b16 %v1428, %v1424
    %v1489 = vpack.c.b16 %v1429, %v1425
    %v1490 = vpack.c.b16 %v1430, %v1426
    %v1491 = vpack.c.b16 %v1435, %v1431
    %v1492 = vpack.c.b16 %v1436, %v1432
    %v1493 = vpack.c.b16 %v1437, %v1433
    %v1494 = vpack.c.b16 %v1438, %v1434
    %v1495 = vpack.c.b16 %v1443, %v1439
    %v1496 = vpack.c.b16 %v1444, %v1440
    %v1497 = vpack.c.b16 %v1445, %v1441
    %v1498 = vpack.c.b16 %v1446, %v1442
    %v1499 = vpack.c.b16 %v1451, %v1447
    %v1500 = vpack.c.b16 %v1452, %v1448
    %v1501 = vpack.c.b16 %v1453, %v1449
    %v1502 = vpack.c.b16 %v1454, %v1450
    %v1503 = vpack.c.b16 %v1459, %v1455
    %v1504 = vpack.c.b16 %v1460, %v1456
    %v1505 = vpack.c.b16 %v1461, %v1457
    %v1506 = vpack.c.b16 %v1462, %v1458
    %v1507 = vpack.c.b16 %v1467, %v1463
    %v1508 = vpack.c.b16 %v1468, %v1464
    %v1509 = vpack.c.b16 %v1469, %v1465
    %v1510 = vpack.c.b16 %v1470, %v1466
    %v1511 = vpack.c.b16 %v1475, %v1471
    %v1512 = vpack.c.b16 %v1476, %v1472
    %v1513 = vpack.c.b16 %v1477, %v1473
    %v1514 = vpack.c.b16 %v1478, %v1474
    %v1515 = vpack.c.b16 %v1483, %v1479
    %v1516 = vpack.c.b16 %v1484, %v1480
    %v1517 = vpack.c.b16 %v1485, %v1481
    %v1518 = vpack.c.b16 %v1486, %v1482
    %1551 = vmatprep.subr.bf16.mxu0 %v1516
    %1552 = vmatpush1.bf16.msra.mxu0 %v1515
    %1553 = vmatprep.subr.bf16.mxu0 %v1512
    %1554 = vmatpush1.bf16.msra.mxu0 %v1511
    %1555 = vmatprep.subr.bf16.mxu0 %v1508
    %1556 = vmatpush1.bf16.msra.mxu0 %v1507
    %1557 = vmatprep.subr.bf16.mxu0 %v1504
    %1558 = vmatpush1.bf16.msra.mxu0 %v1503
    %1559 = vmatprep.subr.bf16.mxu0 %v1500
    %1560 = vmatpush1.bf16.msra.mxu0 %v1499
    %1561 = vmatprep.subr.bf16.mxu0 %v1496
    %1562 = vmatpush1.bf16.msra.mxu0 %v1495
    %1563 = vmatprep.subr.bf16.mxu0 %v1492
    %1564 = vmatpush1.bf16.msra.mxu0 %v1491
    %1565 = vmatprep.subr.bf16.mxu0 %v1488
    %1566 = vmatpush1.bf16.msra.mxu0 %v1487
    %1567 = vmatprep.subr.bf16.mxu0 0
    %1568 = vmatpush2.bf16.msra.mxu0 0
    %1569 = vmatprep.subr.bf16.mxu0 0
    %1570 = vmatpush2.bf16.msra.mxu0 0
    %1571 = vmatprep.subr.bf16.mxu0 0
    %1572 = vmatpush2.bf16.msra.mxu0 0
    %1573 = vmatprep.subr.bf16.mxu0 0
    %1574 = vmatpush2.bf16.msra.mxu0 0
    %1575 = vmatprep.subr.bf16.mxu0 0
    %1576 = vmatpush2.bf16.msra.mxu0 0
    %1577 = vmatprep.subr.bf16.mxu0 0
    %1578 = vmatpush2.bf16.msra.mxu0 0
    %1579 = vmatprep.subr.bf16.mxu0 0
    %1580 = vmatpush2.bf16.msra.mxu0 0
    %1581 = vmatprep.subr.bf16.mxu0 0
    %1582 = vmatpush2.bf16.msra.mxu0 0
    %1583 = vmatprep.mubr.bf16.mxu0 0
    %1584 = vmatmul.mubr.bf16.gmra.mxu0 %v1335
    %v1585 = vpop.f32.mrf.mxu0
    %v1586 = vadd.f32 %v1374, %v1585
    %v1587 = vpop.f32.mrf.mxu0
    %v1588 = vadd.f32 %v1378, %v1587
    %v1589 = vpop.f32.mrf.mxu0
    %v1590 = vadd.f32 %v1374, %v1589
    %v1591 = vpop.f32.mrf.mxu0
    %v1592 = vadd.f32 %v1378, %v1591
    %1593 = vmatprep.mubr.bf16.mxu0 0
    %1594 = vmatmul.mubr.bf16.gmra.mxu0 %v1336
    %v1595 = vpop.f32.mrf.mxu0
    %v1596 = vadd.f32 %v1374, %v1595
    %v1597 = vpop.f32.mrf.mxu0
    %v1598 = vadd.f32 %v1378, %v1597
    %v1599 = vpop.f32.mrf.mxu0
    %v1600 = vadd.f32 %v1374, %v1599
    %v1601 = vpop.f32.mrf.mxu0
    %v1602 = vadd.f32 %v1378, %v1601
    %1603 = vdwg.mxu0
    %1604 = vmatprep.subr.bf16.mxu0 %v1518
    %1605 = vmatpush1.bf16.msra.mxu0 %v1517
    %1606 = vmatprep.subr.bf16.mxu0 %v1514
    %1607 = vmatpush1.bf16.msra.mxu0 %v1513
    %1608 = vmatprep.subr.bf16.mxu0 %v1510
    %1609 = vmatpush1.bf16.msra.mxu0 %v1509
    %1610 = vmatprep.subr.bf16.mxu0 %v1506
    %1611 = vmatpush1.bf16.msra.mxu0 %v1505
    %1612 = vmatprep.subr.bf16.mxu0 %v1502
    %1613 = vmatpush1.bf16.msra.mxu0 %v1501
    %1614 = vmatprep.subr.bf16.mxu0 %v1498
    %1615 = vmatpush1.bf16.msra.mxu0 %v1497
    %1616 = vmatprep.subr.bf16.mxu0 %v1494
    %1617 = vmatpush1.bf16.msra.mxu0 %v1493
    %1618 = vmatprep.subr.bf16.mxu0 %v1490
    %1619 = vmatpush1.bf16.msra.mxu0 %v1489
    %1620 = vmatprep.subr.bf16.mxu0 0
    %1621 = vmatpush2.bf16.msra.mxu0 0
    %1622 = vmatprep.subr.bf16.mxu0 0
    %1623 = vmatpush2.bf16.msra.mxu0 0
    %1624 = vmatprep.subr.bf16.mxu0 0
    %1625 = vmatpush2.bf16.msra.mxu0 0
    %1626 = vmatprep.subr.bf16.mxu0 0
    %1627 = vmatpush2.bf16.msra.mxu0 0
    %1628 = vmatprep.subr.bf16.mxu0 0
    %1629 = vmatpush2.bf16.msra.mxu0 0
    %1630 = vmatprep.subr.bf16.mxu0 0
    %1631 = vmatpush2.bf16.msra.mxu0 0
    %1632 = vmatprep.subr.bf16.mxu0 0
    %1633 = vmatpush2.bf16.msra.mxu0 0
    %1634 = vmatprep.subr.bf16.mxu0 0
    %1635 = vmatpush2.bf16.msra.mxu0 0
    %1636 = vmatprep.mubr.bf16.mxu0 0
    %1637 = vmatmul.mubr.bf16.gmra.mxu0 %v1335
    %v1638 = vpop.f32.mrf.mxu0
    %v1639 = vadd.f32 %v1382, %v1638
    %v1640 = vpop.f32.mrf.mxu0
    %v1641 = vadd.f32 %v1386, %v1640
    %v1642 = vpop.f32.mrf.mxu0
    %v1643 = vadd.f32 %v1382, %v1642
    %v1644 = vpop.f32.mrf.mxu0
    %v1645 = vadd.f32 %v1386, %v1644
    %1646 = vmatprep.mubr.bf16.mxu0 0
    %1647 = vmatmul.mubr.bf16.gmra.mxu0 %v1336
    %v1648 = vpop.f32.mrf.mxu0
    %v1649 = vadd.f32 %v1382, %v1648
    %v1650 = vpop.f32.mrf.mxu0
    %v1651 = vadd.f32 %v1386, %v1650
    %v1652 = vpop.f32.mrf.mxu0
    %v1653 = vadd.f32 %v1382, %v1652
    %v1654 = vpop.f32.mrf.mxu0
    %v1655 = vadd.f32 %v1386, %v1654
    %1656 = vdwg.mxu0
    %v1657 = vmax.f32 %v1586, 0.0
    %v1658 = vmax.f32 %v1588, 0.0
    %v1659 = vmax.f32 %v1639, 0.0
    %v1660 = vmax.f32 %v1641, 0.0
    %v1661 = vmax.f32 %v1590, 0.0
    %v1662 = vmax.f32 %v1592, 0.0
    %v1663 = vmax.f32 %v1643, 0.0
    %v1664 = vmax.f32 %v1645, 0.0
    %v1665 = vmax.f32 %v1596, 0.0
    %v1666 = vmax.f32 %v1598, 0.0
    %v1667 = vmax.f32 %v1649, 0.0
    %v1668 = vmax.f32 %v1651, 0.0
    %v1669 = vmax.f32 %v1600, 0.0
    %v1670 = vmax.f32 %v1602, 0.0
    %v1671 = vmax.f32 %v1653, 0.0
    %v1672 = vmax.f32 %v1655, 0.0
    %v1673 = vpack.c.bf16 %v1661, %v1657
    %v1674 = vpack.c.bf16 %v1662, %v1658
    %v1675 = vpack.c.bf16 %v1663, %v1659
    %v1676 = vpack.c.bf16 %v1664, %v1660
    %v1677 = vpack.c.bf16 %v1669, %v1665
    %v1678 = vpack.c.bf16 %v1670, %v1666
    %v1679 = vpack.c.bf16 %v1671, %v1667
    %v1680 = vpack.c.bf16 %v1672, %v1668
    %v1681 = vld [vmem:[#allocation19] sm:$0xf]
    %v1682 = vld [vmem:[#allocation19 + $0x4] sm:$0xf]
    %v1683 = vld [vmem:[#allocation19 + $0x8] sm:$0xf]
    %v1684 = vld [vmem:[#allocation19 + $0xc] sm:$0xf]
    %v1685 = vld [vmem:[#allocation19 + $0x10] sm:$0xf]
    %v1686 = vld [vmem:[#allocation19 + $0x14] sm:$0xf]
    %v1687 = vld [vmem:[#allocation19 + $0x18] sm:$0xf]
    %v1688 = vld [vmem:[#allocation19 + $0x1c] sm:$0xf]
    %v1689 = vld [vmem:[#allocation19 + $0x20] sm:$0xf]
    %v1690 = vld [vmem:[#allocation19 + $0x24] sm:$0xf]
    %v1691 = vld [vmem:[#allocation19 + $0x28] sm:$0xf]
    %v1692 = vld [vmem:[#allocation19 + $0x2c] sm:$0xf]
    %v1693 = vld [vmem:[#allocation19 + $0x30] sm:$0xf]
    %v1694 = vld [vmem:[#allocation19 + $0x34] sm:$0xf]
    %v1695 = vld [vmem:[#allocation19 + $0x38] sm:$0xf]
    %v1696 = vld [vmem:[#allocation19 + $0x3c] sm:$0xf]
    %v1697 = vld [vmem:[#allocation19 + $0x40] sm:$0xf]
    %v1698 = vld [vmem:[#allocation19 + $0x44] sm:$0xf]
    %v1699 = vld [vmem:[#allocation19 + $0x48] sm:$0xf]
    %v1700 = vld [vmem:[#allocation19 + $0x4c] sm:$0xf]
    %v1701 = vld [vmem:[#allocation19 + $0x50] sm:$0xf]
    %v1702 = vld [vmem:[#allocation19 + $0x54] sm:$0xf]
    %v1703 = vld [vmem:[#allocation19 + $0x58] sm:$0xf]
    %v1704 = vld [vmem:[#allocation19 + $0x5c] sm:$0xf]
    %v1705 = vld [vmem:[#allocation19 + $0x60] sm:$0xf]
    %v1706 = vld [vmem:[#allocation19 + $0x64] sm:$0xf]
    %v1707 = vld [vmem:[#allocation19 + $0x68] sm:$0xf]
    %v1708 = vld [vmem:[#allocation19 + $0x6c] sm:$0xf]
    %v1709 = vld [vmem:[#allocation19 + $0x70] sm:$0xf]
    %v1710 = vld [vmem:[#allocation19 + $0x74] sm:$0xf]
    %v1711 = vld [vmem:[#allocation19 + $0x78] sm:$0xf]
    %v1712 = vld [vmem:[#allocation19 + $0x7c] sm:$0xf]
    %v1713 = vld [vmem:[#allocation19 + $0x80] sm:$0xf]
    %v1714 = vld [vmem:[#allocation19 + $0x84] sm:$0xf]
    %v1715 = vld [vmem:[#allocation19 + $0x88] sm:$0xf]
    %v1716 = vld [vmem:[#allocation19 + $0x8c] sm:$0xf]
    %v1717 = vld [vmem:[#allocation19 + $0x90] sm:$0xf]
    %v1718 = vld [vmem:[#allocation19 + $0x94] sm:$0xf]
    %v1719 = vld [vmem:[#allocation19 + $0x98] sm:$0xf]
    %v1720 = vld [vmem:[#allocation19 + $0x9c] sm:$0xf]
    %v1721 = vld [vmem:[#allocation19 + $0xa0] sm:$0xf]
    %v1722 = vld [vmem:[#allocation19 + $0xa4] sm:$0xf]
    %v1723 = vld [vmem:[#allocation19 + $0xa8] sm:$0xf]
    %v1724 = vld [vmem:[#allocation19 + $0xac] sm:$0xf]
    %v1725 = vld [vmem:[#allocation19 + $0xb0] sm:$0xf]
    %v1726 = vld [vmem:[#allocation19 + $0xb4] sm:$0xf]
    %v1727 = vld [vmem:[#allocation19 + $0xb8] sm:$0xf]
    %v1728 = vld [vmem:[#allocation19 + $0xbc] sm:$0xf]
    %v1729 = vld [vmem:[#allocation19 + $0xc0] sm:$0xf]
    %v1730 = vld [vmem:[#allocation19 + $0xc4] sm:$0xf]
    %v1731 = vld [vmem:[#allocation19 + $0xc8] sm:$0xf]
    %v1732 = vld [vmem:[#allocation19 + $0xcc] sm:$0xf]
    %v1733 = vld [vmem:[#allocation19 + $0xd0] sm:$0xf]
    %v1734 = vld [vmem:[#allocation19 + $0xd4] sm:$0xf]
    %v1735 = vld [vmem:[#allocation19 + $0xd8] sm:$0xf]
    %v1736 = vld [vmem:[#allocation19 + $0xdc] sm:$0xf]
    %v1737 = vld [vmem:[#allocation19 + $0xe0] sm:$0xf]
    %v1738 = vld [vmem:[#allocation19 + $0xe4] sm:$0xf]
    %v1739 = vld [vmem:[#allocation19 + $0xe8] sm:$0xf]
    %v1740 = vld [vmem:[#allocation19 + $0xec] sm:$0xf]
    %v1741 = vld [vmem:[#allocation19 + $0xf0] sm:$0xf]
    %v1742 = vld [vmem:[#allocation19 + $0xf4] sm:$0xf]
    %v1743 = vld [vmem:[#allocation19 + $0xf8] sm:$0xf]
    %v1744 = vld [vmem:[#allocation19 + $0xfc] sm:$0xf]
    %v1745 = vld [vmem:[#allocation20] sm:$0x1]
    %v1747 = vlaneseq
    %v1748 = vshrl.u32 %v1747, 7
    %v1749 = vsub.s32 0, %v1748
    %v1750 = vrot.slane %v1745, %v1749
    %v1816 = vunpack.c.l.b16 %v1681
    %v1817 = vunpack.c.l.b16 %v1682
    %v1818 = vunpack.c.l.b16 %v1683
    %v1819 = vunpack.c.l.b16 %v1684
    %v1820 = vunpack.c.l.b16 %v1685
    %v1821 = vunpack.c.l.b16 %v1686
    %v1822 = vunpack.c.l.b16 %v1687
    %v1823 = vunpack.c.l.b16 %v1688
    %v1824 = vunpack.c.l.b16 %v1689
    %v1825 = vunpack.c.l.b16 %v1690
    %v1826 = vunpack.c.l.b16 %v1691
    %v1827 = vunpack.c.l.b16 %v1692
    %v1828 = vunpack.c.l.b16 %v1693
    %v1829 = vunpack.c.l.b16 %v1694
    %v1830 = vunpack.c.l.b16 %v1695
    %v1831 = vunpack.c.l.b16 %v1696
    %v1832 = vunpack.c.l.b16 %v1697
    %v1833 = vunpack.c.l.b16 %v1698
    %v1834 = vunpack.c.l.b16 %v1699
    %v1835 = vunpack.c.l.b16 %v1700
    %v1836 = vunpack.c.l.b16 %v1701
    %v1837 = vunpack.c.l.b16 %v1702
    %v1838 = vunpack.c.l.b16 %v1703
    %v1839 = vunpack.c.l.b16 %v1704
    %v1840 = vunpack.c.l.b16 %v1705
    %v1841 = vunpack.c.l.b16 %v1706
    %v1842 = vunpack.c.l.b16 %v1707
    %v1843 = vunpack.c.l.b16 %v1708
    %v1844 = vunpack.c.l.b16 %v1709
    %v1845 = vunpack.c.l.b16 %v1710
    %v1846 = vunpack.c.l.b16 %v1711
    %v1847 = vunpack.c.l.b16 %v1712
    %v1848 = vunpack.c.l.b16 %v1713
    %v1849 = vunpack.c.l.b16 %v1714
    %v1850 = vunpack.c.l.b16 %v1715
    %v1851 = vunpack.c.l.b16 %v1716
    %v1852 = vunpack.c.l.b16 %v1717
    %v1853 = vunpack.c.l.b16 %v1718
    %v1854 = vunpack.c.l.b16 %v1719
    %v1855 = vunpack.c.l.b16 %v1720
    %v1856 = vunpack.c.l.b16 %v1721
    %v1857 = vunpack.c.l.b16 %v1722
    %v1858 = vunpack.c.l.b16 %v1723
    %v1859 = vunpack.c.l.b16 %v1724
    %v1860 = vunpack.c.l.b16 %v1725
    %v1861 = vunpack.c.l.b16 %v1726
    %v1862 = vunpack.c.l.b16 %v1727
    %v1863 = vunpack.c.l.b16 %v1728
    %v1864 = vunpack.c.l.b16 %v1729
    %v1865 = vunpack.c.l.b16 %v1730
    %v1866 = vunpack.c.l.b16 %v1731
    %v1867 = vunpack.c.l.b16 %v1732
    %v1868 = vunpack.c.l.b16 %v1733
    %v1869 = vunpack.c.l.b16 %v1734
    %v1870 = vunpack.c.l.b16 %v1735
    %v1871 = vunpack.c.l.b16 %v1736
    %v1872 = vunpack.c.l.b16 %v1737
    %v1873 = vunpack.c.l.b16 %v1738
    %v1874 = vunpack.c.l.b16 %v1739
    %v1875 = vunpack.c.l.b16 %v1740
    %v1876 = vunpack.c.l.b16 %v1741
    %v1877 = vunpack.c.l.b16 %v1742
    %v1878 = vunpack.c.l.b16 %v1743
    %v1879 = vunpack.c.l.b16 %v1744
    %v1880 = vpack.c.b16 %v1817, %v1816
    %v1881 = vpack.c.b16 %v1819, %v1818
    %v1882 = vpack.c.b16 %v1821, %v1820
    %v1883 = vpack.c.b16 %v1823, %v1822
    %v1884 = vpack.c.b16 %v1825, %v1824
    %v1885 = vpack.c.b16 %v1827, %v1826
    %v1886 = vpack.c.b16 %v1829, %v1828
    %v1887 = vpack.c.b16 %v1831, %v1830
    %v1888 = vpack.c.b16 %v1833, %v1832
    %v1889 = vpack.c.b16 %v1835, %v1834
    %v1890 = vpack.c.b16 %v1837, %v1836
    %v1891 = vpack.c.b16 %v1839, %v1838
    %v1892 = vpack.c.b16 %v1841, %v1840
    %v1893 = vpack.c.b16 %v1843, %v1842
    %v1894 = vpack.c.b16 %v1845, %v1844
    %v1895 = vpack.c.b16 %v1847, %v1846
    %v1896 = vpack.c.b16 %v1849, %v1848
    %v1897 = vpack.c.b16 %v1851, %v1850
    %v1898 = vpack.c.b16 %v1853, %v1852
    %v1899 = vpack.c.b16 %v1855, %v1854
    %v1900 = vpack.c.b16 %v1857, %v1856
    %v1901 = vpack.c.b16 %v1859, %v1858
    %v1902 = vpack.c.b16 %v1861, %v1860
    %v1903 = vpack.c.b16 %v1863, %v1862
    %v1904 = vpack.c.b16 %v1865, %v1864
    %v1905 = vpack.c.b16 %v1867, %v1866
    %v1906 = vpack.c.b16 %v1869, %v1868
    %v1907 = vpack.c.b16 %v1871, %v1870
    %v1908 = vpack.c.b16 %v1873, %v1872
    %v1909 = vpack.c.b16 %v1875, %v1874
    %v1910 = vpack.c.b16 %v1877, %v1876
    %v1911 = vpack.c.b16 %v1879, %v1878
    %1944 = vmatprep.subr.bf16.mxu0 0
    %1945 = vmatpush1.bf16.msra.mxu0 %v1887
    %1946 = vmatprep.subr.bf16.mxu0 0
    %1947 = vmatpush1.bf16.msra.mxu0 %v1886
    %1948 = vmatprep.subr.bf16.mxu0 0
    %1949 = vmatpush1.bf16.msra.mxu0 %v1885
    %1950 = vmatprep.subr.bf16.mxu0 0
    %1951 = vmatpush1.bf16.msra.mxu0 %v1884
    %1952 = vmatprep.subr.bf16.mxu0 0
    %1953 = vmatpush1.bf16.msra.mxu0 %v1883
    %1954 = vmatprep.subr.bf16.mxu0 0
    %1955 = vmatpush1.bf16.msra.mxu0 %v1882
    %1956 = vmatprep.subr.bf16.mxu0 0
    %1957 = vmatpush1.bf16.msra.mxu0 %v1881
    %1958 = vmatprep.subr.bf16.mxu0 0
    %1959 = vmatpush1.bf16.msra.mxu0 %v1880
    %1960 = vmatprep.subr.bf16.mxu0 0
    %1961 = vmatpush2.bf16.msra.mxu0 %v1895
    %1962 = vmatprep.subr.bf16.mxu0 0
    %1963 = vmatpush2.bf16.msra.mxu0 %v1894
    %1964 = vmatprep.subr.bf16.mxu0 0
    %1965 = vmatpush2.bf16.msra.mxu0 %v1893
    %1966 = vmatprep.subr.bf16.mxu0 0
    %1967 = vmatpush2.bf16.msra.mxu0 %v1892
    %1968 = vmatprep.subr.bf16.mxu0 0
    %1969 = vmatpush2.bf16.msra.mxu0 %v1891
    %1970 = vmatprep.subr.bf16.mxu0 0
    %1971 = vmatpush2.bf16.msra.mxu0 %v1890
    %1972 = vmatprep.subr.bf16.mxu0 0
    %1973 = vmatpush2.bf16.msra.mxu0 %v1889
    %1974 = vmatprep.subr.bf16.mxu0 0
    %1975 = vmatpush2.bf16.msra.mxu0 %v1888
    %1976 = vmatprep.mubr.bf16.mxu0 %v1674
    %1977 = vmatmul.mubr.bf16.gmra.mxu0 %v1673
    %v1978 = vpop.f32.mrf.mxu0
    %v1979 = vadd.f32 %v1750, %v1978
    %v1980 = vpop.f32.mrf.mxu0
    %v1981 = vpop.f32.mrf.mxu0
    %v1982 = vadd.f32 %v1750, %v1981
    %v1983 = vpop.f32.mrf.mxu0
    %1984 = vmatprep.mubr.bf16.mxu0 %v1678
    %1985 = vmatmul.mubr.bf16.gmra.mxu0 %v1677
    %v1986 = vpop.f32.mrf.mxu0
    %v1987 = vadd.f32 %v1750, %v1986
    %v1988 = vpop.f32.mrf.mxu0
    %v1989 = vpop.f32.mrf.mxu0
    %v1990 = vadd.f32 %v1750, %v1989
    %v1991 = vpop.f32.mrf.mxu0
    %1992 = vdwg.mxu0
    %1993 = vmatprep.subr.bf16.mxu0 0
    %1994 = vmatpush1.bf16.msra.mxu0 %v1903
    %1995 = vmatprep.subr.bf16.mxu0 0
    %1996 = vmatpush1.bf16.msra.mxu0 %v1902
    %1997 = vmatprep.subr.bf16.mxu0 0
    %1998 = vmatpush1.bf16.msra.mxu0 %v1901
    %1999 = vmatprep.subr.bf16.mxu0 0
    %2000 = vmatpush1.bf16.msra.mxu0 %v1900
    %2001 = vmatprep.subr.bf16.mxu0 0
    %2002 = vmatpush1.bf16.msra.mxu0 %v1899
    %2003 = vmatprep.subr.bf16.mxu0 0
    %2004 = vmatpush1.bf16.msra.mxu0 %v1898
    %2005 = vmatprep.subr.bf16.mxu0 0
    %2006 = vmatpush1.bf16.msra.mxu0 %v1897
    %2007 = vmatprep.subr.bf16.mxu0 0
    %2008 = vmatpush1.bf16.msra.mxu0 %v1896
    %2009 = vmatprep.subr.bf16.mxu0 0
    %2010 = vmatpush2.bf16.msra.mxu0 %v1911
    %2011 = vmatprep.subr.bf16.mxu0 0
    %2012 = vmatpush2.bf16.msra.mxu0 %v1910
    %2013 = vmatprep.subr.bf16.mxu0 0
    %2014 = vmatpush2.bf16.msra.mxu0 %v1909
    %2015 = vmatprep.subr.bf16.mxu0 0
    %2016 = vmatpush2.bf16.msra.mxu0 %v1908
    %2017 = vmatprep.subr.bf16.mxu0 0
    %2018 = vmatpush2.bf16.msra.mxu0 %v1907
    %2019 = vmatprep.subr.bf16.mxu0 0
    %2020 = vmatpush2.bf16.msra.mxu0 %v1906
    %2021 = vmatprep.subr.bf16.mxu0 0
    %2022 = vmatpush2.bf16.msra.mxu0 %v1905
    %2023 = vmatprep.subr.bf16.mxu0 0
    %2024 = vmatpush2.bf16.msra.mxu0 %v1904
    %2025 = vmatprep.mubr.bf16.mxu0 %v1676
    %2026 = vmatmul.mubr.bf16.gmra.mxu0 %v1675
    %v2027 = vpop.f32.mrf.mxu0
    %v2028 = vadd.f32 %v1979, %v2027
    %v2029 = vpop.f32.mrf.mxu0
    %v2030 = vpop.f32.mrf.mxu0
    %v2031 = vadd.f32 %v1982, %v2030
    %v2032 = vpop.f32.mrf.mxu0
    %2033 = vmatprep.mubr.bf16.mxu0 %v1680
    %2034 = vmatmul.mubr.bf16.gmra.mxu0 %v1679
    %v2035 = vpop.f32.mrf.mxu0
    %v2036 = vadd.f32 %v1987, %v2035
    %v2037 = vpop.f32.mrf.mxu0
    %v2038 = vpop.f32.mrf.mxu0
    %v2039 = vadd.f32 %v1990, %v2038
    %v2040 = vpop.f32.mrf.mxu0
    %2041 = vdwg.mxu0
    %v2042 = vadd.f32 %v1265, %v2028
    %v2043 = vadd.f32 %v1266, %v2031
    %v2044 = vadd.f32 %v1267, %v2036
    %v2045 = vadd.f32 %v1268, %v2039
    %s2046 = scalar_lea.vmem %s9, 1
    %v2047 = vld [vmem:[%s2046] sm:$0x1]
    %s2048 = scalar_lea.vmem [#allocation16], 1
    %v2049 = vld [vmem:[%s2048] sm:$0x1]
    %2050 = vadd.xlane.f32.xlu0 %v2042
    %v2051 = vpop.xlane.xlu0 %2050
    %2052 = vadd.xlane.f32.xlu0 %v2043
    %v2053 = vpop.xlane.xlu0 %2052
    %2054 = vadd.xlane.f32.xlu0 %v2044
    %v2055 = vpop.xlane.xlu0 %2054
    %2056 = vadd.xlane.f32.xlu0 %v2045
    %v2057 = vpop.xlane.xlu0 %2056
    %v2058 = vmul.f32 %v2051, %v280
    %v2059 = vmul.f32 %v2053, %v280
    %v2060 = vmul.f32 %v2055, %v280
    %v2061 = vmul.f32 %v2057, %v280
    %v2062 = vsub.f32 %v2042, %v2058
    %v2063 = vsub.f32 %v2043, %v2059
    %v2064 = vsub.f32 %v2044, %v2060
    %v2065 = vsub.f32 %v2045, %v2061
    %v2066 = vmul.f32 %v2062, %v2062
    %v2067 = vmul.f32 %v2063, %v2063
    %v2068 = vmul.f32 %v2064, %v2064
    %v2069 = vmul.f32 %v2065, %v2065
    %2070 = vadd.xlane.f32.xlu0 %v2066
    %v2071 = vpop.xlane.xlu0 %2070
    %2072 = vadd.xlane.f32.xlu0 %v2067
    %v2073 = vpop.xlane.xlu0 %2072
    %2074 = vadd.xlane.f32.xlu0 %v2068
    %v2075 = vpop.xlane.xlu0 %2074
    %2076 = vadd.xlane.f32.xlu0 %v2069
    %v2077 = vpop.xlane.xlu0 %2076
    %v2078 = vmul.f32 %v2071, %v280
    %v2079 = vmul.f32 %v2073, %v280
    %v2080 = vmul.f32 %v2075, %v280
    %v2081 = vmul.f32 %v2077, %v280
    %v2082 = vadd.f32 %v2078, 1e-05
    %v2083 = vadd.f32 %v2079, 1e-05
    %v2084 = vadd.f32 %v2080, 1e-05
    %v2085 = vadd.f32 %v2081, 1e-05
    %v2086 = vrsqrt.pop %v2082
    %v2087 = vrsqrt.pop %v2083
    %v2088 = vrsqrt.pop %v2084
    %v2089 = vrsqrt.pop %v2085
    %v2090 = vmul.f32 %v2062, %v2086
    %v2091 = vmul.f32 %v2063, %v2087
    %v2092 = vmul.f32 %v2064, %v2088
    %v2093 = vmul.f32 %v2065, %v2089
    %v2095 = vlaneseq
    %v2096 = vshrl.u32 %v2095, 7
    %v2097 = vsub.s32 0, %v2096
    %v2098 = vrot.slane %v2047, %v2097
    %v2100 = vmul.f32 %v2090, %v2098
    %v2101 = vmul.f32 %v2091, %v2098
    %v2102 = vmul.f32 %v2092, %v2098
    %v2103 = vmul.f32 %v2093, %v2098
    %v2105 = vlaneseq
    %v2106 = vshrl.u32 %v2105, 7
    %v2107 = vsub.s32 0, %v2106
    %v2108 = vrot.slane %v2049, %v2107
    %v2110 = vadd.f32 %v2100, %v2108
    %v2111 = vadd.f32 %v2101, %v2108
    %v2112 = vadd.f32 %v2102, %v2108
    %v2113 = vadd.f32 %v2103, %v2108
    %v2114 = vpack.c.bf16 %v2111, %v2110
    %v2115 = vpack.c.bf16 %v2113, %v2112
    %s2116 = scalar_lea.vmem [#allocation11], 192
    %v2117 = vld [vmem:[%s2116] sm:$0xff]
    %v2118 = vld [vmem:[%s2116 + $0x8] sm:$0xf]
    %v2119 = vld [vmem:[%s2116 + $0xc] sm:$0xff]
    %v2120 = vld [vmem:[%s2116 + $0x14] sm:$0xf]
    %v2121 = vld [vmem:[%s2116 + $0x18] sm:$0xff]
    %v2122 = vld [vmem:[%s2116 + $0x20] sm:$0xf]
    %v2123 = vld [vmem:[%s2116 + $0x24] sm:$0xff]
    %v2124 = vld [vmem:[%s2116 + $0x2c] sm:$0xf]
    %v2125 = vld [vmem:[%s2116 + $0x30] sm:$0xff]
    %v2126 = vld [vmem:[%s2116 + $0x38] sm:$0xf]
    %v2127 = vld [vmem:[%s2116 + $0x3c] sm:$0xff]
    %v2128 = vld [vmem:[%s2116 + $0x44] sm:$0xf]
    %v2129 = vld [vmem:[%s2116 + $0x48] sm:$0xff]
    %v2130 = vld [vmem:[%s2116 + $0x50] sm:$0xf]
    %v2131 = vld [vmem:[%s2116 + $0x54] sm:$0xff]
    %v2132 = vld [vmem:[%s2116 + $0x5c] sm:$0xf]
    %v2133 = vld [vmem:[%s2116 + $0x60] sm:$0xff]
    %v2134 = vld [vmem:[%s2116 + $0x68] sm:$0xf]
    %v2135 = vld [vmem:[%s2116 + $0x6c] sm:$0xff]
    %v2136 = vld [vmem:[%s2116 + $0x74] sm:$0xf]
    %v2137 = vld [vmem:[%s2116 + $0x78] sm:$0xff]
    %v2138 = vld [vmem:[%s2116 + $0x80] sm:$0xf]
    %v2139 = vld [vmem:[%s2116 + $0x84] sm:$0xff]
    %v2140 = vld [vmem:[%s2116 + $0x8c] sm:$0xf]
    %v2141 = vld [vmem:[%s2116 + $0x90] sm:$0xff]
    %v2142 = vld [vmem:[%s2116 + $0x98] sm:$0xf]
    %v2143 = vld [vmem:[%s2116 + $0x9c] sm:$0xff]
    %v2144 = vld [vmem:[%s2116 + $0xa4] sm:$0xf]
    %v2145 = vld [vmem:[%s2116 + $0xa8] sm:$0xff]
    %v2146 = vld [vmem:[%s2116 + $0xb0] sm:$0xf]
    %v2147 = vld [vmem:[%s2116 + $0xb4] sm:$0xff]
    %v2148 = vld [vmem:[%s2116 + $0xbc] sm:$0xf]
    %s2149 = scalar_lea.vmem %s6, 3
    %v2150 = vld [vmem:[%s2149] sm:$0x7]
    %v2152 = vlaneseq
    %v2153 = vshrl.u32 %v2152, 7
    %v2154 = vsub.s32 0, %v2153
    %v2155 = vrot.slane %v2150, %v2154
    %v2156 = vlaneseq
    %v2157 = vshrl.u32 %v2156, 7
    %v2158 = vsub.s32 1, %v2157
    %v2159 = vrot.slane %v2150, %v2158
    %v2160 = vlaneseq
    %v2161 = vshrl.u32 %v2160, 7
    %v2162 = vsub.s32 2, %v2161
    %v2163 = vrot.slane %v2150, %v2162
    %v2199 = vunpack.c.l.b16 %v2117
    %v2200 = vunpack.c.h.b16 %v2117
    %v2201 = vunpack.c.l.b16 %v2118
    %v2202 = vunpack.c.l.b16 %v2119
    %v2203 = vunpack.c.h.b16 %v2119
    %v2204 = vunpack.c.l.b16 %v2120
    %v2205 = vunpack.c.l.b16 %v2121
    %v2206 = vunpack.c.h.b16 %v2121
    %v2207 = vunpack.c.l.b16 %v2122
    %v2208 = vunpack.c.l.b16 %v2123
    %v2209 = vunpack.c.h.b16 %v2123
    %v2210 = vunpack.c.l.b16 %v2124
    %v2211 = vunpack.c.l.b16 %v2125
    %v2212 = vunpack.c.h.b16 %v2125
    %v2213 = vunpack.c.l.b16 %v2126
    %v2214 = vunpack.c.l.b16 %v2127
    %v2215 = vunpack.c.h.b16 %v2127
    %v2216 = vunpack.c.l.b16 %v2128
    %v2217 = vunpack.c.l.b16 %v2129
    %v2218 = vunpack.c.h.b16 %v2129
    %v2219 = vunpack.c.l.b16 %v2130
    %v2220 = vunpack.c.l.b16 %v2131
    %v2221 = vunpack.c.h.b16 %v2131
    %v2222 = vunpack.c.l.b16 %v2132
    %v2223 = vunpack.c.l.b16 %v2133
    %v2224 = vunpack.c.h.b16 %v2133
    %v2225 = vunpack.c.l.b16 %v2134
    %v2226 = vunpack.c.l.b16 %v2135
    %v2227 = vunpack.c.h.b16 %v2135
    %v2228 = vunpack.c.l.b16 %v2136
    %v2229 = vunpack.c.l.b16 %v2137
    %v2230 = vunpack.c.h.b16 %v2137
    %v2231 = vunpack.c.l.b16 %v2138
    %v2232 = vunpack.c.l.b16 %v2139
    %v2233 = vunpack.c.h.b16 %v2139
    %v2234 = vunpack.c.l.b16 %v2140
    %v2235 = vunpack.c.l.b16 %v2141
    %v2236 = vunpack.c.h.b16 %v2141
    %v2237 = vunpack.c.l.b16 %v2142
    %v2238 = vunpack.c.l.b16 %v2143
    %v2239 = vunpack.c.h.b16 %v2143
    %v2240 = vunpack.c.l.b16 %v2144
    %v2241 = vunpack.c.l.b16 %v2145
    %v2242 = vunpack.c.h.b16 %v2145
    %v2243 = vunpack.c.l.b16 %v2146
    %v2244 = vunpack.c.l.b16 %v2147
    %v2245 = vunpack.c.h.b16 %v2147
    %v2246 = vunpack.c.l.b16 %v2148
    %v2247 = vpack.c.b16 %v2202, %v2199
    %v2248 = vpack.c.b16 %v2203, %v2200
    %v2249 = vpack.c.b16 %v2204, %v2201
    %v2250 = vpack.c.b16 %v2208, %v2205
    %v2251 = vpack.c.b16 %v2209, %v2206
    %v2252 = vpack.c.b16 %v2210, %v2207
    %v2253 = vpack.c.b16 %v2214, %v2211
    %v2254 = vpack.c.b16 %v2215, %v2212
    %v2255 = vpack.c.b16 %v2216, %v2213
    %v2256 = vpack.c.b16 %v2220, %v2217
    %v2257 = vpack.c.b16 %v2221, %v2218
    %v2258 = vpack.c.b16 %v2222, %v2219
    %v2259 = vpack.c.b16 %v2226, %v2223
    %v2260 = vpack.c.b16 %v2227, %v2224
    %v2261 = vpack.c.b16 %v2228, %v2225
    %v2262 = vpack.c.b16 %v2232, %v2229
    %v2263 = vpack.c.b16 %v2233, %v2230
    %v2264 = vpack.c.b16 %v2234, %v2231
    %v2265 = vpack.c.b16 %v2238, %v2235
    %v2266 = vpack.c.b16 %v2239, %v2236
    %v2267 = vpack.c.b16 %v2240, %v2237
    %v2268 = vpack.c.b16 %v2244, %v2241
    %v2269 = vpack.c.b16 %v2245, %v2242
    %v2270 = vpack.c.b16 %v2246, %v2243
    %2295 = vmatprep.subr.bf16.mxu0 %v2269
    %2296 = vmatpush1.bf16.msra.mxu0 %v2268
    %2297 = vmatprep.subr.bf16.mxu0 %v2266
    %2298 = vmatpush1.bf16.msra.mxu0 %v2265
    %2299 = vmatprep.subr.bf16.mxu0 %v2263
    %2300 = vmatpush1.bf16.msra.mxu0 %v2262
    %2301 = vmatprep.subr.bf16.mxu0 %v2260
    %2302 = vmatpush1.bf16.msra.mxu0 %v2259
    %2303 = vmatprep.subr.bf16.mxu0 %v2257
    %2304 = vmatpush1.bf16.msra.mxu0 %v2256
    %2305 = vmatprep.subr.bf16.mxu0 %v2254
    %2306 = vmatpush1.bf16.msra.mxu0 %v2253
    %2307 = vmatprep.subr.bf16.mxu0 %v2251
    %2308 = vmatpush1.bf16.msra.mxu0 %v2250
    %2309 = vmatprep.subr.bf16.mxu0 %v2248
    %2310 = vmatpush1.bf16.msra.mxu0 %v2247
    %2311 = vmatprep.subr.bf16.mxu0 0
    %2312 = vmatpush2.bf16.msra.mxu0 0
    %2313 = vmatprep.subr.bf16.mxu0 0
    %2314 = vmatpush2.bf16.msra.mxu0 0
    %2315 = vmatprep.subr.bf16.mxu0 0
    %2316 = vmatpush2.bf16.msra.mxu0 0
    %2317 = vmatprep.subr.bf16.mxu0 0
    %2318 = vmatpush2.bf16.msra.mxu0 0
    %2319 = vmatprep.subr.bf16.mxu0 0
    %2320 = vmatpush2.bf16.msra.mxu0 0
    %2321 = vmatprep.subr.bf16.mxu0 0
    %2322 = vmatpush2.bf16.msra.mxu0 0
    %2323 = vmatprep.subr.bf16.mxu0 0
    %2324 = vmatpush2.bf16.msra.mxu0 0
    %2325 = vmatprep.subr.bf16.mxu0 0
    %2326 = vmatpush2.bf16.msra.mxu0 0
    %2327 = vmatprep.mubr.bf16.mxu0 0
    %2328 = vmatmul.mubr.bf16.gmra.mxu0 %v2114
    %v2329 = vpop.f32.mrf.mxu0
    %v2330 = vadd.f32 %v2155, %v2329
    %v2331 = vpop.f32.mrf.mxu0
    %v2332 = vadd.f32 %v2159, %v2331
    %v2333 = vpop.f32.mrf.mxu0
    %v2334 = vadd.f32 %v2155, %v2333
    %v2335 = vpop.f32.mrf.mxu0
    %v2336 = vadd.f32 %v2159, %v2335
    %2337 = vmatprep.mubr.bf16.mxu0 0
    %2338 = vmatmul.mubr.bf16.gmra.mxu0 %v2115
    %v2339 = vpop.f32.mrf.mxu0
    %v2340 = vadd.f32 %v2155, %v2339
    %v2341 = vpop.f32.mrf.mxu0
    %v2342 = vadd.f32 %v2159, %v2341
    %v2343 = vpop.f32.mrf.mxu0
    %v2344 = vadd.f32 %v2155, %v2343
    %v2345 = vpop.f32.mrf.mxu0
    %v2346 = vadd.f32 %v2159, %v2345
    %2347 = vdwg.mxu0
    %2348 = vmatprep.subr.bf16.mxu0 0
    %2349 = vmatpush1.bf16.msra.mxu0 %v2270
    %2350 = vmatprep.subr.bf16.mxu0 0
    %2351 = vmatpush1.bf16.msra.mxu0 %v2267
    %2352 = vmatprep.subr.bf16.mxu0 0
    %2353 = vmatpush1.bf16.msra.mxu0 %v2264
    %2354 = vmatprep.subr.bf16.mxu0 0
    %2355 = vmatpush1.bf16.msra.mxu0 %v2261
    %2356 = vmatprep.subr.bf16.mxu0 0
    %2357 = vmatpush1.bf16.msra.mxu0 %v2258
    %2358 = vmatprep.subr.bf16.mxu0 0
    %2359 = vmatpush1.bf16.msra.mxu0 %v2255
    %2360 = vmatprep.subr.bf16.mxu0 0
    %2361 = vmatpush1.bf16.msra.mxu0 %v2252
    %2362 = vmatprep.subr.bf16.mxu0 0
    %2363 = vmatpush1.bf16.msra.mxu0 %v2249
    %2364 = vmatprep.subr.bf16.mxu0 0
    %2365 = vmatpush2.bf16.msra.mxu0 0
    %2366 = vmatprep.subr.bf16.mxu0 0
    %2367 = vmatpush2.bf16.msra.mxu0 0
    %2368 = vmatprep.subr.bf16.mxu0 0
    %2369 = vmatpush2.bf16.msra.mxu0 0
    %2370 = vmatprep.subr.bf16.mxu0 0
    %2371 = vmatpush2.bf16.msra.mxu0 0
    %2372 = vmatprep.subr.bf16.mxu0 0
    %2373 = vmatpush2.bf16.msra.mxu0 0
    %2374 = vmatprep.subr.bf16.mxu0 0
    %2375 = vmatpush2.bf16.msra.mxu0 0
    %2376 = vmatprep.subr.bf16.mxu0 0
    %2377 = vmatpush2.bf16.msra.mxu0 0
    %2378 = vmatprep.subr.bf16.mxu0 0
    %2379 = vmatpush2.bf16.msra.mxu0 0
    %2380 = vmatprep.mubr.bf16.mxu0 0
    %2381 = vmatmul.mubr.bf16.gmra.mxu0 %v2114
    %v2382 = vpop.f32.mrf.mxu0
    %v2383 = vadd.f32 %v2163, %v2382
    %v2384 = vpop.f32.mrf.mxu0
    %v2385 = vpop.f32.mrf.mxu0
    %v2386 = vadd.f32 %v2163, %v2385
    %v2387 = vpop.f32.mrf.mxu0
    %2388 = vmatprep.mubr.bf16.mxu0 0
    %2389 = vmatmul.mubr.bf16.gmra.mxu0 %v2115
    %v2390 = vpop.f32.mrf.mxu0
    %v2391 = vadd.f32 %v2163, %v2390
    %v2392 = vpop.f32.mrf.mxu0
    %v2393 = vpop.f32.mrf.mxu0
    %v2394 = vadd.f32 %v2163, %v2393
    %v2395 = vpop.f32.mrf.mxu0
    %2396 = vdwg.mxu0
    %v2397 = vpack.c.bf16 %v2334, %v2330
    %v2398 = vpack.c.bf16 %v2344, %v2340
    %v2399 = vpack.c.bf16 %v2336, %v2332
    %v2400 = vpack.c.bf16 %v2346, %v2342
    %v2401 = vpack.c.bf16 %v2386, %v2383
    %v2402 = vpack.c.bf16 %v2394, %v2391
    %v2403 = vmul.bf16 %v2399, %v672
    %v2404 = vmul.bf16 %v2399, %v673
    %v2405 = vmul.bf16 %v2399, %v674
    %v2406 = vmul.bf16 %v2399, %v675
    %v2407 = vmul.bf16 %v2399, %v676
    %v2408 = vmul.bf16 %v2399, %v677
    %v2409 = vmul.bf16 %v2399, %v678
    %v2410 = vmul.bf16 %v2399, %v679
    %v2411 = vmul.bf16 %v2400, %v672
    %v2412 = vmul.bf16 %v2400, %v673
    %v2413 = vmul.bf16 %v2400, %v674
    %v2414 = vmul.bf16 %v2400, %v675
    %v2415 = vmul.bf16 %v2400, %v676
    %v2416 = vmul.bf16 %v2400, %v677
    %v2417 = vmul.bf16 %v2400, %v678
    %v2418 = vmul.bf16 %v2400, %v679
    %v2419 = vmul.bf16 %v2401, %v672
    %v2420 = vmul.bf16 %v2401, %v673
    %v2421 = vmul.bf16 %v2401, %v674
    %v2422 = vmul.bf16 %v2401, %v675
    %v2423 = vmul.bf16 %v2401, %v676
    %v2424 = vmul.bf16 %v2401, %v677
    %v2425 = vmul.bf16 %v2401, %v678
    %v2426 = vmul.bf16 %v2401, %v679
    %v2427 = vmul.bf16 %v2402, %v672
    %v2428 = vmul.bf16 %v2402, %v673
    %v2429 = vmul.bf16 %v2402, %v674
    %v2430 = vmul.bf16 %v2402, %v675
    %v2431 = vmul.bf16 %v2402, %v676
    %v2432 = vmul.bf16 %v2402, %v677
    %v2433 = vmul.bf16 %v2402, %v678
    %v2434 = vmul.bf16 %v2402, %v679
    %2435 = vmatprep.subr.bf16.mxu0 0
    %2436 = vmatpush1.bf16.xpose.msra.mxu0 %v2410
    %2437 = vmatprep.subr.bf16.mxu0 0
    %2438 = vmatpush1.bf16.xpose.msra.mxu0 %v2409
    %2439 = vmatprep.subr.bf16.mxu0 0
    %2440 = vmatpush1.bf16.xpose.msra.mxu0 %v2408
    %2441 = vmatprep.subr.bf16.mxu0 0
    %2442 = vmatpush1.bf16.xpose.msra.mxu0 %v2407
    %2443 = vmatprep.subr.bf16.mxu0 0
    %2444 = vmatpush1.bf16.xpose.msra.mxu0 %v2406
    %2445 = vmatprep.subr.bf16.mxu0 0
    %2446 = vmatpush1.bf16.xpose.msra.mxu0 %v2405
    %2447 = vmatprep.subr.bf16.mxu0 0
    %2448 = vmatpush1.bf16.xpose.msra.mxu0 %v2404
    %2449 = vmatprep.subr.bf16.mxu0 0
    %2450 = vmatpush1.bf16.xpose.msra.mxu0 %v2403
    %2451 = vmatprep.subr.bf16.mxu0 0
    %2452 = vmatpush2.bf16.xpose.msra.mxu0 %v2418
    %2453 = vmatprep.subr.bf16.mxu0 0
    %2454 = vmatpush2.bf16.xpose.msra.mxu0 %v2417
    %2455 = vmatprep.subr.bf16.mxu0 0
    %2456 = vmatpush2.bf16.xpose.msra.mxu0 %v2416
    %2457 = vmatprep.subr.bf16.mxu0 0
    %2458 = vmatpush2.bf16.xpose.msra.mxu0 %v2415
    %2459 = vmatprep.subr.bf16.mxu0 0
    %2460 = vmatpush2.bf16.xpose.msra.mxu0 %v2414
    %2461 = vmatprep.subr.bf16.mxu0 0
    %2462 = vmatpush2.bf16.xpose.msra.mxu0 %v2413
    %2463 = vmatprep.subr.bf16.mxu0 0
    %2464 = vmatpush2.bf16.xpose.msra.mxu0 %v2412
    %2465 = vmatprep.subr.bf16.mxu0 0
    %2466 = vmatpush2.bf16.xpose.msra.mxu0 %v2411
    %2467 = vmatprep.mubr.bf16.mxu0 0
    %2468 = vmatmul.mubr.bf16.gmra.mxu0 %v2397
    %v2469 = vpop.f32.mrf.mxu0
    %v2470 = vadd.f32 %v720, %v2469
    %v2471 = vpop.f32.mrf.mxu0
    %v2472 = vadd.f32 %v721, %v2471
    %v2473 = vpop.f32.mrf.mxu0
    %v2474 = vadd.f32 %v722, %v2473
    %v2475 = vpop.f32.mrf.mxu0
    %v2476 = vadd.f32 %v723, %v2475
    %2477 = vmatprep.mubr.bf16.mxu0 0
    %2478 = vmatmul.mubr.bf16.gmra.mxu0 %v2398
    %v2479 = vpop.f32.mrf.mxu0
    %v2480 = vadd.f32 %v724, %v2479
    %v2481 = vpop.f32.mrf.mxu0
    %v2482 = vadd.f32 %v725, %v2481
    %v2483 = vpop.f32.mrf.mxu0
    %v2484 = vadd.f32 %v726, %v2483
    %v2485 = vpop.f32.mrf.mxu0
    %v2486 = vadd.f32 %v727, %v2485
    %2487 = vdwg.mxu0
    %v2488 = vmax.f32 %v2470, %v2472
    %2489 = vmax.xlane.f32.xlu0 %v2488
    %v2490 = vpop.xlane.xlu0 %2489
    %v2491 = vmax.f32 %v2474, %v2476
    %2492 = vmax.xlane.f32.xlu0 %v2491
    %v2493 = vpop.xlane.xlu0 %2492
    %v2494 = vmax.f32 %v2480, %v2482
    %2495 = vmax.xlane.f32.xlu0 %v2494
    %v2496 = vpop.xlane.xlu0 %2495
    %v2497 = vmax.f32 %v2484, %v2486
    %2498 = vmax.xlane.f32.xlu0 %v2497
    %v2499 = vpop.xlane.xlu0 %2498
    %v2500 = vsub.f32 %v2470, %v2490
    %v2501 = vsub.f32 %v2472, %v2490
    %v2502 = vsub.f32 %v2474, %v2493
    %v2503 = vsub.f32 %v2476, %v2493
    %v2504 = vsub.f32 %v2480, %v2496
    %v2505 = vsub.f32 %v2482, %v2496
    %v2506 = vsub.f32 %v2484, %v2499
    %v2507 = vsub.f32 %v2486, %v2499
    %v2508 = vmul.f32 %v2500, 1.442695
    %v2509 = vpow.pop %v2508
    %v2510 = vmul.f32 %v2501, 1.442695
    %v2511 = vpow.pop %v2510
    %v2512 = vmul.f32 %v2502, 1.442695
    %v2513 = vpow.pop %v2512
    %v2514 = vmul.f32 %v2503, 1.442695
    %v2515 = vpow.pop %v2514
    %v2516 = vmul.f32 %v2504, 1.442695
    %v2517 = vpow.pop %v2516
    %v2518 = vmul.f32 %v2505, 1.442695
    %v2519 = vpow.pop %v2518
    %v2520 = vmul.f32 %v2506, 1.442695
    %v2521 = vpow.pop %v2520
    %v2522 = vmul.f32 %v2507, 1.442695
    %v2523 = vpow.pop %v2522
    %v2524 = vpack.c.bf16 %v2513, %v2509
    %v2525 = vpack.c.bf16 %v2515, %v2511
    %v2526 = vpack.c.bf16 %v2521, %v2517
    %v2527 = vpack.c.bf16 %v2523, %v2519
    %2528 = vmatprep.subr.bf16.mxu0 %v964
    %2529 = vmatpush1.bf16.msra.mxu0 %v963
    %2530 = vmatprep.subr.bf16.mxu0 %v962
    %2531 = vmatpush1.bf16.msra.mxu0 %v961
    %2532 = vmatprep.subr.bf16.mxu0 %v960
    %2533 = vmatpush1.bf16.msra.mxu0 %v959
    %2534 = vmatprep.subr.bf16.mxu0 %v958
    %2535 = vmatpush1.bf16.msra.mxu0 %v957
    %2536 = vmatprep.subr.bf16.mxu0 %v956
    %2537 = vmatpush1.bf16.msra.mxu0 %v955
    %2538 = vmatprep.subr.bf16.mxu0 %v954
    %2539 = vmatpush1.bf16.msra.mxu0 %v953
    %2540 = vmatprep.subr.bf16.mxu0 %v952
    %2541 = vmatpush1.bf16.msra.mxu0 %v951
    %2542 = vmatprep.subr.bf16.mxu0 %v950
    %2543 = vmatpush1.bf16.msra.mxu0 %v949
    %2544 = vmatprep.subr.bf16.mxu0 %v980
    %2545 = vmatpush2.bf16.msra.mxu0 %v979
    %2546 = vmatprep.subr.bf16.mxu0 %v978
    %2547 = vmatpush2.bf16.msra.mxu0 %v977
    %2548 = vmatprep.subr.bf16.mxu0 %v976
    %2549 = vmatpush2.bf16.msra.mxu0 %v975
    %2550 = vmatprep.subr.bf16.mxu0 %v974
    %2551 = vmatpush2.bf16.msra.mxu0 %v973
    %2552 = vmatprep.subr.bf16.mxu0 %v972
    %2553 = vmatpush2.bf16.msra.mxu0 %v971
    %2554 = vmatprep.subr.bf16.mxu0 %v970
    %2555 = vmatpush2.bf16.msra.mxu0 %v969
    %2556 = vmatprep.subr.bf16.mxu0 %v968
    %2557 = vmatpush2.bf16.msra.mxu0 %v967
    %2558 = vmatprep.subr.bf16.mxu0 %v966
    %2559 = vmatpush2.bf16.msra.mxu0 %v965
    %2560 = vmatprep.mubr.bf16.mxu0 %v2525
    %2561 = vmatmul.mubr.bf16.gmra.mxu0 %v2524
    %v2562 = vpop.f32.mrf.mxu0
    %v2563 = vadd.f32 0.0, %v2562
    %v2564 = vpop.f32.mrf.mxu0
    %v2565 = vadd.f32 0.0, %v2564
    %v2566 = vpop.f32.mrf.mxu0
    %v2567 = vadd.f32 0.0, %v2566
    %v2568 = vpop.f32.mrf.mxu0
    %v2569 = vadd.f32 0.0, %v2568
    %2570 = vmatprep.mubr.bf16.mxu0 %v2527
    %2571 = vmatmul.mubr.bf16.gmra.mxu0 %v2526
    %v2572 = vpop.f32.mrf.mxu0
    %v2573 = vadd.f32 0.0, %v2572
    %v2574 = vpop.f32.mrf.mxu0
    %v2575 = vadd.f32 0.0, %v2574
    %v2576 = vpop.f32.mrf.mxu0
    %v2577 = vadd.f32 0.0, %v2576
    %v2578 = vpop.f32.mrf.mxu0
    %v2579 = vadd.f32 0.0, %v2578
    %2580 = vdwg.mxu0
    %v2581 = vmax.f32 %v2563, 1e-20
    %v2582 = vmax.f32 %v2565, 1e-20
    %v2583 = vmax.f32 %v2567, 1e-20
    %v2584 = vmax.f32 %v2569, 1e-20
    %v2585 = vmax.f32 %v2573, 1e-20
    %v2586 = vmax.f32 %v2575, 1e-20
    %v2587 = vmax.f32 %v2577, 1e-20
    %v2588 = vmax.f32 %v2579, 1e-20
    %v2589 = vrcp.pop %v2581
    %v2590 = vrcp.pop %v2582
    %v2591 = vrcp.pop %v2583
    %v2592 = vrcp.pop %v2584
    %v2593 = vrcp.pop %v2585
    %v2594 = vrcp.pop %v2586
    %v2595 = vrcp.pop %v2587
    %v2596 = vrcp.pop %v2588
    %v2597 = vmul.f32 %v2509, %v2589
    %v2598 = vmul.f32 %v2511, %v2590
    %v2599 = vmul.f32 %v2513, %v2591
    %v2600 = vmul.f32 %v2515, %v2592
    %v2601 = vmul.f32 %v2517, %v2593
    %v2602 = vmul.f32 %v2519, %v2594
    %v2603 = vmul.f32 %v2521, %v2595
    %v2604 = vmul.f32 %v2523, %v2596
    %v2605 = vpack.c.bf16 %v2599, %v2597
    %v2606 = vpack.c.bf16 %v2600, %v2598
    %v2607 = vpack.c.bf16 %v2603, %v2601
    %v2608 = vpack.c.bf16 %v2604, %v2602
    %2609 = vmatprep.subr.bf16.mxu0 0
    %2610 = vmatpush1.bf16.msra.mxu0 %v2426
    %2611 = vmatprep.subr.bf16.mxu0 0
    %2612 = vmatpush1.bf16.msra.mxu0 %v2425
    %2613 = vmatprep.subr.bf16.mxu0 0
    %2614 = vmatpush1.bf16.msra.mxu0 %v2424
    %2615 = vmatprep.subr.bf16.mxu0 0
    %2616 = vmatpush1.bf16.msra.mxu0 %v2423
    %2617 = vmatprep.subr.bf16.mxu0 0
    %2618 = vmatpush1.bf16.msra.mxu0 %v2422
    %2619 = vmatprep.subr.bf16.mxu0 0
    %2620 = vmatpush1.bf16.msra.mxu0 %v2421
    %2621 = vmatprep.subr.bf16.mxu0 0
    %2622 = vmatpush1.bf16.msra.mxu0 %v2420
    %2623 = vmatprep.subr.bf16.mxu0 0
    %2624 = vmatpush1.bf16.msra.mxu0 %v2419
    %2625 = vmatprep.subr.bf16.mxu0 0
    %2626 = vmatpush2.bf16.msra.mxu0 %v2434
    %2627 = vmatprep.subr.bf16.mxu0 0
    %2628 = vmatpush2.bf16.msra.mxu0 %v2433
    %2629 = vmatprep.subr.bf16.mxu0 0
    %2630 = vmatpush2.bf16.msra.mxu0 %v2432
    %2631 = vmatprep.subr.bf16.mxu0 0
    %2632 = vmatpush2.bf16.msra.mxu0 %v2431
    %2633 = vmatprep.subr.bf16.mxu0 0
    %2634 = vmatpush2.bf16.msra.mxu0 %v2430
    %2635 = vmatprep.subr.bf16.mxu0 0
    %2636 = vmatpush2.bf16.msra.mxu0 %v2429
    %2637 = vmatprep.subr.bf16.mxu0 0
    %2638 = vmatpush2.bf16.msra.mxu0 %v2428
    %2639 = vmatprep.subr.bf16.mxu0 0
    %2640 = vmatpush2.bf16.msra.mxu0 %v2427
    %2641 = vmatprep.mubr.bf16.mxu0 %v2606
    %2642 = vmatmul.mubr.bf16.gmra.mxu0 %v2605
    %v2643 = vpop.f32.mrf.mxu0
    %v2644 = vadd.f32 0.0, %v2643
    %v2645 = vpop.f32.mrf.mxu0
    %v2646 = vpop.f32.mrf.mxu0
    %v2647 = vadd.f32 0.0, %v2646
    %v2648 = vpop.f32.mrf.mxu0
    %2649 = vmatprep.mubr.bf16.mxu0 %v2608
    %2650 = vmatmul.mubr.bf16.gmra.mxu0 %v2607
    %v2651 = vpop.f32.mrf.mxu0
    %v2652 = vadd.f32 0.0, %v2651
    %v2653 = vpop.f32.mrf.mxu0
    %v2654 = vpop.f32.mrf.mxu0
    %v2655 = vadd.f32 0.0, %v2654
    %v2656 = vpop.f32.mrf.mxu0
    %2657 = vdwg.mxu0
    %v2658 = vpack.c.bf16 %v2647, %v2644
    %v2659 = vpack.c.bf16 %v2655, %v2652
    %s2660 = scalar_lea.vmem [#allocation13], 64
    %v2661 = vld [vmem:[%s2660] sm:$0xf]
    %v2662 = vld [vmem:[%s2660 + $0x4] sm:$0xf]
    %v2663 = vld [vmem:[%s2660 + $0x8] sm:$0xf]
    %v2664 = vld [vmem:[%s2660 + $0xc] sm:$0xf]
    %v2665 = vld [vmem:[%s2660 + $0x10] sm:$0xf]
    %v2666 = vld [vmem:[%s2660 + $0x14] sm:$0xf]
    %v2667 = vld [vmem:[%s2660 + $0x18] sm:$0xf]
    %v2668 = vld [vmem:[%s2660 + $0x1c] sm:$0xf]
    %v2669 = vld [vmem:[%s2660 + $0x20] sm:$0xf]
    %v2670 = vld [vmem:[%s2660 + $0x24] sm:$0xf]
    %v2671 = vld [vmem:[%s2660 + $0x28] sm:$0xf]
    %v2672 = vld [vmem:[%s2660 + $0x2c] sm:$0xf]
    %v2673 = vld [vmem:[%s2660 + $0x30] sm:$0xf]
    %v2674 = vld [vmem:[%s2660 + $0x34] sm:$0xf]
    %v2675 = vld [vmem:[%s2660 + $0x38] sm:$0xf]
    %v2676 = vld [vmem:[%s2660 + $0x3c] sm:$0xf]
    %s2677 = scalar_lea.vmem [#allocation14], 1
    %v2678 = vld [vmem:[%s2677] sm:$0x1]
    %v2680 = vlaneseq
    %v2681 = vshrl.u32 %v2680, 7
    %v2682 = vsub.s32 0, %v2681
    %v2683 = vrot.slane %v2678, %v2682
    %v2701 = vunpack.c.l.b16 %v2661
    %v2702 = vunpack.c.l.b16 %v2662
    %v2703 = vunpack.c.l.b16 %v2663
    %v2704 = vunpack.c.l.b16 %v2664
    %v2705 = vunpack.c.l.b16 %v2665
    %v2706 = vunpack.c.l.b16 %v2666
    %v2707 = vunpack.c.l.b16 %v2667
    %v2708 = vunpack.c.l.b16 %v2668
    %v2709 = vunpack.c.l.b16 %v2669
    %v2710 = vunpack.c.l.b16 %v2670
    %v2711 = vunpack.c.l.b16 %v2671
    %v2712 = vunpack.c.l.b16 %v2672
    %v2713 = vunpack.c.l.b16 %v2673
    %v2714 = vunpack.c.l.b16 %v2674
    %v2715 = vunpack.c.l.b16 %v2675
    %v2716 = vunpack.c.l.b16 %v2676
    %v2717 = vpack.c.b16 %v2702, %v2701
    %v2718 = vpack.c.b16 %v2704, %v2703
    %v2719 = vpack.c.b16 %v2706, %v2705
    %v2720 = vpack.c.b16 %v2708, %v2707
    %v2721 = vpack.c.b16 %v2710, %v2709
    %v2722 = vpack.c.b16 %v2712, %v2711
    %v2723 = vpack.c.b16 %v2714, %v2713
    %v2724 = vpack.c.b16 %v2716, %v2715
    %2733 = vmatprep.subr.bf16.mxu0 0
    %2734 = vmatpush1.bf16.msra.mxu0 %v2724
    %2735 = vmatprep.subr.bf16.mxu0 0
    %2736 = vmatpush1.bf16.msra.mxu0 %v2723
    %2737 = vmatprep.subr.bf16.mxu0 0
    %2738 = vmatpush1.bf16.msra.mxu0 %v2722
    %2739 = vmatprep.subr.bf16.mxu0 0
    %2740 = vmatpush1.bf16.msra.mxu0 %v2721
    %2741 = vmatprep.subr.bf16.mxu0 0
    %2742 = vmatpush1.bf16.msra.mxu0 %v2720
    %2743 = vmatprep.subr.bf16.mxu0 0
    %2744 = vmatpush1.bf16.msra.mxu0 %v2719
    %2745 = vmatprep.subr.bf16.mxu0 0
    %2746 = vmatpush1.bf16.msra.mxu0 %v2718
    %2747 = vmatprep.subr.bf16.mxu0 0
    %2748 = vmatpush1.bf16.msra.mxu0 %v2717
    %2749 = vmatprep.subr.bf16.mxu0 0
    %2750 = vmatpush2.bf16.msra.mxu0 0
    %2751 = vmatprep.subr.bf16.mxu0 0
    %2752 = vmatpush2.bf16.msra.mxu0 0
    %2753 = vmatprep.subr.bf16.mxu0 0
    %2754 = vmatpush2.bf16.msra.mxu0 0
    %2755 = vmatprep.subr.bf16.mxu0 0
    %2756 = vmatpush2.bf16.msra.mxu0 0
    %2757 = vmatprep.subr.bf16.mxu0 0
    %2758 = vmatpush2.bf16.msra.mxu0 0
    %2759 = vmatprep.subr.bf16.mxu0 0
    %2760 = vmatpush2.bf16.msra.mxu0 0
    %2761 = vmatprep.subr.bf16.mxu0 0
    %2762 = vmatpush2.bf16.msra.mxu0 0
    %2763 = vmatprep.subr.bf16.mxu0 0
    %2764 = vmatpush2.bf16.msra.mxu0 0
    %2765 = vmatprep.mubr.bf16.mxu0 0
    %2766 = vmatmul.mubr.bf16.gmra.mxu0 %v2658
    %v2767 = vpop.f32.mrf.mxu0
    %v2768 = vadd.f32 %v2683, %v2767
    %v2769 = vpop.f32.mrf.mxu0
    %v2770 = vpop.f32.mrf.mxu0
    %v2771 = vadd.f32 %v2683, %v2770
    %v2772 = vpop.f32.mrf.mxu0
    %2773 = vmatprep.mubr.bf16.mxu0 0
    %2774 = vmatmul.mubr.bf16.gmra.mxu0 %v2659
    %v2775 = vpop.f32.mrf.mxu0
    %v2776 = vadd.f32 %v2683, %v2775
    %v2777 = vpop.f32.mrf.mxu0
    %v2778 = vpop.f32.mrf.mxu0
    %v2779 = vadd.f32 %v2683, %v2778
    %v2780 = vpop.f32.mrf.mxu0
    %2781 = vdwg.mxu0
    %v2782 = vadd.f32 %v2042, %v2768
    %v2783 = vadd.f32 %v2043, %v2771
    %v2784 = vadd.f32 %v2044, %v2776
    %v2785 = vadd.f32 %v2045, %v2779
    %s2786 = scalar_lea.vmem %s11, 1
    %v2787 = vld [vmem:[%s2786] sm:$0x1]
    %s2788 = scalar_lea.vmem %s12, 1
    %v2789 = vld [vmem:[%s2788] sm:$0x1]
    %2790 = vadd.xlane.f32.xlu0 %v2782
    %v2791 = vpop.xlane.xlu0 %2790
    %2792 = vadd.xlane.f32.xlu0 %v2783
    %v2793 = vpop.xlane.xlu0 %2792
    %2794 = vadd.xlane.f32.xlu0 %v2784
    %v2795 = vpop.xlane.xlu0 %2794
    %2796 = vadd.xlane.f32.xlu0 %v2785
    %v2797 = vpop.xlane.xlu0 %2796
    %v2798 = vmul.f32 %v2791, %v280
    %v2799 = vmul.f32 %v2793, %v280
    %v2800 = vmul.f32 %v2795, %v280
    %v2801 = vmul.f32 %v2797, %v280
    %v2802 = vsub.f32 %v2782, %v2798
    %v2803 = vsub.f32 %v2783, %v2799
    %v2804 = vsub.f32 %v2784, %v2800
    %v2805 = vsub.f32 %v2785, %v2801
    %v2806 = vmul.f32 %v2802, %v2802
    %v2807 = vmul.f32 %v2803, %v2803
    %v2808 = vmul.f32 %v2804, %v2804
    %v2809 = vmul.f32 %v2805, %v2805
    %2810 = vadd.xlane.f32.xlu0 %v2806
    %v2811 = vpop.xlane.xlu0 %2810
    %2812 = vadd.xlane.f32.xlu0 %v2807
    %v2813 = vpop.xlane.xlu0 %2812
    %2814 = vadd.xlane.f32.xlu0 %v2808
    %v2815 = vpop.xlane.xlu0 %2814
    %2816 = vadd.xlane.f32.xlu0 %v2809
    %v2817 = vpop.xlane.xlu0 %2816
    %v2818 = vmul.f32 %v2811, %v280
    %v2819 = vmul.f32 %v2813, %v280
    %v2820 = vmul.f32 %v2815, %v280
    %v2821 = vmul.f32 %v2817, %v280
    %v2822 = vadd.f32 %v2818, 1e-05
    %v2823 = vadd.f32 %v2819, 1e-05
    %v2824 = vadd.f32 %v2820, 1e-05
    %v2825 = vadd.f32 %v2821, 1e-05
    %v2826 = vrsqrt.pop %v2822
    %v2827 = vrsqrt.pop %v2823
    %v2828 = vrsqrt.pop %v2824
    %v2829 = vrsqrt.pop %v2825
    %v2830 = vmul.f32 %v2802, %v2826
    %v2831 = vmul.f32 %v2803, %v2827
    %v2832 = vmul.f32 %v2804, %v2828
    %v2833 = vmul.f32 %v2805, %v2829
    %v2835 = vlaneseq
    %v2836 = vshrl.u32 %v2835, 7
    %v2837 = vsub.s32 0, %v2836
    %v2838 = vrot.slane %v2787, %v2837
    %v2840 = vmul.f32 %v2830, %v2838
    %v2841 = vmul.f32 %v2831, %v2838
    %v2842 = vmul.f32 %v2832, %v2838
    %v2843 = vmul.f32 %v2833, %v2838
    %v2845 = vlaneseq
    %v2846 = vshrl.u32 %v2845, 7
    %v2847 = vsub.s32 0, %v2846
    %v2848 = vrot.slane %v2789, %v2847
    %v2850 = vadd.f32 %v2840, %v2848
    %v2851 = vadd.f32 %v2841, %v2848
    %v2852 = vadd.f32 %v2842, %v2848
    %v2853 = vadd.f32 %v2843, %v2848
    %v2854 = vpack.c.bf16 %v2851, %v2850
    %v2855 = vpack.c.bf16 %v2853, %v2852
    %s2856 = scalar_lea.vmem [#allocation17], 256
    %v2857 = vld [vmem:[%s2856] sm:$0xff]
    %v2858 = vld [vmem:[%s2856 + $0x8] sm:$0xff]
    %v2859 = vld [vmem:[%s2856 + $0x10] sm:$0xff]
    %v2860 = vld [vmem:[%s2856 + $0x18] sm:$0xff]
    %v2861 = vld [vmem:[%s2856 + $0x20] sm:$0xff]
    %v2862 = vld [vmem:[%s2856 + $0x28] sm:$0xff]
    %v2863 = vld [vmem:[%s2856 + $0x30] sm:$0xff]
    %v2864 = vld [vmem:[%s2856 + $0x38] sm:$0xff]
    %v2865 = vld [vmem:[%s2856 + $0x40] sm:$0xff]
    %v2866 = vld [vmem:[%s2856 + $0x48] sm:$0xff]
    %v2867 = vld [vmem:[%s2856 + $0x50] sm:$0xff]
    %v2868 = vld [vmem:[%s2856 + $0x58] sm:$0xff]
    %v2869 = vld [vmem:[%s2856 + $0x60] sm:$0xff]
    %v2870 = vld [vmem:[%s2856 + $0x68] sm:$0xff]
    %v2871 = vld [vmem:[%s2856 + $0x70] sm:$0xff]
    %v2872 = vld [vmem:[%s2856 + $0x78] sm:$0xff]
    %v2873 = vld [vmem:[%s2856 + $0x80] sm:$0xff]
    %v2874 = vld [vmem:[%s2856 + $0x88] sm:$0xff]
    %v2875 = vld [vmem:[%s2856 + $0x90] sm:$0xff]
    %v2876 = vld [vmem:[%s2856 + $0x98] sm:$0xff]
    %v2877 = vld [vmem:[%s2856 + $0xa0] sm:$0xff]
    %v2878 = vld [vmem:[%s2856 + $0xa8] sm:$0xff]
    %v2879 = vld [vmem:[%s2856 + $0xb0] sm:$0xff]
    %v2880 = vld [vmem:[%s2856 + $0xb8] sm:$0xff]
    %v2881 = vld [vmem:[%s2856 + $0xc0] sm:$0xff]
    %v2882 = vld [vmem:[%s2856 + $0xc8] sm:$0xff]
    %v2883 = vld [vmem:[%s2856 + $0xd0] sm:$0xff]
    %v2884 = vld [vmem:[%s2856 + $0xd8] sm:$0xff]
    %v2885 = vld [vmem:[%s2856 + $0xe0] sm:$0xff]
    %v2886 = vld [vmem:[%s2856 + $0xe8] sm:$0xff]
    %v2887 = vld [vmem:[%s2856 + $0xf0] sm:$0xff]
    %v2888 = vld [vmem:[%s2856 + $0xf8] sm:$0xff]
    %s2889 = scalar_lea.vmem %s14, 4
    %v2890 = vld [vmem:[%s2889] sm:$0xf]
    %v2892 = vlaneseq
    %v2893 = vshrl.u32 %v2892, 7
    %v2894 = vsub.s32 0, %v2893
    %v2895 = vrot.slane %v2890, %v2894
    %v2896 = vlaneseq
    %v2897 = vshrl.u32 %v2896, 7
    %v2898 = vsub.s32 1, %v2897
    %v2899 = vrot.slane %v2890, %v2898
    %v2900 = vlaneseq
    %v2901 = vshrl.u32 %v2900, 7
    %v2902 = vsub.s32 2, %v2901
    %v2903 = vrot.slane %v2890, %v2902
    %v2904 = vlaneseq
    %v2905 = vshrl.u32 %v2904, 7
    %v2906 = vsub.s32 3, %v2905
    %v2907 = vrot.slane %v2890, %v2906
    %v2944 = vunpack.c.l.b16 %v2857
    %v2945 = vunpack.c.h.b16 %v2857
    %v2946 = vunpack.c.l.b16 %v2858
    %v2947 = vunpack.c.h.b16 %v2858
    %v2948 = vunpack.c.l.b16 %v2859
    %v2949 = vunpack.c.h.b16 %v2859
    %v2950 = vunpack.c.l.b16 %v2860
    %v2951 = vunpack.c.h.b16 %v2860
    %v2952 = vunpack.c.l.b16 %v2861
    %v2953 = vunpack.c.h.b16 %v2861
    %v2954 = vunpack.c.l.b16 %v2862
    %v2955 = vunpack.c.h.b16 %v2862
    %v2956 = vunpack.c.l.b16 %v2863
    %v2957 = vunpack.c.h.b16 %v2863
    %v2958 = vunpack.c.l.b16 %v2864
    %v2959 = vunpack.c.h.b16 %v2864
    %v2960 = vunpack.c.l.b16 %v2865
    %v2961 = vunpack.c.h.b16 %v2865
    %v2962 = vunpack.c.l.b16 %v2866
    %v2963 = vunpack.c.h.b16 %v2866
    %v2964 = vunpack.c.l.b16 %v2867
    %v2965 = vunpack.c.h.b16 %v2867
    %v2966 = vunpack.c.l.b16 %v2868
    %v2967 = vunpack.c.h.b16 %v2868
    %v2968 = vunpack.c.l.b16 %v2869
    %v2969 = vunpack.c.h.b16 %v2869
    %v2970 = vunpack.c.l.b16 %v2870
    %v2971 = vunpack.c.h.b16 %v2870
    %v2972 = vunpack.c.l.b16 %v2871
    %v2973 = vunpack.c.h.b16 %v2871
    %v2974 = vunpack.c.l.b16 %v2872
    %v2975 = vunpack.c.h.b16 %v2872
    %v2976 = vunpack.c.l.b16 %v2873
    %v2977 = vunpack.c.h.b16 %v2873
    %v2978 = vunpack.c.l.b16 %v2874
    %v2979 = vunpack.c.h.b16 %v2874
    %v2980 = vunpack.c.l.b16 %v2875
    %v2981 = vunpack.c.h.b16 %v2875
    %v2982 = vunpack.c.l.b16 %v2876
    %v2983 = vunpack.c.h.b16 %v2876
    %v2984 = vunpack.c.l.b16 %v2877
    %v2985 = vunpack.c.h.b16 %v2877
    %v2986 = vunpack.c.l.b16 %v2878
    %v2987 = vunpack.c.h.b16 %v2878
    %v2988 = vunpack.c.l.b16 %v2879
    %v2989 = vunpack.c.h.b16 %v2879
    %v2990 = vunpack.c.l.b16 %v2880
    %v2991 = vunpack.c.h.b16 %v2880
    %v2992 = vunpack.c.l.b16 %v2881
    %v2993 = vunpack.c.h.b16 %v2881
    %v2994 = vunpack.c.l.b16 %v2882
    %v2995 = vunpack.c.h.b16 %v2882
    %v2996 = vunpack.c.l.b16 %v2883
    %v2997 = vunpack.c.h.b16 %v2883
    %v2998 = vunpack.c.l.b16 %v2884
    %v2999 = vunpack.c.h.b16 %v2884
    %v3000 = vunpack.c.l.b16 %v2885
    %v3001 = vunpack.c.h.b16 %v2885
    %v3002 = vunpack.c.l.b16 %v2886
    %v3003 = vunpack.c.h.b16 %v2886
    %v3004 = vunpack.c.l.b16 %v2887
    %v3005 = vunpack.c.h.b16 %v2887
    %v3006 = vunpack.c.l.b16 %v2888
    %v3007 = vunpack.c.h.b16 %v2888
    %v3008 = vpack.c.b16 %v2948, %v2944
    %v3009 = vpack.c.b16 %v2949, %v2945
    %v3010 = vpack.c.b16 %v2950, %v2946
    %v3011 = vpack.c.b16 %v2951, %v2947
    %v3012 = vpack.c.b16 %v2956, %v2952
    %v3013 = vpack.c.b16 %v2957, %v2953
    %v3014 = vpack.c.b16 %v2958, %v2954
    %v3015 = vpack.c.b16 %v2959, %v2955
    %v3016 = vpack.c.b16 %v2964, %v2960
    %v3017 = vpack.c.b16 %v2965, %v2961
    %v3018 = vpack.c.b16 %v2966, %v2962
    %v3019 = vpack.c.b16 %v2967, %v2963
    %v3020 = vpack.c.b16 %v2972, %v2968
    %v3021 = vpack.c.b16 %v2973, %v2969
    %v3022 = vpack.c.b16 %v2974, %v2970
    %v3023 = vpack.c.b16 %v2975, %v2971
    %v3024 = vpack.c.b16 %v2980, %v2976
    %v3025 = vpack.c.b16 %v2981, %v2977
    %v3026 = vpack.c.b16 %v2982, %v2978
    %v3027 = vpack.c.b16 %v2983, %v2979
    %v3028 = vpack.c.b16 %v2988, %v2984
    %v3029 = vpack.c.b16 %v2989, %v2985
    %v3030 = vpack.c.b16 %v2990, %v2986
    %v3031 = vpack.c.b16 %v2991, %v2987
    %v3032 = vpack.c.b16 %v2996, %v2992
    %v3033 = vpack.c.b16 %v2997, %v2993
    %v3034 = vpack.c.b16 %v2998, %v2994
    %v3035 = vpack.c.b16 %v2999, %v2995
    %v3036 = vpack.c.b16 %v3004, %v3000
    %v3037 = vpack.c.b16 %v3005, %v3001
    %v3038 = vpack.c.b16 %v3006, %v3002
    %v3039 = vpack.c.b16 %v3007, %v3003
    %3072 = vmatprep.subr.bf16.mxu0 %v3037
    %3073 = vmatpush1.bf16.msra.mxu0 %v3036
    %3074 = vmatprep.subr.bf16.mxu0 %v3033
    %3075 = vmatpush1.bf16.msra.mxu0 %v3032
    %3076 = vmatprep.subr.bf16.mxu0 %v3029
    %3077 = vmatpush1.bf16.msra.mxu0 %v3028
    %3078 = vmatprep.subr.bf16.mxu0 %v3025
    %3079 = vmatpush1.bf16.msra.mxu0 %v3024
    %3080 = vmatprep.subr.bf16.mxu0 %v3021
    %3081 = vmatpush1.bf16.msra.mxu0 %v3020
    %3082 = vmatprep.subr.bf16.mxu0 %v3017
    %3083 = vmatpush1.bf16.msra.mxu0 %v3016
    %3084 = vmatprep.subr.bf16.mxu0 %v3013
    %3085 = vmatpush1.bf16.msra.mxu0 %v3012
    %3086 = vmatprep.subr.bf16.mxu0 %v3009
    %3087 = vmatpush1.bf16.msra.mxu0 %v3008
    %3088 = vmatprep.subr.bf16.mxu0 0
    %3089 = vmatpush2.bf16.msra.mxu0 0
    %3090 = vmatprep.subr.bf16.mxu0 0
    %3091 = vmatpush2.bf16.msra.mxu0 0
    %3092 = vmatprep.subr.bf16.mxu0 0
    %3093 = vmatpush2.bf16.msra.mxu0 0
    %3094 = vmatprep.subr.bf16.mxu0 0
    %3095 = vmatpush2.bf16.msra.mxu0 0
    %3096 = vmatprep.subr.bf16.mxu0 0
    %3097 = vmatpush2.bf16.msra.mxu0 0
    %3098 = vmatprep.subr.bf16.mxu0 0
    %3099 = vmatpush2.bf16.msra.mxu0 0
    %3100 = vmatprep.subr.bf16.mxu0 0
    %3101 = vmatpush2.bf16.msra.mxu0 0
    %3102 = vmatprep.subr.bf16.mxu0 0
    %3103 = vmatpush2.bf16.msra.mxu0 0
    %3104 = vmatprep.mubr.bf16.mxu0 0
    %3105 = vmatmul.mubr.bf16.gmra.mxu0 %v2854
    %v3106 = vpop.f32.mrf.mxu0
    %v3107 = vadd.f32 %v2895, %v3106
    %v3108 = vpop.f32.mrf.mxu0
    %v3109 = vadd.f32 %v2899, %v3108
    %v3110 = vpop.f32.mrf.mxu0
    %v3111 = vadd.f32 %v2895, %v3110
    %v3112 = vpop.f32.mrf.mxu0
    %v3113 = vadd.f32 %v2899, %v3112
    %3114 = vmatprep.mubr.bf16.mxu0 0
    %3115 = vmatmul.mubr.bf16.gmra.mxu0 %v2855
    %v3116 = vpop.f32.mrf.mxu0
    %v3117 = vadd.f32 %v2895, %v3116
    %v3118 = vpop.f32.mrf.mxu0
    %v3119 = vadd.f32 %v2899, %v3118
    %v3120 = vpop.f32.mrf.mxu0
    %v3121 = vadd.f32 %v2895, %v3120
    %v3122 = vpop.f32.mrf.mxu0
    %v3123 = vadd.f32 %v2899, %v3122
    %3124 = vdwg.mxu0
    %3125 = vmatprep.subr.bf16.mxu0 %v3039
    %3126 = vmatpush1.bf16.msra.mxu0 %v3038
    %3127 = vmatprep.subr.bf16.mxu0 %v3035
    %3128 = vmatpush1.bf16.msra.mxu0 %v3034
    %3129 = vmatprep.subr.bf16.mxu0 %v3031
    %3130 = vmatpush1.bf16.msra.mxu0 %v3030
    %3131 = vmatprep.subr.bf16.mxu0 %v3027
    %3132 = vmatpush1.bf16.msra.mxu0 %v3026
    %3133 = vmatprep.subr.bf16.mxu0 %v3023
    %3134 = vmatpush1.bf16.msra.mxu0 %v3022
    %3135 = vmatprep.subr.bf16.mxu0 %v3019
    %3136 = vmatpush1.bf16.msra.mxu0 %v3018
    %3137 = vmatprep.subr.bf16.mxu0 %v3015
    %3138 = vmatpush1.bf16.msra.mxu0 %v3014
    %3139 = vmatprep.subr.bf16.mxu0 %v3011
    %3140 = vmatpush1.bf16.msra.mxu0 %v3010
    %3141 = vmatprep.subr.bf16.mxu0 0
    %3142 = vmatpush2.bf16.msra.mxu0 0
    %3143 = vmatprep.subr.bf16.mxu0 0
    %3144 = vmatpush2.bf16.msra.mxu0 0
    %3145 = vmatprep.subr.bf16.mxu0 0
    %3146 = vmatpush2.bf16.msra.mxu0 0
    %3147 = vmatprep.subr.bf16.mxu0 0
    %3148 = vmatpush2.bf16.msra.mxu0 0
    %3149 = vmatprep.subr.bf16.mxu0 0
    %3150 = vmatpush2.bf16.msra.mxu0 0
    %3151 = vmatprep.subr.bf16.mxu0 0
    %3152 = vmatpush2.bf16.msra.mxu0 0
    %3153 = vmatprep.subr.bf16.mxu0 0
    %3154 = vmatpush2.bf16.msra.mxu0 0
    %3155 = vmatprep.subr.bf16.mxu0 0
    %3156 = vmatpush2.bf16.msra.mxu0 0
    %3157 = vmatprep.mubr.bf16.mxu0 0
    %3158 = vmatmul.mubr.bf16.gmra.mxu0 %v2854
    %v3159 = vpop.f32.mrf.mxu0
    %v3160 = vadd.f32 %v2903, %v3159
    %v3161 = vpop.f32.mrf.mxu0
    %v3162 = vadd.f32 %v2907, %v3161
    %v3163 = vpop.f32.mrf.mxu0
    %v3164 = vadd.f32 %v2903, %v3163
    %v3165 = vpop.f32.mrf.mxu0
    %v3166 = vadd.f32 %v2907, %v3165
    %3167 = vmatprep.mubr.bf16.mxu0 0
    %3168 = vmatmul.mubr.bf16.gmra.mxu0 %v2855
    %v3169 = vpop.f32.mrf.mxu0
    %v3170 = vadd.f32 %v2903, %v3169
    %v3171 = vpop.f32.mrf.mxu0
    %v3172 = vadd.f32 %v2907, %v3171
    %v3173 = vpop.f32.mrf.mxu0
    %v3174 = vadd.f32 %v2903, %v3173
    %v3175 = vpop.f32.mrf.mxu0
    %v3176 = vadd.f32 %v2907, %v3175
    %3177 = vdwg.mxu0
    %v3178 = vmax.f32 %v3107, 0.0
    %v3179 = vmax.f32 %v3109, 0.0
    %v3180 = vmax.f32 %v3160, 0.0
    %v3181 = vmax.f32 %v3162, 0.0
    %v3182 = vmax.f32 %v3111, 0.0
    %v3183 = vmax.f32 %v3113, 0.0
    %v3184 = vmax.f32 %v3164, 0.0
    %v3185 = vmax.f32 %v3166, 0.0
    %v3186 = vmax.f32 %v3117, 0.0
    %v3187 = vmax.f32 %v3119, 0.0
    %v3188 = vmax.f32 %v3170, 0.0
    %v3189 = vmax.f32 %v3172, 0.0
    %v3190 = vmax.f32 %v3121, 0.0
    %v3191 = vmax.f32 %v3123, 0.0
    %v3192 = vmax.f32 %v3174, 0.0
    %v3193 = vmax.f32 %v3176, 0.0
    %v3194 = vpack.c.bf16 %v3182, %v3178
    %v3195 = vpack.c.bf16 %v3183, %v3179
    %v3196 = vpack.c.bf16 %v3184, %v3180
    %v3197 = vpack.c.bf16 %v3185, %v3181
    %v3198 = vpack.c.bf16 %v3190, %v3186
    %v3199 = vpack.c.bf16 %v3191, %v3187
    %v3200 = vpack.c.bf16 %v3192, %v3188
    %v3201 = vpack.c.bf16 %v3193, %v3189
    %s3202 = scalar_lea.vmem [#allocation19], 256
    %v3203 = vld [vmem:[%s3202] sm:$0xf]
    %v3204 = vld [vmem:[%s3202 + $0x4] sm:$0xf]
    %v3205 = vld [vmem:[%s3202 + $0x8] sm:$0xf]
    %v3206 = vld [vmem:[%s3202 + $0xc] sm:$0xf]
    %v3207 = vld [vmem:[%s3202 + $0x10] sm:$0xf]
    %v3208 = vld [vmem:[%s3202 + $0x14] sm:$0xf]
    %v3209 = vld [vmem:[%s3202 + $0x18] sm:$0xf]
    %v3210 = vld [vmem:[%s3202 + $0x1c] sm:$0xf]
    %v3211 = vld [vmem:[%s3202 + $0x20] sm:$0xf]
    %v3212 = vld [vmem:[%s3202 + $0x24] sm:$0xf]
    %v3213 = vld [vmem:[%s3202 + $0x28] sm:$0xf]
    %v3214 = vld [vmem:[%s3202 + $0x2c] sm:$0xf]
    %v3215 = vld [vmem:[%s3202 + $0x30] sm:$0xf]
    %v3216 = vld [vmem:[%s3202 + $0x34] sm:$0xf]
    %v3217 = vld [vmem:[%s3202 + $0x38] sm:$0xf]
    %v3218 = vld [vmem:[%s3202 + $0x3c] sm:$0xf]
    %v3219 = vld [vmem:[%s3202 + $0x40] sm:$0xf]
    %v3220 = vld [vmem:[%s3202 + $0x44] sm:$0xf]
    %v3221 = vld [vmem:[%s3202 + $0x48] sm:$0xf]
    %v3222 = vld [vmem:[%s3202 + $0x4c] sm:$0xf]
    %v3223 = vld [vmem:[%s3202 + $0x50] sm:$0xf]
    %v3224 = vld [vmem:[%s3202 + $0x54] sm:$0xf]
    %v3225 = vld [vmem:[%s3202 + $0x58] sm:$0xf]
    %v3226 = vld [vmem:[%s3202 + $0x5c] sm:$0xf]
    %v3227 = vld [vmem:[%s3202 + $0x60] sm:$0xf]
    %v3228 = vld [vmem:[%s3202 + $0x64] sm:$0xf]
    %v3229 = vld [vmem:[%s3202 + $0x68] sm:$0xf]
    %v3230 = vld [vmem:[%s3202 + $0x6c] sm:$0xf]
    %v3231 = vld [vmem:[%s3202 + $0x70] sm:$0xf]
    %v3232 = vld [vmem:[%s3202 + $0x74] sm:$0xf]
    %v3233 = vld [vmem:[%s3202 + $0x78] sm:$0xf]
    %v3234 = vld [vmem:[%s3202 + $0x7c] sm:$0xf]
    %v3235 = vld [vmem:[%s3202 + $0x80] sm:$0xf]
    %v3236 = vld [vmem:[%s3202 + $0x84] sm:$0xf]
    %v3237 = vld [vmem:[%s3202 + $0x88] sm:$0xf]
    %v3238 = vld [vmem:[%s3202 + $0x8c] sm:$0xf]
    %v3239 = vld [vmem:[%s3202 + $0x90] sm:$0xf]
    %v3240 = vld [vmem:[%s3202 + $0x94] sm:$0xf]
    %v3241 = vld [vmem:[%s3202 + $0x98] sm:$0xf]
    %v3242 = vld [vmem:[%s3202 + $0x9c] sm:$0xf]
    %v3243 = vld [vmem:[%s3202 + $0xa0] sm:$0xf]
    %v3244 = vld [vmem:[%s3202 + $0xa4] sm:$0xf]
    %v3245 = vld [vmem:[%s3202 + $0xa8] sm:$0xf]
    %v3246 = vld [vmem:[%s3202 + $0xac] sm:$0xf]
    %v3247 = vld [vmem:[%s3202 + $0xb0] sm:$0xf]
    %v3248 = vld [vmem:[%s3202 + $0xb4] sm:$0xf]
    %v3249 = vld [vmem:[%s3202 + $0xb8] sm:$0xf]
    %v3250 = vld [vmem:[%s3202 + $0xbc] sm:$0xf]
    %v3251 = vld [vmem:[%s3202 + $0xc0] sm:$0xf]
    %v3252 = vld [vmem:[%s3202 + $0xc4] sm:$0xf]
    %v3253 = vld [vmem:[%s3202 + $0xc8] sm:$0xf]
    %v3254 = vld [vmem:[%s3202 + $0xcc] sm:$0xf]
    %v3255 = vld [vmem:[%s3202 + $0xd0] sm:$0xf]
    %v3256 = vld [vmem:[%s3202 + $0xd4] sm:$0xf]
    %v3257 = vld [vmem:[%s3202 + $0xd8] sm:$0xf]
    %v3258 = vld [vmem:[%s3202 + $0xdc] sm:$0xf]
    %v3259 = vld [vmem:[%s3202 + $0xe0] sm:$0xf]
    %v3260 = vld [vmem:[%s3202 + $0xe4] sm:$0xf]
    %v3261 = vld [vmem:[%s3202 + $0xe8] sm:$0xf]
    %v3262 = vld [vmem:[%s3202 + $0xec] sm:$0xf]
    %v3263 = vld [vmem:[%s3202 + $0xf0] sm:$0xf]
    %v3264 = vld [vmem:[%s3202 + $0xf4] sm:$0xf]
    %v3265 = vld [vmem:[%s3202 + $0xf8] sm:$0xf]
    %v3266 = vld [vmem:[%s3202 + $0xfc] sm:$0xf]
    %s3267 = scalar_lea.vmem [#allocation20], 1
    %v3268 = vld [vmem:[%s3267] sm:$0x1]
    %v3270 = vlaneseq
    %v3271 = vshrl.u32 %v3270, 7
    %v3272 = vsub.s32 0, %v3271
    %v3273 = vrot.slane %v3268, %v3272
    %v3339 = vunpack.c.l.b16 %v3203
    %v3340 = vunpack.c.l.b16 %v3204
    %v3341 = vunpack.c.l.b16 %v3205
    %v3342 = vunpack.c.l.b16 %v3206
    %v3343 = vunpack.c.l.b16 %v3207
    %v3344 = vunpack.c.l.b16 %v3208
    %v3345 = vunpack.c.l.b16 %v3209
    %v3346 = vunpack.c.l.b16 %v3210
    %v3347 = vunpack.c.l.b16 %v3211
    %v3348 = vunpack.c.l.b16 %v3212
    %v3349 = vunpack.c.l.b16 %v3213
    %v3350 = vunpack.c.l.b16 %v3214
    %v3351 = vunpack.c.l.b16 %v3215
    %v3352 = vunpack.c.l.b16 %v3216
    %v3353 = vunpack.c.l.b16 %v3217
    %v3354 = vunpack.c.l.b16 %v3218
    %v3355 = vunpack.c.l.b16 %v3219
    %v3356 = vunpack.c.l.b16 %v3220
    %v3357 = vunpack.c.l.b16 %v3221
    %v3358 = vunpack.c.l.b16 %v3222
    %v3359 = vunpack.c.l.b16 %v3223
    %v3360 = vunpack.c.l.b16 %v3224
    %v3361 = vunpack.c.l.b16 %v3225
    %v3362 = vunpack.c.l.b16 %v3226
    %v3363 = vunpack.c.l.b16 %v3227
    %v3364 = vunpack.c.l.b16 %v3228
    %v3365 = vunpack.c.l.b16 %v3229
    %v3366 = vunpack.c.l.b16 %v3230
    %v3367 = vunpack.c.l.b16 %v3231
    %v3368 = vunpack.c.l.b16 %v3232
    %v3369 = vunpack.c.l.b16 %v3233
    %v3370 = vunpack.c.l.b16 %v3234
    %v3371 = vunpack.c.l.b16 %v3235
    %v3372 = vunpack.c.l.b16 %v3236
    %v3373 = vunpack.c.l.b16 %v3237
    %v3374 = vunpack.c.l.b16 %v3238
    %v3375 = vunpack.c.l.b16 %v3239
    %v3376 = vunpack.c.l.b16 %v3240
    %v3377 = vunpack.c.l.b16 %v3241
    %v3378 = vunpack.c.l.b16 %v3242
    %v3379 = vunpack.c.l.b16 %v3243
    %v3380 = vunpack.c.l.b16 %v3244
    %v3381 = vunpack.c.l.b16 %v3245
    %v3382 = vunpack.c.l.b16 %v3246
    %v3383 = vunpack.c.l.b16 %v3247
    %v3384 = vunpack.c.l.b16 %v3248
    %v3385 = vunpack.c.l.b16 %v3249
    %v3386 = vunpack.c.l.b16 %v3250
    %v3387 = vunpack.c.l.b16 %v3251
    %v3388 = vunpack.c.l.b16 %v3252
    %v3389 = vunpack.c.l.b16 %v3253
    %v3390 = vunpack.c.l.b16 %v3254
    %v3391 = vunpack.c.l.b16 %v3255
    %v3392 = vunpack.c.l.b16 %v3256
    %v3393 = vunpack.c.l.b16 %v3257
    %v3394 = vunpack.c.l.b16 %v3258
    %v3395 = vunpack.c.l.b16 %v3259
    %v3396 = vunpack.c.l.b16 %v3260
    %v3397 = vunpack.c.l.b16 %v3261
    %v3398 = vunpack.c.l.b16 %v3262
    %v3399 = vunpack.c.l.b16 %v3263
    %v3400 = vunpack.c.l.b16 %v3264
    %v3401 = vunpack.c.l.b16 %v3265
    %v3402 = vunpack.c.l.b16 %v3266
    %v3403 = vpack.c.b16 %v3340, %v3339
    %v3404 = vpack.c.b16 %v3342, %v3341
    %v3405 = vpack.c.b16 %v3344, %v3343
    %v3406 = vpack.c.b16 %v3346, %v3345
    %v3407 = vpack.c.b16 %v3348, %v3347
    %v3408 = vpack.c.b16 %v3350, %v3349
    %v3409 = vpack.c.b16 %v3352, %v3351
    %v3410 = vpack.c.b16 %v3354, %v3353
    %v3411 = vpack.c.b16 %v3356, %v3355
    %v3412 = vpack.c.b16 %v3358, %v3357
    %v3413 = vpack.c.b16 %v3360, %v3359
    %v3414 = vpack.c.b16 %v3362, %v3361
    %v3415 = vpack.c.b16 %v3364, %v3363
    %v3416 = vpack.c.b16 %v3366, %v3365
    %v3417 = vpack.c.b16 %v3368, %v3367
    %v3418 = vpack.c.b16 %v3370, %v3369
    %v3419 = vpack.c.b16 %v3372, %v3371
    %v3420 = vpack.c.b16 %v3374, %v3373
    %v3421 = vpack.c.b16 %v3376, %v3375
    %v3422 = vpack.c.b16 %v3378, %v3377
    %v3423 = vpack.c.b16 %v3380, %v3379
    %v3424 = vpack.c.b16 %v3382, %v3381
    %v3425 = vpack.c.b16 %v3384, %v3383
    %v3426 = vpack.c.b16 %v3386, %v3385
    %v3427 = vpack.c.b16 %v3388, %v3387
    %v3428 = vpack.c.b16 %v3390, %v3389
    %v3429 = vpack.c.b16 %v3392, %v3391
    %v3430 = vpack.c.b16 %v3394, %v3393
    %v3431 = vpack.c.b16 %v3396, %v3395
    %v3432 = vpack.c.b16 %v3398, %v3397
    %v3433 = vpack.c.b16 %v3400, %v3399
    %v3434 = vpack.c.b16 %v3402, %v3401
    %3467 = vmatprep.subr.bf16.mxu0 0
    %3468 = vmatpush1.bf16.msra.mxu0 %v3410
    %3469 = vmatprep.subr.bf16.mxu0 0
    %3470 = vmatpush1.bf16.msra.mxu0 %v3409
    %3471 = vmatprep.subr.bf16.mxu0 0
    %3472 = vmatpush1.bf16.msra.mxu0 %v3408
    %3473 = vmatprep.subr.bf16.mxu0 0
    %3474 = vmatpush1.bf16.msra.mxu0 %v3407
    %3475 = vmatprep.subr.bf16.mxu0 0
    %3476 = vmatpush1.bf16.msra.mxu0 %v3406
    %3477 = vmatprep.subr.bf16.mxu0 0
    %3478 = vmatpush1.bf16.msra.mxu0 %v3405
    %3479 = vmatprep.subr.bf16.mxu0 0
    %3480 = vmatpush1.bf16.msra.mxu0 %v3404
    %3481 = vmatprep.subr.bf16.mxu0 0
    %3482 = vmatpush1.bf16.msra.mxu0 %v3403
    %3483 = vmatprep.subr.bf16.mxu0 0
    %3484 = vmatpush2.bf16.msra.mxu0 %v3418
    %3485 = vmatprep.subr.bf16.mxu0 0
    %3486 = vmatpush2.bf16.msra.mxu0 %v3417
    %3487 = vmatprep.subr.bf16.mxu0 0
    %3488 = vmatpush2.bf16.msra.mxu0 %v3416
    %3489 = vmatprep.subr.bf16.mxu0 0
    %3490 = vmatpush2.bf16.msra.mxu0 %v3415
    %3491 = vmatprep.subr.bf16.mxu0 0
    %3492 = vmatpush2.bf16.msra.mxu0 %v3414
    %3493 = vmatprep.subr.bf16.mxu0 0
    %3494 = vmatpush2.bf16.msra.mxu0 %v3413
    %3495 = vmatprep.subr.bf16.mxu0 0
    %3496 = vmatpush2.bf16.msra.mxu0 %v3412
    %3497 = vmatprep.subr.bf16.mxu0 0
    %3498 = vmatpush2.bf16.msra.mxu0 %v3411
    %3499 = vmatprep.mubr.bf16.mxu0 %v3195
    %3500 = vmatmul.mubr.bf16.gmra.mxu0 %v3194
    %v3501 = vpop.f32.mrf.mxu0
    %v3502 = vadd.f32 %v3273, %v3501
    %v3503 = vpop.f32.mrf.mxu0
    %v3504 = vpop.f32.mrf.mxu0
    %v3505 = vpop.f32.mrf.mxu0
    %3506 = vmatprep.mubr.bf16.mxu0 %v3199
    %3507 = vmatmul.mubr.bf16.gmra.mxu0 %v3198
    %v3508 = vpop.f32.mrf.mxu0
    %v3509 = vadd.f32 %v3273, %v3508
    %v3510 = vpop.f32.mrf.mxu0
    %v3511 = vpop.f32.mrf.mxu0
    %v3512 = vpop.f32.mrf.mxu0
    %3513 = vdwg.mxu0
    %3514 = vmatprep.subr.bf16.mxu0 0
    %3515 = vmatpush1.bf16.msra.mxu0 %v3426
    %3516 = vmatprep.subr.bf16.mxu0 0
    %3517 = vmatpush1.bf16.msra.mxu0 %v3425
    %3518 = vmatprep.subr.bf16.mxu0 0
    %3519 = vmatpush1.bf16.msra.mxu0 %v3424
    %3520 = vmatprep.subr.bf16.mxu0 0
    %3521 = vmatpush1.bf16.msra.mxu0 %v3423
    %3522 = vmatprep.subr.bf16.mxu0 0
    %3523 = vmatpush1.bf16.msra.mxu0 %v3422
    %3524 = vmatprep.subr.bf16.mxu0 0
    %3525 = vmatpush1.bf16.msra.mxu0 %v3421
    %3526 = vmatprep.subr.bf16.mxu0 0
    %3527 = vmatpush1.bf16.msra.mxu0 %v3420
    %3528 = vmatprep.subr.bf16.mxu0 0
    %3529 = vmatpush1.bf16.msra.mxu0 %v3419
    %3530 = vmatprep.subr.bf16.mxu0 0
    %3531 = vmatpush2.bf16.msra.mxu0 %v3434
    %3532 = vmatprep.subr.bf16.mxu0 0
    %3533 = vmatpush2.bf16.msra.mxu0 %v3433
    %3534 = vmatprep.subr.bf16.mxu0 0
    %3535 = vmatpush2.bf16.msra.mxu0 %v3432
    %3536 = vmatprep.subr.bf16.mxu0 0
    %3537 = vmatpush2.bf16.msra.mxu0 %v3431
    %3538 = vmatprep.subr.bf16.mxu0 0
    %3539 = vmatpush2.bf16.msra.mxu0 %v3430
    %3540 = vmatprep.subr.bf16.mxu0 0
    %3541 = vmatpush2.bf16.msra.mxu0 %v3429
    %3542 = vmatprep.subr.bf16.mxu0 0
    %3543 = vmatpush2.bf16.msra.mxu0 %v3428
    %3544 = vmatprep.subr.bf16.mxu0 0
    %3545 = vmatpush2.bf16.msra.mxu0 %v3427
    %3546 = vmatprep.mubr.bf16.mxu0 %v3197
    %3547 = vmatmul.mubr.bf16.gmra.mxu0 %v3196
    %v3548 = vpop.f32.mrf.mxu0
    %v3549 = vadd.f32 %v3502, %v3548
    %v3550 = vpop.f32.mrf.mxu0
    %v3551 = vpop.f32.mrf.mxu0
    %v3552 = vpop.f32.mrf.mxu0
    %3553 = vmatprep.mubr.bf16.mxu0 %v3201
    %3554 = vmatmul.mubr.bf16.gmra.mxu0 %v3200
    %v3555 = vpop.f32.mrf.mxu0
    %v3556 = vadd.f32 %v3509, %v3555
    %v3557 = vpop.f32.mrf.mxu0
    %v3558 = vpop.f32.mrf.mxu0
    %v3559 = vpop.f32.mrf.mxu0
    %3560 = vdwg.mxu0
    %v3561 = vadd.f32 %v2782, %v3549
    %v3562 = vadd.f32 %v2784, %v3556
    %v3563 = vld [vmem:[%s17] sm:$0x1]
    %v3564 = vld [vmem:[%s18] sm:$0x1]
    %v3567 = vrot.slane %v3562, 7
    %vm3568 = vcmask 1041409
    %v3569 = vsel %vm3568, %v3567, %v3561
    %vm3571 = vcmask 1041408
    %v3572 = vsel %vm3571, %v3569, 0.0
    %3573 = vadd.xlane.f32.xlu0 %v3572
    %v3574 = vpop.xlane.xlu0 %3573
    %v3575 = vmul.f32 %v3574, %v280
    %v3577 = vrot.slane %v3575, 1
    %v3580 = vsub.f32 %v3561, %v3575
    %v3581 = vsub.f32 %v3562, %v3577
    %v3582 = vmul.f32 %v3580, %v3580
    %v3583 = vmul.f32 %v3581, %v3581
    %v3586 = vrot.slane %v3583, 7
    %v3587 = vsel %vm3568, %v3586, %v3582
    %v3589 = vsel %vm3571, %v3587, 0.0
    %3590 = vadd.xlane.f32.xlu0 %v3589
    %v3591 = vpop.xlane.xlu0 %3590
    %v3592 = vmul.f32 %v3591, %v280
    %v3593 = vadd.f32 %v3592, 1e-05
    %v3594 = vrsqrt.pop %v3593
    %v3596 = vrot.slane %v3594, 1
    %v3599 = vmul.f32 %v3580, %v3594
    %v3600 = vmul.f32 %v3581, %v3596
    %v3602 = vlaneseq
    %v3603 = vshrl.u32 %v3602, 7
    %v3604 = vsub.s32 0, %v3603
    %v3605 = vrot.slane %v3563, %v3604
    %v3607 = vmul.f32 %v3599, %v3605
    %v3608 = vmul.f32 %v3600, %v3605
    %v3610 = vlaneseq
    %v3611 = vshrl.u32 %v3610, 7
    %v3612 = vsub.s32 0, %v3611
    %v3613 = vrot.slane %v3564, %v3612
    %v3615 = vadd.f32 %v3607, %v3613
    %v3616 = vadd.f32 %v3608, %v3613
    %v3617 = vpack.c.bf16 %v3615, %v3615
    %v3618 = vpack.c.bf16 %v3616, %v3616
    %v3619 = vld [vmem:[#allocation22] sm:$0xf]
    %v3620 = vld [vmem:[#allocation22 + $0x4] sm:$0xf]
    %v3621 = vld [vmem:[#allocation22 + $0x8] sm:$0xf]
    %v3622 = vld [vmem:[#allocation22 + $0xc] sm:$0xf]
    %v3623 = vld [vmem:[#allocation22 + $0x10] sm:$0xf]
    %v3624 = vld [vmem:[#allocation22 + $0x14] sm:$0xf]
    %v3625 = vld [vmem:[#allocation22 + $0x18] sm:$0xf]
    %v3626 = vld [vmem:[#allocation22 + $0x1c] sm:$0xf]
    %v3627 = vld [vmem:[#allocation22 + $0x20] sm:$0xf]
    %v3628 = vld [vmem:[#allocation22 + $0x24] sm:$0xf]
    %v3629 = vld [vmem:[#allocation22 + $0x28] sm:$0xf]
    %v3630 = vld [vmem:[#allocation22 + $0x2c] sm:$0xf]
    %v3631 = vld [vmem:[#allocation22 + $0x30] sm:$0xf]
    %v3632 = vld [vmem:[#allocation22 + $0x34] sm:$0xf]
    %v3633 = vld [vmem:[#allocation22 + $0x38] sm:$0xf]
    %v3634 = vld [vmem:[#allocation22 + $0x3c] sm:$0xf]
    %v3635 = vld [vmem:[%s20] sm:$0x1]
    %v3637 = vlaneseq
    %v3638 = vshrl.u32 %v3637, 7
    %v3639 = vsub.s32 0, %v3638
    %v3640 = vrot.slane %v3635, %v3639
    %v3644 = vunpack.c.l.b16 %v3617
    %v3645 = vunpack.c.l.b16 %v3618
    %v3646 = vrot.slane %v3645, 7
    %v3647 = vsel %vm3568, %v3646, %v3644
    %v3648 = vpack.c.b16 %v3647, %v3647
    %v3666 = vunpack.c.l.b16 %v3619
    %v3667 = vunpack.c.l.b16 %v3620
    %v3668 = vunpack.c.l.b16 %v3621
    %v3669 = vunpack.c.l.b16 %v3622
    %v3670 = vunpack.c.l.b16 %v3623
    %v3671 = vunpack.c.l.b16 %v3624
    %v3672 = vunpack.c.l.b16 %v3625
    %v3673 = vunpack.c.l.b16 %v3626
    %v3674 = vunpack.c.l.b16 %v3627
    %v3675 = vunpack.c.l.b16 %v3628
    %v3676 = vunpack.c.l.b16 %v3629
    %v3677 = vunpack.c.l.b16 %v3630
    %v3678 = vunpack.c.l.b16 %v3631
    %v3679 = vunpack.c.l.b16 %v3632
    %v3680 = vunpack.c.l.b16 %v3633
    %v3681 = vunpack.c.l.b16 %v3634
    %v3682 = vpack.c.b16 %v3667, %v3666
    %v3683 = vpack.c.b16 %v3669, %v3668
    %v3684 = vpack.c.b16 %v3671, %v3670
    %v3685 = vpack.c.b16 %v3673, %v3672
    %v3686 = vpack.c.b16 %v3675, %v3674
    %v3687 = vpack.c.b16 %v3677, %v3676
    %v3688 = vpack.c.b16 %v3679, %v3678
    %v3689 = vpack.c.b16 %v3681, %v3680
    %3698 = vmatprep.subr.bf16.mxu0 0
    %3699 = vmatpush1.bf16.msra.mxu0 %v3689
    %3700 = vmatprep.subr.bf16.mxu0 0
    %3701 = vmatpush1.bf16.msra.mxu0 %v3688
    %3702 = vmatprep.subr.bf16.mxu0 0
    %3703 = vmatpush1.bf16.msra.mxu0 %v3687
    %3704 = vmatprep.subr.bf16.mxu0 0
    %3705 = vmatpush1.bf16.msra.mxu0 %v3686
    %3706 = vmatprep.subr.bf16.mxu0 0
    %3707 = vmatpush1.bf16.msra.mxu0 %v3685
    %3708 = vmatprep.subr.bf16.mxu0 0
    %3709 = vmatpush1.bf16.msra.mxu0 %v3684
    %3710 = vmatprep.subr.bf16.mxu0 0
    %3711 = vmatpush1.bf16.msra.mxu0 %v3683
    %3712 = vmatprep.subr.bf16.mxu0 0
    %3713 = vmatpush1.bf16.msra.mxu0 %v3682
    %3714 = vmatprep.subr.bf16.mxu0 0
    %3715 = vmatpush2.bf16.msra.mxu0 0
    %3716 = vmatprep.subr.bf16.mxu0 0
    %3717 = vmatpush2.bf16.msra.mxu0 0
    %3718 = vmatprep.subr.bf16.mxu0 0
    %3719 = vmatpush2.bf16.msra.mxu0 0
    %3720 = vmatprep.subr.bf16.mxu0 0
    %3721 = vmatpush2.bf16.msra.mxu0 0
    %3722 = vmatprep.subr.bf16.mxu0 0
    %3723 = vmatpush2.bf16.msra.mxu0 0
    %3724 = vmatprep.subr.bf16.mxu0 0
    %3725 = vmatpush2.bf16.msra.mxu0 0
    %3726 = vmatprep.subr.bf16.mxu0 0
    %3727 = vmatpush2.bf16.msra.mxu0 0
    %3728 = vmatprep.subr.bf16.mxu0 0
    %3729 = vmatpush2.bf16.msra.mxu0 0
    %3730 = vmatprep.mubr.bf16.mxu0 0
    %3731 = vmatmul.mubr.bf16.gmra.mxu0 %v3648
    %v3732 = vpop.f32.mrf.mxu0
    %v3733 = vadd.f32 %v3640, %v3732
    %v3734 = vpop.f32.mrf.mxu0
    %v3735 = vpop.f32.mrf.mxu0
    %v3736 = vpop.f32.mrf.mxu0
    %3737 = vdwg.mxu0
    %v3738 = vmul.f32 %v3733, 0.5
    %v3739 = vmul.f32 %v3733, 0.70710677
    %v3740 = vand.u32 2147483647, %v3739
    %v3741 = vmul.f32 %v3740, 0.3275911
    %v3742 = vadd.f32 %v3741, 1.0
    %v3743 = vrcp.pop %v3742
    %v3744 = vmul.f32 1.0, %v3743
    %v3745 = vmul.f32 %v3744, 1.0614054
    %v3746 = vadd.f32 %v3745, -1.4531521
    %v3747 = vmul.f32 %v3746, %v3744
    %v3748 = vadd.f32 %v3747, 1.4214138
    %v3749 = vmul.f32 %v3748, %v3744
    %v3750 = vadd.f32 %v3749, -0.28449672
    %v3751 = vmul.f32 %v3750, %v3744
    %v3752 = vadd.f32 %v3751, 0.2548296
    %v3753 = vmul.f32 %v3752, %v3744
    %v3754 = vsub.f32 0.0, %v3740
    %v3755 = vmul.f32 %v3754, %v3740
    %v3756 = vmul.f32 %v3755, 1.442695
    %v3757 = vpow.pop %v3756
    %v3758 = vmul.f32 %v3753, %v3757
    %v3759 = vsub.f32 1.0, %v3758
    %vm3760 = vcmp.ge.f32.partialorder %v3739, 0.0
    %v3761 = vsub.f32 0.0, %v3759
    %v3762 = vsel %vm3760, %v3759, %v3761
    %v3763 = vadd.f32 %v3762, 1.0
    %v3764 = vmul.f32 %v3738, %v3763
    %v3765 = vpack.c.bf16 %v3764, %v3764
    %v3766 = vld [vmem:[#allocation23] sm:$0xf]
    %v3767 = vld [vmem:[#allocation23 + $0x4] sm:$0xf]
    %v3768 = vld [vmem:[#allocation23 + $0x8] sm:$0xf]
    %v3769 = vld [vmem:[#allocation23 + $0xc] sm:$0xf]
    %v3770 = vld [vmem:[#allocation23 + $0x10] sm:$0xf]
    %v3771 = vld [vmem:[#allocation23 + $0x14] sm:$0xf]
    %v3772 = vld [vmem:[#allocation23 + $0x18] sm:$0xf]
    %v3773 = vld [vmem:[#allocation23 + $0x1c] sm:$0xf]
    %v3774 = vld [vmem:[#allocation23 + $0x20] sm:$0xf]
    %v3775 = vld [vmem:[#allocation23 + $0x24] sm:$0xf]
    %v3776 = vld [vmem:[#allocation23 + $0x28] sm:$0xf]
    %v3777 = vld [vmem:[#allocation23 + $0x2c] sm:$0xf]
    %v3778 = vld [vmem:[#allocation23 + $0x30] sm:$0xf]
    %v3779 = vld [vmem:[#allocation23 + $0x34] sm:$0xf]
    %v3780 = vld [vmem:[#allocation23 + $0x38] sm:$0xf]
    %v3781 = vld [vmem:[#allocation23 + $0x3c] sm:$0xf]
    %v3782 = vld [vmem:[%s22] sm:$0x1]
    %v3784 = vlaneseq
    %v3785 = vshrl.u32 %v3784, 7
    %v3786 = vsub.s32 0, %v3785
    %v3787 = vrot.slane %v3782, %v3786
    %v3805 = vunpack.c.l.b16 %v3766
    %v3806 = vunpack.c.l.b16 %v3767
    %v3807 = vunpack.c.l.b16 %v3768
    %v3808 = vunpack.c.l.b16 %v3769
    %v3809 = vunpack.c.l.b16 %v3770
    %v3810 = vunpack.c.l.b16 %v3771
    %v3811 = vunpack.c.l.b16 %v3772
    %v3812 = vunpack.c.l.b16 %v3773
    %v3813 = vunpack.c.l.b16 %v3774
    %v3814 = vunpack.c.l.b16 %v3775
    %v3815 = vunpack.c.l.b16 %v3776
    %v3816 = vunpack.c.l.b16 %v3777
    %v3817 = vunpack.c.l.b16 %v3778
    %v3818 = vunpack.c.l.b16 %v3779
    %v3819 = vunpack.c.l.b16 %v3780
    %v3820 = vunpack.c.l.b16 %v3781
    %v3821 = vpack.c.b16 %v3806, %v3805
    %v3822 = vpack.c.b16 %v3808, %v3807
    %v3823 = vpack.c.b16 %v3810, %v3809
    %v3824 = vpack.c.b16 %v3812, %v3811
    %v3825 = vpack.c.b16 %v3814, %v3813
    %v3826 = vpack.c.b16 %v3816, %v3815
    %v3827 = vpack.c.b16 %v3818, %v3817
    %v3828 = vpack.c.b16 %v3820, %v3819
    %3837 = vmatprep.subr.bf16.mxu0 0
    %3838 = vmatpush1.bf16.msra.mxu0 %v3828
    %3839 = vmatprep.subr.bf16.mxu0 0
    %3840 = vmatpush1.bf16.msra.mxu0 %v3827
    %3841 = vmatprep.subr.bf16.mxu0 0
    %3842 = vmatpush1.bf16.msra.mxu0 %v3826
    %3843 = vmatprep.subr.bf16.mxu0 0
    %3844 = vmatpush1.bf16.msra.mxu0 %v3825
    %3845 = vmatprep.subr.bf16.mxu0 0
    %3846 = vmatpush1.bf16.msra.mxu0 %v3824
    %3847 = vmatprep.subr.bf16.mxu0 0
    %3848 = vmatpush1.bf16.msra.mxu0 %v3823
    %3849 = vmatprep.subr.bf16.mxu0 0
    %3850 = vmatpush1.bf16.msra.mxu0 %v3822
    %3851 = vmatprep.subr.bf16.mxu0 0
    %3852 = vmatpush1.bf16.msra.mxu0 %v3821
    %3853 = vmatprep.subr.bf16.mxu0 0
    %3854 = vmatpush2.bf16.msra.mxu0 0
    %3855 = vmatprep.subr.bf16.mxu0 0
    %3856 = vmatpush2.bf16.msra.mxu0 0
    %3857 = vmatprep.subr.bf16.mxu0 0
    %3858 = vmatpush2.bf16.msra.mxu0 0
    %3859 = vmatprep.subr.bf16.mxu0 0
    %3860 = vmatpush2.bf16.msra.mxu0 0
    %3861 = vmatprep.subr.bf16.mxu0 0
    %3862 = vmatpush2.bf16.msra.mxu0 0
    %3863 = vmatprep.subr.bf16.mxu0 0
    %3864 = vmatpush2.bf16.msra.mxu0 0
    %3865 = vmatprep.subr.bf16.mxu0 0
    %3866 = vmatpush2.bf16.msra.mxu0 0
    %3867 = vmatprep.subr.bf16.mxu0 0
    %3868 = vmatpush2.bf16.msra.mxu0 0
    %3869 = vmatprep.mubr.bf16.mxu0 0
    %3870 = vmatmul.mubr.bf16.gmra.mxu0 %v3765
    %v3871 = vpop.f32.mrf.mxu0
    %v3872 = vadd.f32 %v3787, %v3871
    %v3873 = vpop.f32.mrf.mxu0
    %v3874 = vpop.f32.mrf.mxu0
    %v3875 = vpop.f32.mrf.mxu0
    %3876 = vdwg.mxu0
    %3877 = vst [vmem:[#allocation25] sm:$0x3] %v3872
    // Predicated region
    $region150: #{food_model_forward.1} parent=1 // pred_check
      _
    $region151: #{food_model_forward.1} parent=1 // pred_check_branch
      %3879 = sbr.rel (0) target = $region153
    $region152: #{food_model_forward.1} parent=1 // pred_region
      %s3881 = ssub.s32 32, 32
      %3882 = vsyncadd [#allocation4], %s3881
      %s3884 = sshll.u32 [#allocation25], 4
      %s3885 = int_to_ptr.vmem [resolvable:$true] %s3884
      %3887 = dma.vmem_to_hbm [thread:$0]  %s3885, 32, %s23, [#allocation4]
    $region153: #{food_model_forward.1} parent=1 // pred_fallthru
      _
    // Predicated region
    $region154: #{food_model_forward.1} parent=1 // pred_check
      _
    $region155: #{food_model_forward.1} parent=1 // pred_check_branch
      %3889 = sbr.rel (0) target = $region157
    $region156: #{food_model_forward.1} parent=1 // pred_region
      %3890 = dma.done [#allocation4], 32
    $region157: #{food_model_forward.1} parent=1 // pred_fallthru
      _
    %3891 = vsyncpa [#allocation3], 1
    %3892 = vsyncpa [#allocation6], 1
    %3893 = vsyncpa [#allocation9], 1
    %3894 = vsyncpa [#allocation12], 1
    %3895 = vsyncpa [#allocation15], 1
    %3896 = vsyncpa [#allocation18], 1
    %3897 = vsyncpa [#allocation21], 1
    %3898 = vsyncpa [#allocation24], 1
    %3899 = vsyncpa [#allocation4], 1

</llo_original>
